<compile_context>
chip_gen: v7x
topology: tpu7x:2x2x1
jax: 0.10.0
libtpu: 0.0.40
codegen_flags: <defaults>
</compile_context>

<pallas_src>
import functools

import jax
import jax.numpy as jnp
from jax.experimental import pallas as pl
from jax.experimental.pallas import tpu as pltpu


_MAX_LANE_TILE = 512


def _round_up(x, m):
    return (x + m - 1) // m * m


def _lane_tile(m_pad):
    t = _MAX_LANE_TILE
    while m_pad % t != 0:
        t //= 2
    return t


# ----------------------------------------------------------------------------
# Pallas kernels
# ----------------------------------------------------------------------------

def _conv_gemm_relu_kernel(p_ref, w_ref, b_ref, o_ref):
    """One lane-tile of a strided Conv2d expressed as a GEMM, + bias + ReLU.

    p_ref: (Kp, T)    im2col patches (Kp = 25*Cin padded to 128), T = lane tile
    w_ref: (Cout, Kp) repacked conv weights
    b_ref: (Cout, 1)  bias (f32)
    o_ref: (Cout, T)  channels-first / batch-folded output tile
    """
    acc = jnp.dot(w_ref[...], p_ref[...], preferred_element_type=jnp.float32)
    o_ref[...] = jnp.maximum(acc + b_ref[...], 0.0).astype(o_ref.dtype)


def _conv3_conv1d_kernel(p_ref, w3_ref, b3_ref, w4_ref, b4_ref, m_ref, o_ref):
    """Fused conv3 (GEMM) + ReLU + Conv1d(k=3, p=1); conv3 output stays in VMEM.

    p_ref : (K3p, Lp)   im2col patches of conv2's output, Lp = pad(B*H3*W3)
    w3_ref: (M1, K3p)
    b3_ref: (M1, 1)
    w4_ref: (N2, 3*M1)  Conv1d weights repacked tap-major: [prev | center | next]
    b4_ref: (N2, 1)
    m_ref : (2, Lp)     f32 masks: row0 -> "prev" tap valid, row1 -> "next" tap
                        valid (zeros both the Conv1d zero-padding columns and
                        the batch seams of the folded B*L lane axis, since the
                        roll below is circular).
    o_ref : (N2, Lp)
    """
    lp = o_ref.shape[-1]

    # conv3 + ReLU, laid out (C, B*H3*W3) == exactly what the Conv1d consumes.
    y3 = jnp.dot(w3_ref[...], p_ref[...], preferred_element_type=jnp.float32)
    y3 = jnp.maximum(y3 + b3_ref[...], 0.0)                       # (M1, Lp) f32

    # +-1 column taps via XLU roll + precomputed boundary masks — no L x L
    # shift matrices, no per-step iota/compare work on the VPU.
    prev = pltpu.roll(y3, shift=1, axis=1) * m_ref[0:1, :]        # y3[:, l-1]
    nxt = pltpu.roll(y3, shift=lp - 1, axis=1) * m_ref[1:2, :]    # y3[:, l+1]

    # Single K = 3*M1 GEMM for all three Conv1d taps.
    stack = jnp.concatenate([prev, y3, nxt], axis=0)              # (3*M1, Lp)
    acc = jnp.dot(w4_ref[...], stack, preferred_element_type=jnp.float32)
    o_ref[...] = (acc + b4_ref[...]).astype(o_ref.dtype)


# ----------------------------------------------------------------------------
# Wrappers (layout plumbing + pallas_call)
# ----------------------------------------------------------------------------

def _im2col_s2k5(x_cbhw, k_pad, m_pad, dtype):
    """im2col for Conv2d(k=5, s=2, p=2) on a channels-first, batch-folded
    activation: (C, B, H, W) -> (k_pad, m_pad) with K = 25*C zero-padded to
    k_pad and M = B*(H/2)*(W/2) zero-padded to m_pad."""
    C, B, H, W = x_cbhw.shape
    Ho, Wo = H // 2, W // 2
    # Only 2 rows/cols of padding before and 1 after are ever read.
    xp = jnp.pad(x_cbhw, ((0, 0), (0, 0), (2, 1), (2, 1)))
    taps = []
    for ky in range(5):
        for kx in range(5):
            taps.append(xp[:, :, ky:ky + 2 * Ho - 1:2, kx:kx + 2 * Wo - 1:2])
    p = jnp.stack(taps, axis=0).reshape(25 * C, B * Ho * Wo)
    p = jnp.pad(p, ((0, k_pad - 25 * C), (0, m_pad - B * Ho * Wo)))
    return p.astype(dtype)


def _conv_gemm_relu(patches, wm, b, out_dtype):
    """patches: (Kp, Mp) -> (Cout, Mp); grid over lane tiles of the M axis."""
    kp, mp = patches.shape
    cout = wm.shape[0]
    tile = _lane_tile(mp)
    return pl.pallas_call(
        _conv_gemm_relu_kernel,
        out_shape=jax.ShapeDtypeStruct((cout, mp), out_dtype),
        grid=(mp // tile,),
        in_specs=[
            pl.BlockSpec((kp, tile), lambda j: (0, j)),
            pl.BlockSpec((cout, kp), lambda j: (0, 0)),
            pl.BlockSpec((cout, 1), lambda j: (0, 0)),
        ],
        out_specs=pl.BlockSpec((cout, tile), lambda j: (0, j)),
        compiler_params=pltpu.CompilerParams(dimension_semantics=("parallel",)),
    )(patches, wm, b)


def _conv3_conv1d(patches, w3m, b3, w4s, b4, edge_mask, out_dtype):
    """Fused conv3 + ReLU + Conv1d over the whole folded (B*L) lane slab."""
    k3p, lp = patches.shape
    m1 = w3m.shape[0]
    n2 = w4s.shape[0]
    # Whole-L in one step so the +-1 taps never cross a tile boundary.
    # (For very large B*H3*W3 this should be lane-tiled with a 1-column halo.)
    return pl.pallas_call(
        _conv3_conv1d_kernel,
        out_shape=jax.ShapeDtypeStruct((n2, lp), out_dtype),
        grid=(1,),
        in_specs=[
            pl.BlockSpec((k3p, lp), lambda i: (0, 0)),
            pl.BlockSpec((m1, k3p), lambda i: (0, 0)),
            pl.BlockSpec((m1, 1), lambda i: (0, 0)),
            pl.BlockSpec((n2, 3 * m1), lambda i: (0, 0)),
            pl.BlockSpec((n2, 1), lambda i: (0, 0)),
            pl.BlockSpec((2, lp), lambda i: (0, 0)),
        ],
        out_specs=pl.BlockSpec((n2, lp), lambda i: (0, 0)),
        compiler_params=pltpu.CompilerParams(dimension_semantics=("arbitrary",)),
    )(patches, w3m, b3, w4s, b4, edge_mask)


# ----------------------------------------------------------------------------
# Parameter prep (hoisted out of the jitted forward) and Enc_r forward
# ----------------------------------------------------------------------------

def prepare_params(params, compute_dtype=jnp.float32):
    """Repack torch-layout weights into K-padded GEMM form once, outside jit."""
    q = {"dtype": compute_dtype}
    for i in (1, 2, 3):
        w = params[f"w{i}"]                           # (Cout, Cin, 5, 5)
        cout, cin = w.shape[0], w.shape[1]
        k = 25 * cin
        kp = _round_up(k, 128)
        # K index = (ky*5 + kx)*Cin + ci  — must match _im2col_s2k5 ordering.
        wm = jnp.transpose(w, (0, 2, 3, 1)).reshape(cout, k)
        wm = jnp.pad(wm, ((0, 0), (0, kp - k)))
        q[f"w{i}m"] = wm.astype(compute_dtype)
        q[f"b{i}"] = params[f"b{i}"].reshape(-1, 1).astype(jnp.float32)
    w4 = params["w4"]                                 # (N2, M1, 3)
    n2, m1 = w4.shape[0], w4.shape[1]
    # (N2, 3*M1), taps ordered [prev(k=0) | center(k=1) | next(k=2)] to match
    # the [prev; y3; next] stack built inside the fused kernel.
    q["w4s"] = jnp.transpose(w4, (0, 2, 1)).reshape(n2, 3 * m1).astype(jnp.float32)
    q["b4"] = params["b4"].reshape(-1, 1).astype(jnp.float32)
    return q


def enc_r_forward(prep, x):
    """Pallas Enc_r.forward: x (B, n_features, H, W) -> (B, N2, H/8, W/8)."""
    B, _, H, W = x.shape
    assert H % 8 == 0 and W % 8 == 0
    dtype = prep["dtype"]
    ch = prep["w1m"].shape[0]                 # M1
    n2 = prep["w4s"].shape[0]                 # N2
    h1, w1 = H // 2, W // 2
    h2, w2 = H // 4, W // 4
    h3, w3 = H // 8, W // 8

    # Channels-first / batch-folded layout: (C, B, H, W); lanes = B*Ho*Wo.
    xc = jnp.transpose(x, (1, 0, 2, 3)).astype(dtype)

    # conv1 + ReLU
    m1tot = B * h1 * w1
    m1pad = _round_up(m1tot, 128)
    p1 = _im2col_s2k5(xc, prep["w1m"].shape[1], m1pad, dtype)
    y1 = _conv_gemm_relu(p1, prep["w1m"], prep["b1"], dtype)        # (M1, m1pad)
    y1 = y1[:, :m1tot].reshape(ch, B, h1, w1)

    # conv2 + ReLU
    m2tot = B * h2 * w2
    m2pad = _round_up(m2tot, 128)
    p2 = _im2col_s2k5(y1, prep["w2m"].shape[1], m2pad, dtype)
    y2 = _conv_gemm_relu(p2, prep["w2m"], prep["b2"], dtype)        # (M1, m2pad)
    y2 = y2[:, :m2tot].reshape(ch, B, h2, w2)

    # conv3 + ReLU + conv4 (Conv1d k=3, p=1 over the flattened H3*W3 axis),
    # fused in a single kernel; conv3's activation never leaves VMEM.
    L = h3 * w3                               # per-batch Conv1d length
    ltot = B * L
    lpad = _round_up(ltot, 128)
    p3 = _im2col_s2k5(y2, prep["w3m"].shape[1], lpad, dtype)

    # Boundary masks for the +-1 taps on the folded (B*L) lane axis: zero the
    # Conv1d zero-padding columns and the batch seams (the in-kernel roll is
    # circular). Built once per shape from a lane iota (constant-folded).
    pos = jnp.arange(lpad, dtype=jnp.int32) % L
    edge_mask = jnp.stack([(pos != 0), (pos != L - 1)]).astype(jnp.float32)

    y4 = _conv3_conv1d(p3, prep["w3m"], prep["b3"], prep["w4s"], prep["b4"],
                       edge_mask, jnp.float32)                       # (N2, lpad)
    y4 = y4[:, :ltot].reshape(n2, B, h3, w3)
    return jnp.transpose(y4, (1, 0, 2, 3))


# ----------------------------------------------------------------------------
# Pure-JAX (lax conv) reference
# ----------------------------------------------------------------------------

def _ref_conv2d_relu(x, w, b):
    y = jax.lax.conv_general_dilated(
        x, w, window_strides=(2, 2), padding=((2, 2), (2, 2)),
        dimension_numbers=("NCHW", "OIHW", "NCHW"))
    return jnp.maximum(y + b[None, :, None, None], 0.0)


def _ref_conv1d(x, w, b):
    y = jax.lax.conv_general_dilated(
        x, w, window_strides=(1,), padding=((1, 1),),
        dimension_numbers=("NCH", "OIH", "NCH"))
    return y + b[None, :, None]


def enc_r_forward_ref(params, x):
    x1 = _ref_conv2d_relu(x, params["w1"], params["b1"])
    x2 = _ref_conv2d_relu(x1, params["w2"], params["b2"])
    x3 = _ref_conv2d_relu(x2, params["w3"], params["b3"])
    B, C, H, W = x3.shape
    x4 = _ref_conv1d(x3.reshape(B, C, H * W), params["w4"], params["b4"])
    return x4.reshape(B, -1, H, W)


# ----------------------------------------------------------------------------
# Synthetic parameters
# ----------------------------------------------------------------------------

def init_params(key, num_features, M1, N2):
    keys = jax.random.split(key, 8)

    def conv2d_w(k, cout, cin):
        # torch Conv2d weight layout: (Cout, Cin, kH, kW)
        return (jax.random.normal(k, (cout, cin, 5, 5), jnp.float32)
                / jnp.sqrt(cin * 25.0))

    def conv1d_w(k, cout, cin):
        # torch Conv1d weight layout: (Cout, Cin, K)
        return (jax.random.normal(k, (cout, cin, 3), jnp.float32)
                / jnp.sqrt(cin * 3.0))

    def bias(k, c):
        return jax.random.normal(k, (c,), jnp.float32) * 0.01

    p = {}
    p["w1"] = conv2d_w(keys[0], M1, num_features); p["b1"] = bias(keys[1], M1)
    p["w2"] = conv2d_w(keys[2], M1, M1);           p["b2"] = bias(keys[3], M1)
    p["w3"] = conv2d_w(keys[4], M1, M1);           p["b3"] = bias(keys[5], M1)
    p["w4"] = conv1d_w(keys[6], N2, M1);           p["b4"] = bias(keys[7], N2)
    return p


if __name__ == "__main__":
    # Small but lane-dense shapes: B=2, num_features=4, 64x64 input,
    # M1=32 hidden channels, N2=8 output channels -> output (2, 8, 8, 8).
    B, C, H, W = 2, 4, 64, 64
    M1, N2 = 32, 8

    key = jax.random.PRNGKey(0)
    k_p, k_x = jax.random.split(key)
    params = init_params(k_p, C, M1, N2)
    x = jax.random.normal(k_x, (B, C, H, W), jnp.float32)
    ref = enc_r_forward_ref(params, x)

    # f32 compute path: tight correctness check.
    prep32 = prepare_params(params, jnp.float32)
    fwd32 = jax.jit(functools.partial(enc_r_forward, prep32))
    out32 = fwd32(x)
    jax.block_until_ready(out32)
    assert out32.shape == (B, N2, H // 8, W // 8), out32.shape
    assert jnp.allclose(out32, ref, atol=1e-4, rtol=1e-4), \
        float(jnp.max(jnp.abs(out32 - ref)))

    # bf16 compute path (f32 accumulation): halves MXU time and im2col HBM
    # bytes; looser tolerance appropriate for bf16 inputs.
    prep16 = prepare_params(params, jnp.bfloat16)
    fwd16 = jax.jit(functools.partial(enc_r_forward, prep16))
    out16 = fwd16(x)
    jax.block_until_ready(out16)
    assert out16.shape == (B, N2, H // 8, W // 8), out16.shape
    assert jnp.allclose(out16.astype(jnp.float32), ref, atol=1e-1, rtol=1e-1), \
        float(jnp.max(jnp.abs(out16.astype(jnp.float32) - ref)))

    print("KERNEL_OK")
</pallas_src>

<mosaic_0001>
module attributes {stable_mosaic.version = 11 : i64} {
  func.func @_conv_gemm_relu_kernel(%arg0: i32, %arg1: memref<128x512xf32, #tpu.memory_space<vmem>>, %arg2: memref<32x128xf32, #tpu.memory_space<vmem>>, %arg3: memref<32x1xf32, #tpu.memory_space<vmem>>, %arg4: memref<32x512xf32, #tpu.memory_space<vmem>>) attributes {dimension_semantics = [#tpu.dimension_semantics<parallel>], iteration_bounds = array<i64: 4>, scalar_prefetch = 0 : i64, scratch_operands = 0 : i64, tpu.core_type = #tpu.core_type<tc>, window_params = [{transform_indices = @transform_0, window_bounds = array<i64: 128, 512>}, {pipeline_mode = #tpu.pipeline_mode<synchronous>, transform_indices = @transform_1, window_bounds = array<i64: 32, 128>}, {pipeline_mode = #tpu.pipeline_mode<synchronous>, transform_indices = @transform_2, window_bounds = array<i64: 32, 1>}, {transform_indices = @transform_3, window_bounds = array<i64: 32, 512>}]} {
    %c0 = arith.constant 0 : index
    %c0_0 = arith.constant 0 : index
    %0 = vector.load %arg2[%c0, %c0_0] : memref<32x128xf32, #tpu.memory_space<vmem>>, vector<32x128xf32>
    %c0_1 = arith.constant 0 : index
    %c0_2 = arith.constant 0 : index
    %1 = vector.load %arg1[%c0_1, %c0_2] : memref<128x512xf32, #tpu.memory_space<vmem>>, vector<128x512xf32>
    %cst = arith.constant dense<0.000000e+00> : vector<32x512xf32>
    %2 = tpu.matmul %0, %1, %cst {dimension_numbers = #tpu.dot_dimension_numbers<[1], [0], [0], [1], [0, 0, 1, 1], [], []>} : vector<32x128xf32>, vector<128x512xf32>, vector<32x512xf32> -> vector<32x512xf32>
    %c0_3 = arith.constant 0 : index
    %c0_4 = arith.constant 0 : index
    %3 = vector.load %arg3[%c0_3, %c0_4] : memref<32x1xf32, #tpu.memory_space<vmem>>, vector<32x1xf32>
    %4 = vector.broadcast %3 : vector<32x1xf32> to vector<32x512xf32>
    %5 = arith.addf %2, %4 : vector<32x512xf32>
    %cst_5 = arith.constant 0.000000e+00 : f32
    %6 = vector.broadcast %cst_5 : f32 to vector<32x512xf32>
    %7 = arith.maximumf %5, %6 : vector<32x512xf32>
    %c0_6 = arith.constant 0 : index
    %c0_7 = arith.constant 0 : index
    %8 = vector.load %arg4[%c0_6, %c0_7] : memref<32x512xf32, #tpu.memory_space<vmem>>, vector<32x512xf32>
    tpu.vector_store %arg4[%c0_6, %c0_7], %7 {strides = array<i32>} : memref<32x512xf32, #tpu.memory_space<vmem>>, vector<32x512xf32>,
    return
  }
  func.func @transform_0(%arg0: i32) -> (i32, i32) {
    %c0_i32 = arith.constant 0 : i32
    %c0_i32_0 = arith.constant 0 : i32
    return %c0_i32, %arg0 : i32, i32
  }
  func.func @transform_1(%arg0: i32) -> (i32, i32) {
    %c0_i32 = arith.constant 0 : i32
    %c0_i32_0 = arith.constant 0 : i32
    %c0_i32_1 = arith.constant 0 : i32
    return %c0_i32, %c0_i32_0 : i32, i32
  }
  func.func @transform_2(%arg0: i32) -> (i32, i32) {
    %c0_i32 = arith.constant 0 : i32
    %c0_i32_0 = arith.constant 0 : i32
    %c0_i32_1 = arith.constant 0 : i32
    return %c0_i32, %c0_i32_0 : i32, i32
  }
  func.func @transform_3(%arg0: i32) -> (i32, i32) {
    %c0_i32 = arith.constant 0 : i32
    %c0_i32_0 = arith.constant 0 : i32
    return %c0_i32, %arg0 : i32, i32
  }
}

module attributes {stable_mosaic.version = 11 : i64} {
  func.func @_conv_gemm_relu_kernel(%arg0: i32, %arg1: memref<896x512xf32, #tpu.memory_space<vmem>>, %arg2: memref<32x896xf32, #tpu.memory_space<vmem>>, %arg3: memref<32x1xf32, #tpu.memory_space<vmem>>, %arg4: memref<32x512xf32, #tpu.memory_space<vmem>>) attributes {dimension_semantics = [#tpu.dimension_semantics<parallel>], iteration_bounds = array<i64: 1>, scalar_prefetch = 0 : i64, scratch_operands = 0 : i64, tpu.core_type = #tpu.core_type<tc>, window_params = [{transform_indices = @transform_0, window_bounds = array<i64: 896, 512>}, {pipeline_mode = #tpu.pipeline_mode<synchronous>, transform_indices = @transform_1, window_bounds = array<i64: 32, 896>}, {pipeline_mode = #tpu.pipeline_mode<synchronous>, transform_indices = @transform_2, window_bounds = array<i64: 32, 1>}, {transform_indices = @transform_3, window_bounds = array<i64: 32, 512>}]} {
    %c0 = arith.constant 0 : index
    %c0_0 = arith.constant 0 : index
    %0 = vector.load %arg2[%c0, %c0_0] : memref<32x896xf32, #tpu.memory_space<vmem>>, vector<32x896xf32>
    %c0_1 = arith.constant 0 : index
    %c0_2 = arith.constant 0 : index
    %1 = vector.load %arg1[%c0_1, %c0_2] : memref<896x512xf32, #tpu.memory_space<vmem>>, vector<896x512xf32>
    %cst = arith.constant dense<0.000000e+00> : vector<32x512xf32>
    %2 = tpu.matmul %0, %1, %cst {dimension_numbers = #tpu.dot_dimension_numbers<[1], [0], [0], [1], [0, 0, 1, 1], [], []>} : vector<32x896xf32>, vector<896x512xf32>, vector<32x512xf32> -> vector<32x512xf32>
    %c0_3 = arith.constant 0 : index
    %c0_4 = arith.constant 0 : index
    %3 = vector.load %arg3[%c0_3, %c0_4] : memref<32x1xf32, #tpu.memory_space<vmem>>, vector<32x1xf32>
    %4 = vector.broadcast %3 : vector<32x1xf32> to vector<32x512xf32>
    %5 = arith.addf %2, %4 : vector<32x512xf32>
    %cst_5 = arith.constant 0.000000e+00 : f32
    %6 = vector.broadcast %cst_5 : f32 to vector<32x512xf32>
    %7 = arith.maximumf %5, %6 : vector<32x512xf32>
    %c0_6 = arith.constant 0 : index
    %c0_7 = arith.constant 0 : index
    %8 = vector.load %arg4[%c0_6, %c0_7] : memref<32x512xf32, #tpu.memory_space<vmem>>, vector<32x512xf32>
    tpu.vector_store %arg4[%c0_6, %c0_7], %7 {strides = array<i32>} : memref<32x512xf32, #tpu.memory_space<vmem>>, vector<32x512xf32>,
    return
  }
  func.func @transform_0(%arg0: i32) -> (i32, i32) {
    %c0_i32 = arith.constant 0 : i32
    %c0_i32_0 = arith.constant 0 : i32
    return %c0_i32, %arg0 : i32, i32
  }
  func.func @transform_1(%arg0: i32) -> (i32, i32) {
    %c0_i32 = arith.constant 0 : i32
    %c0_i32_0 = arith.constant 0 : i32
    %c0_i32_1 = arith.constant 0 : i32
    return %c0_i32, %c0_i32_0 : i32, i32
  }
  func.func @transform_2(%arg0: i32) -> (i32, i32) {
    %c0_i32 = arith.constant 0 : i32
    %c0_i32_0 = arith.constant 0 : i32
    %c0_i32_1 = arith.constant 0 : i32
    return %c0_i32, %c0_i32_0 : i32, i32
  }
  func.func @transform_3(%arg0: i32) -> (i32, i32) {
    %c0_i32 = arith.constant 0 : i32
    %c0_i32_0 = arith.constant 0 : i32
    return %c0_i32, %arg0 : i32, i32
  }
}

module attributes {stable_mosaic.version = 11 : i64} {
  func.func @_conv3_conv1d_kernel(%arg0: i32, %arg1: memref<896x128xf32, #tpu.memory_space<vmem>>, %arg2: memref<32x896xf32, #tpu.memory_space<vmem>>, %arg3: memref<32x1xf32, #tpu.memory_space<vmem>>, %arg4: memref<8x96xf32, #tpu.memory_space<vmem>>, %arg5: memref<8x1xf32, #tpu.memory_space<vmem>>, %arg6: memref<2x128xf32, #tpu.memory_space<vmem>>, %arg7: memref<8x128xf32, #tpu.memory_space<vmem>>) attributes {dimension_semantics = [#tpu.dimension_semantics<arbitrary>], iteration_bounds = array<i64: 1>, scalar_prefetch = 0 : i64, scratch_operands = 0 : i64, tpu.core_type = #tpu.core_type<tc>, window_params = [{pipeline_mode = #tpu.pipeline_mode<synchronous>, transform_indices = @transform_0, window_bounds = array<i64: 896, 128>}, {pipeline_mode = #tpu.pipeline_mode<synchronous>, transform_indices = @transform_1, window_bounds = array<i64: 32, 896>}, {pipeline_mode = #tpu.pipeline_mode<synchronous>, transform_indices = @transform_2, window_bounds = array<i64: 32, 1>}, {pipeline_mode = #tpu.pipeline_mode<synchronous>, transform_indices = @transform_3, window_bounds = array<i64: 8, 96>}, {pipeline_mode = #tpu.pipeline_mode<synchronous>, transform_indices = @transform_4, window_bounds = array<i64: 8, 1>}, {pipeline_mode = #tpu.pipeline_mode<synchronous>, transform_indices = @transform_5, window_bounds = array<i64: 2, 128>}, {pipeline_mode = #tpu.pipeline_mode<synchronous>, transform_indices = @transform_6, window_bounds = array<i64: 8, 128>}]} {
    %c0 = arith.constant 0 : index
    %c0_0 = arith.constant 0 : index
    %0 = vector.load %arg2[%c0, %c0_0] : memref<32x896xf32, #tpu.memory_space<vmem>>, vector<32x896xf32>
    %c0_1 = arith.constant 0 : index
    %c0_2 = arith.constant 0 : index
    %1 = vector.load %arg1[%c0_1, %c0_2] : memref<896x128xf32, #tpu.memory_space<vmem>>, vector<896x128xf32>
    %cst = arith.constant dense<0.000000e+00> : vector<32x128xf32>
    %2 = tpu.matmul %0, %1, %cst {dimension_numbers = #tpu.dot_dimension_numbers<[1], [0], [0], [1], [0, 0, 1, 1], [], []>} : vector<32x896xf32>, vector<896x128xf32>, vector<32x128xf32> -> vector<32x128xf32>
    %c0_3 = arith.constant 0 : index
    %c0_4 = arith.constant 0 : index
    %3 = vector.load %arg3[%c0_3, %c0_4] : memref<32x1xf32, #tpu.memory_space<vmem>>, vector<32x1xf32>
    %4 = vector.broadcast %3 : vector<32x1xf32> to vector<32x128xf32>
    %5 = arith.addf %2, %4 : vector<32x128xf32>
    %cst_5 = arith.constant 0.000000e+00 : f32
    %6 = vector.broadcast %cst_5 : f32 to vector<32x128xf32>
    %7 = arith.maximumf %5, %6 : vector<32x128xf32>
    %c1_i32 = arith.constant 1 : i32
    %8 = tpu.dynamic_rotate %7 by %c1_i32 dim 1 : vector<32x128xf32>, i32 -> vector<32x128xf32>
    %c0_6 = arith.constant 0 : index
    %c0_7 = arith.constant 0 : index
    %9 = vector.load %arg6[%c0_6, %c0_7] : memref<2x128xf32, #tpu.memory_space<vmem>>, vector<1x128xf32>
    %10 = vector.broadcast %9 : vector<1x128xf32> to vector<32x128xf32>
    %11 = arith.mulf %8, %10 : vector<32x128xf32>
    %c127_i32 = arith.constant 127 : i32
    %12 = tpu.dynamic_rotate %7 by %c127_i32 dim 1 : vector<32x128xf32>, i32 -> vector<32x128xf32>
    %c1 = arith.constant 1 : index
    %c0_8 = arith.constant 0 : index
    %13 = vector.load %arg6[%c1, %c0_8] : memref<2x128xf32, #tpu.memory_space<vmem>>, vector<1x128xf32>
    %14 = vector.broadcast %13 : vector<1x128xf32> to vector<32x128xf32>
    %15 = arith.mulf %12, %14 : vector<32x128xf32>
    %16 = tpu.concatenate %11, %7, %15 in 0 : vector<32x128xf32>, vector<32x128xf32>, vector<32x128xf32> -> vector<96x128xf32>
    %c0_9 = arith.constant 0 : index
    %c0_10 = arith.constant 0 : index
    %17 = vector.load %arg4[%c0_9, %c0_10] : memref<8x96xf32, #tpu.memory_space<vmem>>, vector<8x96xf32>
    %cst_11 = arith.constant dense<0.000000e+00> : vector<8x128xf32>
    %18 = tpu.matmul %17, %16, %cst_11 {dimension_numbers = #tpu.dot_dimension_numbers<[1], [0], [0], [1], [0, 0, 1, 1], [], []>} : vector<8x96xf32>, vector<96x128xf32>, vector<8x128xf32> -> vector<8x128xf32>
    %c0_12 = arith.constant 0 : index
    %c0_13 = arith.constant 0 : index
    %19 = vector.load %arg5[%c0_12, %c0_13] : memref<8x1xf32, #tpu.memory_space<vmem>>, vector<8x1xf32>
    %20 = vector.broadcast %19 : vector<8x1xf32> to vector<8x128xf32>
    %21 = arith.addf %18, %20 : vector<8x128xf32>
    %c0_14 = arith.constant 0 : index
    %c0_15 = arith.constant 0 : index
    %22 = vector.load %arg7[%c0_14, %c0_15] : memref<8x128xf32, #tpu.memory_space<vmem>>, vector<8x128xf32>
    tpu.vector_store %arg7[%c0_14, %c0_15], %21 {strides = array<i32>} : memref<8x128xf32, #tpu.memory_space<vmem>>, vector<8x128xf32>,
    return
  }
  func.func @transform_0(%arg0: i32) -> (i32, i32) {
    %c0_i32 = arith.constant 0 : i32
    %c0_i32_0 = arith.constant 0 : i32
    %c0_i32_1 = arith.constant 0 : i32
    return %c0_i32, %c0_i32_0 : i32, i32
  }
  func.func @transform_1(%arg0: i32) -> (i32, i32) {
    %c0_i32 = arith.constant 0 : i32
    %c0_i32_0 = arith.constant 0 : i32
    %c0_i32_1 = arith.constant 0 : i32
    return %c0_i32, %c0_i32_0 : i32, i32
  }
  func.func @transform_2(%arg0: i32) -> (i32, i32) {
    %c0_i32 = arith.constant 0 : i32
    %c0_i32_0 = arith.constant 0 : i32
    %c0_i32_1 = arith.constant 0 : i32
    return %c0_i32, %c0_i32_0 : i32, i32
  }
  func.func @transform_3(%arg0: i32) -> (i32, i32) {
    %c0_i32 = arith.constant 0 : i32
    %c0_i32_0 = arith.constant 0 : i32
    %c0_i32_1 = arith.constant 0 : i32
    return %c0_i32, %c0_i32_0 : i32, i32
  }
  func.func @transform_4(%arg0: i32) -> (i32, i32) {
    %c0_i32 = arith.constant 0 : i32
    %c0_i32_0 = arith.constant 0 : i32
    %c0_i32_1 = arith.constant 0 : i32
    return %c0_i32, %c0_i32_0 : i32, i32
  }
  func.func @transform_5(%arg0: i32) -> (i32, i32) {
    %c0_i32 = arith.constant 0 : i32
    %c0_i32_0 = arith.constant 0 : i32
    %c0_i32_1 = arith.constant 0 : i32
    return %c0_i32, %c0_i32_0 : i32, i32
  }
  func.func @transform_6(%arg0: i32) -> (i32, i32) {
    %c0_i32 = arith.constant 0 : i32
    %c0_i32_0 = arith.constant 0 : i32
    %c0_i32_1 = arith.constant 0 : i32
    return %c0_i32, %c0_i32_0 : i32, i32
  }
}

</mosaic_0001>

<llo_original>
// kernel: enc_r_forward.3
$region0: #{enc_r_forward.3}
  #allocation0 [shape = 'u32[]', space=smem, size = 0x4, offset = 0x4, fixed_abs, tag = 'smem constant byte address 0x4 - core index']
  #allocation1 [shape = 'u32[144,128]{1,0:T(1,128)}', space=vmem, size = 0x12000, scoped, tag = 'internal scratch']
  %s0 = inlined_call_operand.vmem [shape: f32[128,2048], index: 0, kind: input, shape index: {}]
  %s1 = inlined_call_operand.vmem [shape: f32[32,128], index: 1, kind: input, shape index: {}]
  %s2 = inlined_call_operand.vmem [shape: f32[32,1], index: 2, kind: input, shape index: {}]
  %s3 = inlined_call_operand.vmem [shape: f32[32,2048], index: 3, kind: output, shape index: {}]
  %s4 = sld [smem:[#allocation0]]
  $region87: #{enc_r_forward.3} parent=0
    _
  %s6 = ssub.s32 1, %s4
  %s7 = scalar_select 0, %s6, %s4
  $region1: #{enc_r_forward.3} parent=0
    #allocation2 [shape = 'u8[524288]{0}', space=vmem, size = 0x80000, scoped, tag = 'input window, operand 0']
    #allocation3 [shape = 'u8[131072]{0}', space=vmem, size = 0x20000, scoped, tag = 'output window, operand 0']
    loop: start=0, step=1, limit=6
    $region2: #{enc_r_forward.3} parent=1 // loop_pre_header
      _
    $region3: #{enc_r_forward.3} parent=1 // loop_header
      %s9 = sphi 0, %s13
      %p10 = scmp.ge.s32.totalorder %s9, 6
      %s19 = sphi 0, %s21
      %s22 = sphi 0, %s19
      %s23 = sphi 0, %s22
      %s39 = sphi 0, %s23
      %s43 = sphi 0, %s43
      %s45 = sphi 0, %s43
      %s46 = sphi 0, %s45
      %s60 = sphi 0, %s46
      %s64 = sphi 0, %s64
      %s66 = sphi 0, %s64
      %s67 = sphi 0, %s66
      %s81 = sphi 0, %s67
      %s87 = sphi 0, %s89
      %s90 = sphi 0, %s87
      %s91 = sphi 0, %s90
      %s107 = sphi 0, %s91
    $region4: #{enc_r_forward.3} parent=1 // loop_header_branch
      %12 = sbr.rel (%p10) target = $region8
    $region5: #{enc_r_forward.3} parent=1 // loop_body
      %s14 = ssub.s32 %s9, 1
      %s15 = ssub.s32 %s9, 2
      %s16 = sadd.s32 %s9, 1
      %s17 = ssub.s32 %s9, %s16
      %p18 = scmp.eq.s32.totalorder %s17, 0
      %s20 = sadd.s32 %s19, 1
      %s21 = scalar_select %p18, %s19, %s20
      %p24 = pneg %p18
      %p25 = scmp.eq.s32.totalorder %s9, 3
      %p26 = por %p24, %p25
      %p27 = scmp.ne.s32.totalorder %s19, %s22
      %p28 = scmp.eq.s32.totalorder %s9, 0
      %p29 = por %p27, %p28
      %p30 = scmp.ne.s32.totalorder %s19, %s22
      %p31 = scmp.eq.s32.totalorder %s14, 3
      %p32 = por %p30, %p31
      %p33 = scmp.ne.s32.totalorder %s22, %s23
      %p34 = scmp.eq.s32.totalorder %s14, 0
      %p35 = por %p33, %p34
      %p36 = scmp.ne.s32.totalorder %s22, %s23
      %p37 = scmp.eq.s32.totalorder %s15, 3
      %p38 = por %p36, %p37
      %p40 = scmp.ne.s32.totalorder %s23, %s39
      %p41 = scmp.eq.s32.totalorder %s15, 0
      %p42 = por %p40, %p41
      %s44 = sadd.s32 %s43, 1
      %p47 = scmp.eq.s32.totalorder %s9, 3
      %p48 = scmp.ne.s32.totalorder %s43, %s45
      %p49 = scmp.eq.s32.totalorder %s9, 0
      %p50 = por %p48, %p49
      %p51 = scmp.ne.s32.totalorder %s43, %s45
      %p52 = scmp.eq.s32.totalorder %s14, 3
      %p53 = por %p51, %p52
      %p54 = scmp.ne.s32.totalorder %s45, %s46
      %p55 = scmp.eq.s32.totalorder %s14, 0
      %p56 = por %p54, %p55
      %p57 = scmp.ne.s32.totalorder %s45, %s46
      %p58 = scmp.eq.s32.totalorder %s15, 3
      %p59 = por %p57, %p58
      %p61 = scmp.ne.s32.totalorder %s46, %s60
      %p62 = scmp.eq.s32.totalorder %s15, 0
      %p63 = por %p61, %p62
      %s65 = sadd.s32 %s64, 1
      %p68 = scmp.eq.s32.totalorder %s9, 3
      %p69 = scmp.ne.s32.totalorder %s64, %s66
      %p70 = scmp.eq.s32.totalorder %s9, 0
      %p71 = por %p69, %p70
      %p72 = scmp.ne.s32.totalorder %s64, %s66
      %p73 = scmp.eq.s32.totalorder %s14, 3
      %p74 = por %p72, %p73
      %p75 = scmp.ne.s32.totalorder %s66, %s67
      %p76 = scmp.eq.s32.totalorder %s14, 0
      %p77 = por %p75, %p76
      %p78 = scmp.ne.s32.totalorder %s66, %s67
      %p79 = scmp.eq.s32.totalorder %s15, 3
      %p80 = por %p78, %p79
      %p82 = scmp.ne.s32.totalorder %s67, %s81
      %p83 = scmp.eq.s32.totalorder %s15, 0
      %p84 = por %p82, %p83
      %s85 = ssub.s32 %s9, %s16
      %p86 = scmp.eq.s32.totalorder %s85, 0
      %s88 = sadd.s32 %s87, 1
      %s89 = scalar_select %p86, %s87, %s88
      %p92 = pneg %p86
      %p93 = scmp.eq.s32.totalorder %s9, 3
      %p94 = por %p92, %p93
      %p95 = scmp.ne.s32.totalorder %s87, %s90
      %p96 = scmp.eq.s32.totalorder %s9, 0
      %p97 = por %p95, %p96
      %p98 = scmp.ne.s32.totalorder %s87, %s90
      %p99 = scmp.eq.s32.totalorder %s14, 3
      %p100 = por %p98, %p99
      %p101 = scmp.ne.s32.totalorder %s90, %s91
      %p102 = scmp.eq.s32.totalorder %s14, 0
      %p103 = por %p101, %p102
      %p104 = scmp.ne.s32.totalorder %s90, %s91
      %p105 = scmp.eq.s32.totalorder %s15, 3
      %p106 = por %p104, %p105
      %p108 = scmp.ne.s32.totalorder %s91, %s107
      %p109 = scmp.eq.s32.totalorder %s15, 0
      %p110 = por %p108, %p109
      %p111 = scmp.le.s32.totalorder 1, %s9
      %p112 = scmp.lt.s32.totalorder %s9, 5
      %p113 = pnand %p111, %p112
      %p114 = pneg %p113
      // Predicated region
      $region9: #{enc_r_forward.3} parent=5 // pred_check
        _
      $region10: #{enc_r_forward.3} parent=5 // pred_check_branch
        %116 = sbr.rel (%p113) target = $region12
      $region11: #{enc_r_forward.3} parent=5 // pred_region
        %s117 = ssub.s32 %s9, 1
        // Predicated region
        $region13: #{enc_r_forward.3} parent=11 // pred_check
          %p118 = pneg %p56
        $region14: #{enc_r_forward.3} parent=11 // pred_check_branch
          %120 = sbr.rel (%p118) target = $region16
        $region15: #{enc_r_forward.3} parent=11 // pred_region
          _
        $region16: #{enc_r_forward.3} parent=11 // pred_fallthru
          _
        // Predicated region
        $region17: #{enc_r_forward.3} parent=11 // pred_check
          %p121 = pneg %p77
        $region18: #{enc_r_forward.3} parent=11 // pred_check_branch
          %123 = sbr.rel (%p121) target = $region20
        $region19: #{enc_r_forward.3} parent=11 // pred_region
          _
        $region20: #{enc_r_forward.3} parent=11 // pred_fallthru
          _
      $region12: #{enc_r_forward.3} parent=5 // pred_fallthru
        _
      %p124 = scmp.lt.s32.totalorder %s9, 4
      // Predicated region
      $region21: #{enc_r_forward.3} parent=5 // pred_check
        %p125 = pneg %p124
      $region22: #{enc_r_forward.3} parent=5 // pred_check_branch
        %127 = sbr.rel (%p125) target = $region24
      $region23: #{enc_r_forward.3} parent=5 // pred_region
        // Predicated region
        $region25: #{enc_r_forward.3} parent=23 // pred_check
          %p128 = pneg %p29
        $region26: #{enc_r_forward.3} parent=23 // pred_check_branch
          %130 = sbr.rel (%p128) target = $region28
        $region27: #{enc_r_forward.3} parent=23 // pred_region
          %s131 = sand.u32 %s19, 1
          %s132 = sand.u32 %s19, 1
          %s133 = smul.addr %s132, 512
          %s134 = scalar_lea.vmem [#allocation2], %s133
          %s135 = smul.u32 4, %s9
          %s136 = smul.addr %s135, 8
          %s137 = scalar_lea.vmem %s0, %s136
          // Predicated region
          $region29: #{enc_r_forward.3} parent=27 // pred_check
            _
          $region30: #{enc_r_forward.3} parent=27 // pred_check_branch
            %139 = sbr.rel (0) target = $region32
          $region31: #{enc_r_forward.3} parent=27 // pred_region
            // Predicated region
            $region33: #{enc_r_forward.3} parent=31 // pred_check
              _
            $region34: #{enc_r_forward.3} parent=31 // pred_check_branch
              %141 = sbr.rel (0) target = $region36
            $region35: #{enc_r_forward.3} parent=31 // pred_region
              loop: start=0, step=1, limit=1
              $region37: #{enc_r_forward.3} parent=35 // loop_pre_header
                _
              $region38: #{enc_r_forward.3} parent=35 // loop_header
                %s143 = sphi 0, %s147
                %p144 = scmp.ge.s32.totalorder %s143, 1
                %s148 = sphi %s137, %s137
                %s149 = sphi %s134, %s134
              $region39: #{enc_r_forward.3} parent=35 // loop_header_branch
                %146 = sbr.rel (%p144) target = $region43
              $region40: #{enc_r_forward.3} parent=35 // loop_body
                %v150 = vld [vmem:[%s148] sm:$0xff]
                %151 = vst [vmem:[%s149] sm:$0xff] %v150
                %v152 = vld [vmem:[%s148 + $0x8] sm:$0xff]
                %153 = vst [vmem:[%s149 + $0x8] sm:$0xff] %v152
                %v154 = vld [vmem:[%s148 + $0x10] sm:$0xff]
                %155 = vst [vmem:[%s149 + $0x10] sm:$0xff] %v154
                %v156 = vld [vmem:[%s148 + $0x18] sm:$0xff]
                %157 = vst [vmem:[%s149 + $0x18] sm:$0xff] %v156
                %v158 = vld [vmem:[%s148 + $0x80] sm:$0xff]
                %159 = vst [vmem:[%s149 + $0x20] sm:$0xff] %v158
                %v160 = vld [vmem:[%s148 + $0x88] sm:$0xff]
                %161 = vst [vmem:[%s149 + $0x28] sm:$0xff] %v160
                %v162 = vld [vmem:[%s148 + $0x90] sm:$0xff]
                %163 = vst [vmem:[%s149 + $0x30] sm:$0xff] %v162
                %v164 = vld [vmem:[%s148 + $0x98] sm:$0xff]
                %165 = vst [vmem:[%s149 + $0x38] sm:$0xff] %v164
                %v166 = vld [vmem:[%s148 + $0x100] sm:$0xff]
                %167 = vst [vmem:[%s149 + $0x40] sm:$0xff] %v166
                %v168 = vld [vmem:[%s148 + $0x108] sm:$0xff]
                %169 = vst [vmem:[%s149 + $0x48] sm:$0xff] %v168
                %v170 = vld [vmem:[%s148 + $0x110] sm:$0xff]
                %171 = vst [vmem:[%s149 + $0x50] sm:$0xff] %v170
                %v172 = vld [vmem:[%s148 + $0x118] sm:$0xff]
                %173 = vst [vmem:[%s149 + $0x58] sm:$0xff] %v172
                %v174 = vld [vmem:[%s148 + $0x180] sm:$0xff]
                %175 = vst [vmem:[%s149 + $0x60] sm:$0xff] %v174
                %v176 = vld [vmem:[%s148 + $0x188] sm:$0xff]
                %177 = vst [vmem:[%s149 + $0x68] sm:$0xff] %v176
                %v178 = vld [vmem:[%s148 + $0x190] sm:$0xff]
                %179 = vst [vmem:[%s149 + $0x70] sm:$0xff] %v178
                %v180 = vld [vmem:[%s148 + $0x198] sm:$0xff]
                %181 = vst [vmem:[%s149 + $0x78] sm:$0xff] %v180
                %v182 = vld [vmem:[%s148 + $0x200] sm:$0xff]
                %183 = vst [vmem:[%s149 + $0x80] sm:$0xff] %v182
                %v184 = vld [vmem:[%s148 + $0x208] sm:$0xff]
                %185 = vst [vmem:[%s149 + $0x88] sm:$0xff] %v184
                %v186 = vld [vmem:[%s148 + $0x210] sm:$0xff]
                %187 = vst [vmem:[%s149 + $0x90] sm:$0xff] %v186
                %v188 = vld [vmem:[%s148 + $0x218] sm:$0xff]
                %189 = vst [vmem:[%s149 + $0x98] sm:$0xff] %v188
                %v190 = vld [vmem:[%s148 + $0x280] sm:$0xff]
                %191 = vst [vmem:[%s149 + $0xa0] sm:$0xff] %v190
                %v192 = vld [vmem:[%s148 + $0x288] sm:$0xff]
                %193 = vst [vmem:[%s149 + $0xa8] sm:$0xff] %v192
                %v194 = vld [vmem:[%s148 + $0x290] sm:$0xff]
                %195 = vst [vmem:[%s149 + $0xb0] sm:$0xff] %v194
                %v196 = vld [vmem:[%s148 + $0x298] sm:$0xff]
                %197 = vst [vmem:[%s149 + $0xb8] sm:$0xff] %v196
                %v198 = vld [vmem:[%s148 + $0x300] sm:$0xff]
                %199 = vst [vmem:[%s149 + $0xc0] sm:$0xff] %v198
                %v200 = vld [vmem:[%s148 + $0x308] sm:$0xff]
                %201 = vst [vmem:[%s149 + $0xc8] sm:$0xff] %v200
                %v202 = vld [vmem:[%s148 + $0x310] sm:$0xff]
                %203 = vst [vmem:[%s149 + $0xd0] sm:$0xff] %v202
                %v204 = vld [vmem:[%s148 + $0x318] sm:$0xff]
                %205 = vst [vmem:[%s149 + $0xd8] sm:$0xff] %v204
                %v206 = vld [vmem:[%s148 + $0x380] sm:$0xff]
                %207 = vst [vmem:[%s149 + $0xe0] sm:$0xff] %v206
                %v208 = vld [vmem:[%s148 + $0x388] sm:$0xff]
                %209 = vst [vmem:[%s149 + $0xe8] sm:$0xff] %v208
                %v210 = vld [vmem:[%s148 + $0x390] sm:$0xff]
                %211 = vst [vmem:[%s149 + $0xf0] sm:$0xff] %v210
                %v212 = vld [vmem:[%s148 + $0x398] sm:$0xff]
                %213 = vst [vmem:[%s149 + $0xf8] sm:$0xff] %v212
                %v214 = vld [vmem:[%s148 + $0x400] sm:$0xff]
                %215 = vst [vmem:[%s149 + $0x100] sm:$0xff] %v214
                %v216 = vld [vmem:[%s148 + $0x408] sm:$0xff]
                %217 = vst [vmem:[%s149 + $0x108] sm:$0xff] %v216
                %v218 = vld [vmem:[%s148 + $0x410] sm:$0xff]
                %219 = vst [vmem:[%s149 + $0x110] sm:$0xff] %v218
                %v220 = vld [vmem:[%s148 + $0x418] sm:$0xff]
                %221 = vst [vmem:[%s149 + $0x118] sm:$0xff] %v220
                %v222 = vld [vmem:[%s148 + $0x480] sm:$0xff]
                %223 = vst [vmem:[%s149 + $0x120] sm:$0xff] %v222
                %v224 = vld [vmem:[%s148 + $0x488] sm:$0xff]
                %225 = vst [vmem:[%s149 + $0x128] sm:$0xff] %v224
                %v226 = vld [vmem:[%s148 + $0x490] sm:$0xff]
                %227 = vst [vmem:[%s149 + $0x130] sm:$0xff] %v226
                %v228 = vld [vmem:[%s148 + $0x498] sm:$0xff]
                %229 = vst [vmem:[%s149 + $0x138] sm:$0xff] %v228
                %v230 = vld [vmem:[%s148 + $0x500] sm:$0xff]
                %231 = vst [vmem:[%s149 + $0x140] sm:$0xff] %v230
                %v232 = vld [vmem:[%s148 + $0x508] sm:$0xff]
                %233 = vst [vmem:[%s149 + $0x148] sm:$0xff] %v232
                %v234 = vld [vmem:[%s148 + $0x510] sm:$0xff]
                %235 = vst [vmem:[%s149 + $0x150] sm:$0xff] %v234
                %v236 = vld [vmem:[%s148 + $0x518] sm:$0xff]
                %237 = vst [vmem:[%s149 + $0x158] sm:$0xff] %v236
                %v238 = vld [vmem:[%s148 + $0x580] sm:$0xff]
                %239 = vst [vmem:[%s149 + $0x160] sm:$0xff] %v238
                %v240 = vld [vmem:[%s148 + $0x588] sm:$0xff]
                %241 = vst [vmem:[%s149 + $0x168] sm:$0xff] %v240
                %v242 = vld [vmem:[%s148 + $0x590] sm:$0xff]
                %243 = vst [vmem:[%s149 + $0x170] sm:$0xff] %v242
                %v244 = vld [vmem:[%s148 + $0x598] sm:$0xff]
                %245 = vst [vmem:[%s149 + $0x178] sm:$0xff] %v244
                %v246 = vld [vmem:[%s148 + $0x600] sm:$0xff]
                %247 = vst [vmem:[%s149 + $0x180] sm:$0xff] %v246
                %v248 = vld [vmem:[%s148 + $0x608] sm:$0xff]
                %249 = vst [vmem:[%s149 + $0x188] sm:$0xff] %v248
                %v250 = vld [vmem:[%s148 + $0x610] sm:$0xff]
                %251 = vst [vmem:[%s149 + $0x190] sm:$0xff] %v250
                %v252 = vld [vmem:[%s148 + $0x618] sm:$0xff]
                %253 = vst [vmem:[%s149 + $0x198] sm:$0xff] %v252
                %v254 = vld [vmem:[%s148 + $0x680] sm:$0xff]
                %255 = vst [vmem:[%s149 + $0x1a0] sm:$0xff] %v254
                %v256 = vld [vmem:[%s148 + $0x688] sm:$0xff]
                %257 = vst [vmem:[%s149 + $0x1a8] sm:$0xff] %v256
                %v258 = vld [vmem:[%s148 + $0x690] sm:$0xff]
                %259 = vst [vmem:[%s149 + $0x1b0] sm:$0xff] %v258
                %v260 = vld [vmem:[%s148 + $0x698] sm:$0xff]
                %261 = vst [vmem:[%s149 + $0x1b8] sm:$0xff] %v260
                %v262 = vld [vmem:[%s148 + $0x700] sm:$0xff]
                %263 = vst [vmem:[%s149 + $0x1c0] sm:$0xff] %v262
                %v264 = vld [vmem:[%s148 + $0x708] sm:$0xff]
                %265 = vst [vmem:[%s149 + $0x1c8] sm:$0xff] %v264
                %v266 = vld [vmem:[%s148 + $0x710] sm:$0xff]
                %267 = vst [vmem:[%s149 + $0x1d0] sm:$0xff] %v266
                %v268 = vld [vmem:[%s148 + $0x718] sm:$0xff]
                %269 = vst [vmem:[%s149 + $0x1d8] sm:$0xff] %v268
                %v270 = vld [vmem:[%s148 + $0x780] sm:$0xff]
                %271 = vst [vmem:[%s149 + $0x1e0] sm:$0xff] %v270
                %v272 = vld [vmem:[%s148 + $0x788] sm:$0xff]
                %273 = vst [vmem:[%s149 + $0x1e8] sm:$0xff] %v272
                %v274 = vld [vmem:[%s148 + $0x790] sm:$0xff]
                %275 = vst [vmem:[%s149 + $0x1f0] sm:$0xff] %v274
                %v276 = vld [vmem:[%s148 + $0x798] sm:$0xff]
                %277 = vst [vmem:[%s149 + $0x1f8] sm:$0xff] %v276
              $region41: #{enc_r_forward.3} parent=35 // loop_footer
                %s147 = sadd.s32 1, %s143
              $region42: #{enc_r_forward.3} parent=35 // loop_footer_branch
                %142 = sbr.rel target = $region38
              $region43: #{enc_r_forward.3} parent=35 // loop_exit
                _
            $region36: #{enc_r_forward.3} parent=31 // pred_fallthru
              _
            // Predicated region
            $region44: #{enc_r_forward.3} parent=31 // pred_check
              _
            $region45: #{enc_r_forward.3} parent=31 // pred_check_branch
              %279 = sbr.rel target = $region47
            $region46: #{enc_r_forward.3} parent=31 // pred_region
              _
            $region47: #{enc_r_forward.3} parent=31 // pred_fallthru
              _
          $region32: #{enc_r_forward.3} parent=27 // pred_fallthru
            _
          %280 = vnop
        $region28: #{enc_r_forward.3} parent=23 // pred_fallthru
          _
      $region24: #{enc_r_forward.3} parent=5 // pred_fallthru
        _
      %p281 = scmp.le.s32.totalorder 1, %s9
      %p282 = scmp.lt.s32.totalorder %s9, 5
      %p283 = pnand %p281, %p282
      %p284 = pneg %p283
      // Predicated region
      $region48: #{enc_r_forward.3} parent=5 // pred_check
        _
      $region49: #{enc_r_forward.3} parent=5 // pred_check_branch
        %286 = sbr.rel (%p283) target = $region51
      $region50: #{enc_r_forward.3} parent=5 // pred_region
        %s287 = ssub.s32 %s9, 1
        %s288 = sand.u32 %s22, 1
        %s289 = sand.u32 %s22, 1
        %s290 = smul.addr %s289, 512
        %s291 = scalar_lea.vmem [#allocation2], %s290
        // Predicated region
        $region52: #{enc_r_forward.3} parent=50 // pred_check
          %p292 = pneg %p35
        $region53: #{enc_r_forward.3} parent=50 // pred_check_branch
          %294 = sbr.rel (%p292) target = $region55
        $region54: #{enc_r_forward.3} parent=50 // pred_region
          _
        $region55: #{enc_r_forward.3} parent=50 // pred_fallthru
          _
        %s295 = sand.u32 %s22, 1
        %s296 = sand.u32 %s22, 1
        %s297 = smul.addr %s296, 512
        %s298 = scalar_lea.vmem [#allocation2], %s297
        %p299 = pneg %p35
        %p300 = pneg %p32
        %p301 = pneg %p56
        %p302 = pneg %p53
        %p303 = pneg %p77
        %p304 = pneg %p74
        %p305 = pneg %p103
        %p306 = pneg %p100
        %s307 = sand.u32 %s90, 1
        %s308 = sand.u32 %s90, 1
        %s309 = smul.addr %s308, 128
        %s310 = scalar_lea.vmem [#allocation3], %s309
        %s311 = smul.u32 4, %s14
        %s312 = smul.u32 4, %s14
        %v313 = vld [vmem:[%s1] sm:$0xff]
        %v314 = vld [vmem:[%s1 + $0x8] sm:$0xff]
        %v315 = vld [vmem:[%s1 + $0x10] sm:$0xff]
        %v316 = vld [vmem:[%s1 + $0x18] sm:$0xff]
        %v317 = vld [vmem:[%s291] sm:$0xff]
        %v318 = vld [vmem:[%s291 + $0x8] sm:$0xff]
        %v319 = vld [vmem:[%s291 + $0x10] sm:$0xff]
        %v320 = vld [vmem:[%s291 + $0x18] sm:$0xff]
        %v321 = vld [vmem:[%s291 + $0x20] sm:$0xff]
        %v322 = vld [vmem:[%s291 + $0x28] sm:$0xff]
        %v323 = vld [vmem:[%s291 + $0x30] sm:$0xff]
        %v324 = vld [vmem:[%s291 + $0x38] sm:$0xff]
        %v325 = vld [vmem:[%s291 + $0x40] sm:$0xff]
        %v326 = vld [vmem:[%s291 + $0x48] sm:$0xff]
        %v327 = vld [vmem:[%s291 + $0x50] sm:$0xff]
        %v328 = vld [vmem:[%s291 + $0x58] sm:$0xff]
        %v329 = vld [vmem:[%s291 + $0x60] sm:$0xff]
        %v330 = vld [vmem:[%s291 + $0x68] sm:$0xff]
        %v331 = vld [vmem:[%s291 + $0x70] sm:$0xff]
        %v332 = vld [vmem:[%s291 + $0x78] sm:$0xff]
        %v333 = vld [vmem:[%s291 + $0x80] sm:$0xff]
        %v334 = vld [vmem:[%s291 + $0x88] sm:$0xff]
        %v335 = vld [vmem:[%s291 + $0x90] sm:$0xff]
        %v336 = vld [vmem:[%s291 + $0x98] sm:$0xff]
        %v337 = vld [vmem:[%s291 + $0xa0] sm:$0xff]
        %v338 = vld [vmem:[%s291 + $0xa8] sm:$0xff]
        %v339 = vld [vmem:[%s291 + $0xb0] sm:$0xff]
        %v340 = vld [vmem:[%s291 + $0xb8] sm:$0xff]
        %v341 = vld [vmem:[%s291 + $0xc0] sm:$0xff]
        %v342 = vld [vmem:[%s291 + $0xc8] sm:$0xff]
        %v343 = vld [vmem:[%s291 + $0xd0] sm:$0xff]
        %v344 = vld [vmem:[%s291 + $0xd8] sm:$0xff]
        %v345 = vld [vmem:[%s291 + $0xe0] sm:$0xff]
        %v346 = vld [vmem:[%s291 + $0xe8] sm:$0xff]
        %v347 = vld [vmem:[%s291 + $0xf0] sm:$0xff]
        %v348 = vld [vmem:[%s291 + $0xf8] sm:$0xff]
        %v349 = vld [vmem:[%s291 + $0x100] sm:$0xff]
        %v350 = vld [vmem:[%s291 + $0x108] sm:$0xff]
        %v351 = vld [vmem:[%s291 + $0x110] sm:$0xff]
        %v352 = vld [vmem:[%s291 + $0x118] sm:$0xff]
        %v353 = vld [vmem:[%s291 + $0x120] sm:$0xff]
        %v354 = vld [vmem:[%s291 + $0x128] sm:$0xff]
        %v355 = vld [vmem:[%s291 + $0x130] sm:$0xff]
        %v356 = vld [vmem:[%s291 + $0x138] sm:$0xff]
        %v357 = vld [vmem:[%s291 + $0x140] sm:$0xff]
        %v358 = vld [vmem:[%s291 + $0x148] sm:$0xff]
        %v359 = vld [vmem:[%s291 + $0x150] sm:$0xff]
        %v360 = vld [vmem:[%s291 + $0x158] sm:$0xff]
        %v361 = vld [vmem:[%s291 + $0x160] sm:$0xff]
        %v362 = vld [vmem:[%s291 + $0x168] sm:$0xff]
        %v363 = vld [vmem:[%s291 + $0x170] sm:$0xff]
        %v364 = vld [vmem:[%s291 + $0x178] sm:$0xff]
        %v365 = vld [vmem:[%s291 + $0x180] sm:$0xff]
        %v366 = vld [vmem:[%s291 + $0x188] sm:$0xff]
        %v367 = vld [vmem:[%s291 + $0x190] sm:$0xff]
        %v368 = vld [vmem:[%s291 + $0x198] sm:$0xff]
        %v369 = vld [vmem:[%s291 + $0x1a0] sm:$0xff]
        %v370 = vld [vmem:[%s291 + $0x1a8] sm:$0xff]
        %v371 = vld [vmem:[%s291 + $0x1b0] sm:$0xff]
        %v372 = vld [vmem:[%s291 + $0x1b8] sm:$0xff]
        %v373 = vld [vmem:[%s291 + $0x1c0] sm:$0xff]
        %v374 = vld [vmem:[%s291 + $0x1c8] sm:$0xff]
        %v375 = vld [vmem:[%s291 + $0x1d0] sm:$0xff]
        %v376 = vld [vmem:[%s291 + $0x1d8] sm:$0xff]
        %v377 = vld [vmem:[%s291 + $0x1e0] sm:$0xff]
        %v378 = vld [vmem:[%s291 + $0x1e8] sm:$0xff]
        %v379 = vld [vmem:[%s291 + $0x1f0] sm:$0xff]
        %v380 = vld [vmem:[%s291 + $0x1f8] sm:$0xff]
        %v381 = vld [vmem:[%s2] sm:$0xff]
        %v382 = vld [vmem:[%s2 + $0x8] sm:$0xff]
        %v383 = vld [vmem:[%s2 + $0x10] sm:$0xff]
        %v384 = vld [vmem:[%s2 + $0x18] sm:$0xff]
        %386 = vset.pattern.permute.xlu0 0
        %387 = vperm.xlu0 %386, %v381
        %v388 = vpop.permute.xlu0 %387
        %391 = vset.pattern.permute.xlu0 0
        %392 = vperm.xlu0 %391, %v382
        %v393 = vpop.permute.xlu0 %392
        %396 = vset.pattern.permute.xlu0 0
        %397 = vperm.xlu0 %396, %v383
        %v398 = vpop.permute.xlu0 %397
        %401 = vset.pattern.permute.xlu0 0
        %402 = vperm.xlu0 %401, %v384
        %v403 = vpop.permute.xlu0 %402
        %405 = vmatprep.subr.mxu0 %v318
        %406 = vmatpush1.msra.mxu0 %v317
        %407 = vmatprep.subr.mxu0 %v322
        %408 = vmatpush1.msra.mxu0 %v321
        %409 = vmatprep.subr.mxu0 %v326
        %410 = vmatpush1.msra.mxu0 %v325
        %411 = vmatprep.subr.mxu0 %v330
        %412 = vmatpush1.msra.mxu0 %v329
        %413 = vmatprep.subr.mxu0 %v334
        %414 = vmatpush1.msra.mxu0 %v333
        %415 = vmatprep.subr.mxu0 %v338
        %416 = vmatpush1.msra.mxu0 %v337
        %417 = vmatprep.subr.mxu0 %v342
        %418 = vmatpush1.msra.mxu0 %v341
        %419 = vmatprep.subr.mxu0 %v346
        %420 = vmatpush1.msra.mxu0 %v345
        %421 = vmatprep.subr.mxu0 %v350
        %422 = vmatpush1.msra.mxu0 %v349
        %423 = vmatprep.subr.mxu0 %v354
        %424 = vmatpush1.msra.mxu0 %v353
        %425 = vmatprep.subr.mxu0 %v358
        %426 = vmatpush1.msra.mxu0 %v357
        %427 = vmatprep.subr.mxu0 %v362
        %428 = vmatpush1.msra.mxu0 %v361
        %429 = vmatprep.subr.mxu0 %v366
        %430 = vmatpush1.msra.mxu0 %v365
        %431 = vmatprep.subr.mxu0 %v370
        %432 = vmatpush1.msra.mxu0 %v369
        %433 = vmatprep.subr.mxu0 %v374
        %434 = vmatpush1.msra.mxu0 %v373
        %435 = vmatprep.subr.mxu0 %v378
        %436 = vmatpush1.msra.mxu0 %v377
        %437 = vmatprep.subr.mxu0 0.0
        %438 = vmatpush1.msra.mxu0 0.0
        %439 = vmatprep.subr.mxu0 0.0
        %440 = vmatpush1.msra.mxu0 0.0
        %441 = vmatprep.subr.mxu0 0.0
        %442 = vmatpush1.msra.mxu0 0.0
        %443 = vmatprep.subr.mxu0 0.0
        %444 = vmatpush1.msra.mxu0 0.0
        %445 = vmatprep.subr.mxu0 0.0
        %446 = vmatpush1.msra.mxu0 0.0
        %447 = vmatprep.subr.mxu0 0.0
        %448 = vmatpush1.msra.mxu0 0.0
        %449 = vmatprep.subr.mxu0 0.0
        %450 = vmatpush1.msra.mxu0 0.0
        %451 = vmatprep.subr.mxu0 0.0
        %452 = vmatpush1.msra.mxu0 0.0
        %453 = vmatprep.subr.mxu0 0.0
        %454 = vmatpush1.msra.mxu0 0.0
        %455 = vmatprep.subr.mxu0 0.0
        %456 = vmatpush1.msra.mxu0 0.0
        %457 = vmatprep.subr.mxu0 0.0
        %458 = vmatpush1.msra.mxu0 0.0
        %459 = vmatprep.subr.mxu0 0.0
        %460 = vmatpush1.msra.mxu0 0.0
        %461 = vmatprep.subr.mxu0 0.0
        %462 = vmatpush1.msra.mxu0 0.0
        %463 = vmatprep.subr.mxu0 0.0
        %464 = vmatpush1.msra.mxu0 0.0
        %465 = vmatprep.subr.mxu0 0.0
        %466 = vmatpush1.msra.mxu0 0.0
        %467 = vmatprep.subr.mxu0 0.0
        %468 = vmatpush1.msra.mxu0 0.0
        %469 = vmatprep.mubr.f32.mxu0 0.0
        %470 = vmatmul.mubr.f32.gmra.mrb[0].mxu0 %v313
        %v471 = vpop.f32.mrb[0].mxu0
        %v472 = vadd.f32 %v388, %v471
        %v473 = vpop.f32.mrb[0].mxu0
        %v474 = vadd.f32 %v388, %v473
        %475 = vmatprep.mubr.f32.mxu0 0.0
        %476 = vmatmul.mubr.f32.gmra.mrb[0].mxu0 %v314
        %v477 = vpop.f32.mrb[0].mxu0
        %v478 = vadd.f32 %v393, %v477
        %v479 = vpop.f32.mrb[0].mxu0
        %v480 = vadd.f32 %v393, %v479
        %481 = vmatprep.mubr.f32.mxu0 0.0
        %482 = vmatmul.mubr.f32.gmra.mrb[0].mxu0 %v315
        %v483 = vpop.f32.mrb[0].mxu0
        %v484 = vadd.f32 %v398, %v483
        %v485 = vpop.f32.mrb[0].mxu0
        %v486 = vadd.f32 %v398, %v485
        %487 = vmatprep.mubr.f32.mxu0 0.0
        %488 = vmatmul.mubr.f32.gmra.mrb[0].mxu0 %v316
        %v489 = vpop.f32.mrb[0].mxu0
        %v490 = vadd.f32 %v403, %v489
        %v491 = vpop.f32.mrb[0].mxu0
        %v492 = vadd.f32 %v403, %v491
        %493 = vdwg.mxu0
        %494 = vmatprep.subr.mxu0 %v320
        %495 = vmatpush1.msra.mxu0 %v319
        %496 = vmatprep.subr.mxu0 %v324
        %497 = vmatpush1.msra.mxu0 %v323
        %498 = vmatprep.subr.mxu0 %v328
        %499 = vmatpush1.msra.mxu0 %v327
        %500 = vmatprep.subr.mxu0 %v332
        %501 = vmatpush1.msra.mxu0 %v331
        %502 = vmatprep.subr.mxu0 %v336
        %503 = vmatpush1.msra.mxu0 %v335
        %504 = vmatprep.subr.mxu0 %v340
        %505 = vmatpush1.msra.mxu0 %v339
        %506 = vmatprep.subr.mxu0 %v344
        %507 = vmatpush1.msra.mxu0 %v343
        %508 = vmatprep.subr.mxu0 %v348
        %509 = vmatpush1.msra.mxu0 %v347
        %510 = vmatprep.subr.mxu0 %v352
        %511 = vmatpush1.msra.mxu0 %v351
        %512 = vmatprep.subr.mxu0 %v356
        %513 = vmatpush1.msra.mxu0 %v355
        %514 = vmatprep.subr.mxu0 %v360
        %515 = vmatpush1.msra.mxu0 %v359
        %516 = vmatprep.subr.mxu0 %v364
        %517 = vmatpush1.msra.mxu0 %v363
        %518 = vmatprep.subr.mxu0 %v368
        %519 = vmatpush1.msra.mxu0 %v367
        %520 = vmatprep.subr.mxu0 %v372
        %521 = vmatpush1.msra.mxu0 %v371
        %522 = vmatprep.subr.mxu0 %v376
        %523 = vmatpush1.msra.mxu0 %v375
        %524 = vmatprep.subr.mxu0 %v380
        %525 = vmatpush1.msra.mxu0 %v379
        %526 = vmatprep.subr.mxu0 0.0
        %527 = vmatpush1.msra.mxu0 0.0
        %528 = vmatprep.subr.mxu0 0.0
        %529 = vmatpush1.msra.mxu0 0.0
        %530 = vmatprep.subr.mxu0 0.0
        %531 = vmatpush1.msra.mxu0 0.0
        %532 = vmatprep.subr.mxu0 0.0
        %533 = vmatpush1.msra.mxu0 0.0
        %534 = vmatprep.subr.mxu0 0.0
        %535 = vmatpush1.msra.mxu0 0.0
        %536 = vmatprep.subr.mxu0 0.0
        %537 = vmatpush1.msra.mxu0 0.0
        %538 = vmatprep.subr.mxu0 0.0
        %539 = vmatpush1.msra.mxu0 0.0
        %540 = vmatprep.subr.mxu0 0.0
        %541 = vmatpush1.msra.mxu0 0.0
        %542 = vmatprep.subr.mxu0 0.0
        %543 = vmatpush1.msra.mxu0 0.0
        %544 = vmatprep.subr.mxu0 0.0
        %545 = vmatpush1.msra.mxu0 0.0
        %546 = vmatprep.subr.mxu0 0.0
        %547 = vmatpush1.msra.mxu0 0.0
        %548 = vmatprep.subr.mxu0 0.0
        %549 = vmatpush1.msra.mxu0 0.0
        %550 = vmatprep.subr.mxu0 0.0
        %551 = vmatpush1.msra.mxu0 0.0
        %552 = vmatprep.subr.mxu0 0.0
        %553 = vmatpush1.msra.mxu0 0.0
        %554 = vmatprep.subr.mxu0 0.0
        %555 = vmatpush1.msra.mxu0 0.0
        %556 = vmatprep.subr.mxu0 0.0
        %557 = vmatpush1.msra.mxu0 0.0
        %558 = vmatprep.mubr.f32.mxu0 0.0
        %559 = vmatmul.mubr.f32.gmra.mrb[0].mxu0 %v313
        %v560 = vpop.f32.mrb[0].mxu0
        %v561 = vadd.f32 %v388, %v560
        %v562 = vpop.f32.mrb[0].mxu0
        %v563 = vadd.f32 %v388, %v562
        %564 = vmatprep.mubr.f32.mxu0 0.0
        %565 = vmatmul.mubr.f32.gmra.mrb[0].mxu0 %v314
        %v566 = vpop.f32.mrb[0].mxu0
        %v567 = vadd.f32 %v393, %v566
        %v568 = vpop.f32.mrb[0].mxu0
        %v569 = vadd.f32 %v393, %v568
        %570 = vmatprep.mubr.f32.mxu0 0.0
        %571 = vmatmul.mubr.f32.gmra.mrb[0].mxu0 %v315
        %v572 = vpop.f32.mrb[0].mxu0
        %v573 = vadd.f32 %v398, %v572
        %v574 = vpop.f32.mrb[0].mxu0
        %v575 = vadd.f32 %v398, %v574
        %576 = vmatprep.mubr.f32.mxu0 0.0
        %577 = vmatmul.mubr.f32.gmra.mrb[0].mxu0 %v316
        %v578 = vpop.f32.mrb[0].mxu0
        %v579 = vadd.f32 %v403, %v578
        %v580 = vpop.f32.mrb[0].mxu0
        %v581 = vadd.f32 %v403, %v580
        %582 = vdwg.mxu0
        %v583 = vmax.f32 %v472, 0.0
        %v584 = vmax.f32 %v474, 0.0
        %v585 = vmax.f32 %v561, 0.0
        %v586 = vmax.f32 %v563, 0.0
        %v587 = vmax.f32 %v478, 0.0
        %v588 = vmax.f32 %v480, 0.0
        %v589 = vmax.f32 %v567, 0.0
        %v590 = vmax.f32 %v569, 0.0
        %v591 = vmax.f32 %v484, 0.0
        %v592 = vmax.f32 %v486, 0.0
        %v593 = vmax.f32 %v573, 0.0
        %v594 = vmax.f32 %v575, 0.0
        %v595 = vmax.f32 %v490, 0.0
        %v596 = vmax.f32 %v492, 0.0
        %v597 = vmax.f32 %v579, 0.0
        %v598 = vmax.f32 %v581, 0.0
        %599 = vst [vmem:[%s310] sm:$0xff] %v583
        %600 = vst [vmem:[%s310 + $0x8] sm:$0xff] %v584
        %601 = vst [vmem:[%s310 + $0x10] sm:$0xff] %v585
        %602 = vst [vmem:[%s310 + $0x18] sm:$0xff] %v586
        %603 = vst [vmem:[%s310 + $0x20] sm:$0xff] %v587
        %604 = vst [vmem:[%s310 + $0x28] sm:$0xff] %v588
        %605 = vst [vmem:[%s310 + $0x30] sm:$0xff] %v589
        %606 = vst [vmem:[%s310 + $0x38] sm:$0xff] %v590
        %607 = vst [vmem:[%s310 + $0x40] sm:$0xff] %v591
        %608 = vst [vmem:[%s310 + $0x48] sm:$0xff] %v592
        %609 = vst [vmem:[%s310 + $0x50] sm:$0xff] %v593
        %610 = vst [vmem:[%s310 + $0x58] sm:$0xff] %v594
        %611 = vst [vmem:[%s310 + $0x60] sm:$0xff] %v595
        %612 = vst [vmem:[%s310 + $0x68] sm:$0xff] %v596
        %613 = vst [vmem:[%s310 + $0x70] sm:$0xff] %v597
        %614 = vst [vmem:[%s310 + $0x78] sm:$0xff] %v598
        %s615 = sand.u32 %s90, 1
        %s616 = sand.u32 %s90, 1
        %s617 = smul.addr %s616, 128
        %s618 = scalar_lea.vmem [#allocation3], %s617
        // Predicated region
        $region56: #{enc_r_forward.3} parent=50 // pred_check
          %p619 = pneg %p100
        $region57: #{enc_r_forward.3} parent=50 // pred_check_branch
          %621 = sbr.rel (%p619) target = $region59
        $region58: #{enc_r_forward.3} parent=50 // pred_region
          %s622 = smul.u32 4, %s14
          %s623 = smul.addr %s622, 8
          %s624 = scalar_lea.vmem %s3, %s623
          // Predicated region
          $region60: #{enc_r_forward.3} parent=58 // pred_check
            _
          $region61: #{enc_r_forward.3} parent=58 // pred_check_branch
            %626 = sbr.rel (0) target = $region63
          $region62: #{enc_r_forward.3} parent=58 // pred_region
            // Predicated region
            $region64: #{enc_r_forward.3} parent=62 // pred_check
              _
            $region65: #{enc_r_forward.3} parent=62 // pred_check_branch
              %628 = sbr.rel (0) target = $region67
            $region66: #{enc_r_forward.3} parent=62 // pred_region
              loop: start=0, step=1, limit=1
              $region68: #{enc_r_forward.3} parent=66 // loop_pre_header
                _
              $region69: #{enc_r_forward.3} parent=66 // loop_header
                %s630 = sphi 0, %s634
                %p631 = scmp.ge.s32.totalorder %s630, 1
                %s635 = sphi %s618, %s618
                %s636 = sphi %s624, %s624
              $region70: #{enc_r_forward.3} parent=66 // loop_header_branch
                %633 = sbr.rel (%p631) target = $region74
              $region71: #{enc_r_forward.3} parent=66 // loop_body
                %v637 = vld [vmem:[%s635] sm:$0xff]
                %638 = vst [vmem:[%s636] sm:$0xff] %v637
                %v639 = vld [vmem:[%s635 + $0x8] sm:$0xff]
                %640 = vst [vmem:[%s636 + $0x8] sm:$0xff] %v639
                %v641 = vld [vmem:[%s635 + $0x10] sm:$0xff]
                %642 = vst [vmem:[%s636 + $0x10] sm:$0xff] %v641
                %v643 = vld [vmem:[%s635 + $0x18] sm:$0xff]
                %644 = vst [vmem:[%s636 + $0x18] sm:$0xff] %v643
                %v645 = vld [vmem:[%s635 + $0x20] sm:$0xff]
                %646 = vst [vmem:[%s636 + $0x80] sm:$0xff] %v645
                %v647 = vld [vmem:[%s635 + $0x28] sm:$0xff]
                %648 = vst [vmem:[%s636 + $0x88] sm:$0xff] %v647
                %v649 = vld [vmem:[%s635 + $0x30] sm:$0xff]
                %650 = vst [vmem:[%s636 + $0x90] sm:$0xff] %v649
                %v651 = vld [vmem:[%s635 + $0x38] sm:$0xff]
                %652 = vst [vmem:[%s636 + $0x98] sm:$0xff] %v651
                %v653 = vld [vmem:[%s635 + $0x40] sm:$0xff]
                %654 = vst [vmem:[%s636 + $0x100] sm:$0xff] %v653
                %v655 = vld [vmem:[%s635 + $0x48] sm:$0xff]
                %656 = vst [vmem:[%s636 + $0x108] sm:$0xff] %v655
                %v657 = vld [vmem:[%s635 + $0x50] sm:$0xff]
                %658 = vst [vmem:[%s636 + $0x110] sm:$0xff] %v657
                %v659 = vld [vmem:[%s635 + $0x58] sm:$0xff]
                %660 = vst [vmem:[%s636 + $0x118] sm:$0xff] %v659
                %v661 = vld [vmem:[%s635 + $0x60] sm:$0xff]
                %662 = vst [vmem:[%s636 + $0x180] sm:$0xff] %v661
                %v663 = vld [vmem:[%s635 + $0x68] sm:$0xff]
                %664 = vst [vmem:[%s636 + $0x188] sm:$0xff] %v663
                %v665 = vld [vmem:[%s635 + $0x70] sm:$0xff]
                %666 = vst [vmem:[%s636 + $0x190] sm:$0xff] %v665
                %v667 = vld [vmem:[%s635 + $0x78] sm:$0xff]
                %668 = vst [vmem:[%s636 + $0x198] sm:$0xff] %v667
              $region72: #{enc_r_forward.3} parent=66 // loop_footer
                %s634 = sadd.s32 1, %s630
              $region73: #{enc_r_forward.3} parent=66 // loop_footer_branch
                %629 = sbr.rel target = $region69
              $region74: #{enc_r_forward.3} parent=66 // loop_exit
                _
            $region67: #{enc_r_forward.3} parent=62 // pred_fallthru
              _
            // Predicated region
            $region75: #{enc_r_forward.3} parent=62 // pred_check
              _
            $region76: #{enc_r_forward.3} parent=62 // pred_check_branch
              %670 = sbr.rel target = $region78
            $region77: #{enc_r_forward.3} parent=62 // pred_region
              _
            $region78: #{enc_r_forward.3} parent=62 // pred_fallthru
              _
          $region63: #{enc_r_forward.3} parent=58 // pred_fallthru
            _
          %671 = vnop
        $region59: #{enc_r_forward.3} parent=50 // pred_fallthru
          _
      $region51: #{enc_r_forward.3} parent=5 // pred_fallthru
        _
      %p672 = scmp.le.s32.totalorder 2, %s9
      // Predicated region
      $region79: #{enc_r_forward.3} parent=5 // pred_check
        %p673 = pneg %p672
      $region80: #{enc_r_forward.3} parent=5 // pred_check_branch
        %675 = sbr.rel (%p673) target = $region82
      $region81: #{enc_r_forward.3} parent=5 // pred_region
        %s676 = ssub.s32 %s9, 2
        // Predicated region
        $region83: #{enc_r_forward.3} parent=81 // pred_check
          %p677 = pneg %p106
        $region84: #{enc_r_forward.3} parent=81 // pred_check_branch
          %679 = sbr.rel (%p677) target = $region86
        $region85: #{enc_r_forward.3} parent=81 // pred_region
          %s680 = sand.u32 %s91, 1
          %s681 = sand.u32 %s91, 1
          %s682 = smul.addr %s681, 128
          %s683 = scalar_lea.vmem [#allocation3], %s682
        $region86: #{enc_r_forward.3} parent=81 // pred_fallthru
          _
      $region82: #{enc_r_forward.3} parent=5 // pred_fallthru
        _
    $region6: #{enc_r_forward.3} parent=1 // loop_footer
      %s13 = sadd.s32 1, %s9
    $region7: #{enc_r_forward.3} parent=1 // loop_footer_branch
      %8 = sbr.rel target = $region3
    $region8: #{enc_r_forward.3} parent=1 // loop_exit
      _

// kernel: enc_r_forward.4
$region0: #{enc_r_forward.4}
  #allocation0 [shape = 'u32[]', space=smem, size = 0x4, offset = 0x4, fixed_abs, tag = 'smem constant byte address 0x4 - core index']
  #allocation1 [shape = 'u32[144,128]{1,0:T(1,128)}', space=vmem, size = 0x12000, scoped, tag = 'internal scratch']
  %s0 = inlined_call_operand.vmem [shape: f32[896,512], index: 0, kind: input, shape index: {}]
  %s1 = inlined_call_operand.vmem [shape: f32[32,896], index: 1, kind: input, shape index: {}]
  %s2 = inlined_call_operand.vmem [shape: f32[32,1], index: 2, kind: input, shape index: {}]
  %s3 = inlined_call_operand.vmem [shape: f32[32,512], index: 3, kind: output, shape index: {}]
  %s4 = sld [smem:[#allocation0]]
  $region22: #{enc_r_forward.4} parent=0
    _
  %s6 = ssub.s32 1, %s4
  %s7 = scalar_select 0, %s6, %s4
  // Predicated region
  $region2: #{enc_r_forward.4} parent=0 // pred_check
    _
  $region3: #{enc_r_forward.4} parent=0 // pred_check_branch
    %9 = sbr.rel (0) target = $region5
  $region4: #{enc_r_forward.4} parent=0 // pred_region
    _
  $region5: #{enc_r_forward.4} parent=0 // pred_fallthru
    _
  // Predicated region
  $region6: #{enc_r_forward.4} parent=0 // pred_check
    _
  $region7: #{enc_r_forward.4} parent=0 // pred_check_branch
    %11 = sbr.rel (0) target = $region9
  $region8: #{enc_r_forward.4} parent=0 // pred_region
    _
  $region9: #{enc_r_forward.4} parent=0 // pred_fallthru
    _
  // Predicated region
  $region10: #{enc_r_forward.4} parent=0 // pred_check
    _
  $region11: #{enc_r_forward.4} parent=0 // pred_check_branch
    %13 = sbr.rel (0) target = $region13
  $region12: #{enc_r_forward.4} parent=0 // pred_region
    _
  $region13: #{enc_r_forward.4} parent=0 // pred_fallthru
    _
  %v14 = vld [vmem:[%s1] sm:$0xff]
  %v15 = vld [vmem:[%s1 + $0x8] sm:$0xff]
  %v16 = vld [vmem:[%s1 + $0x10] sm:$0xff]
  %v17 = vld [vmem:[%s1 + $0x18] sm:$0xff]
  %v18 = vld [vmem:[%s1 + $0x20] sm:$0xff]
  %v19 = vld [vmem:[%s1 + $0x28] sm:$0xff]
  %v20 = vld [vmem:[%s1 + $0x30] sm:$0xff]
  %v21 = vld [vmem:[%s1 + $0x38] sm:$0xff]
  %v22 = vld [vmem:[%s1 + $0x40] sm:$0xff]
  %v23 = vld [vmem:[%s1 + $0x48] sm:$0xff]
  %v24 = vld [vmem:[%s1 + $0x50] sm:$0xff]
  %v25 = vld [vmem:[%s1 + $0x58] sm:$0xff]
  %v26 = vld [vmem:[%s1 + $0x60] sm:$0xff]
  %v27 = vld [vmem:[%s1 + $0x68] sm:$0xff]
  %v28 = vld [vmem:[%s1 + $0x70] sm:$0xff]
  %v29 = vld [vmem:[%s1 + $0x78] sm:$0xff]
  %v30 = vld [vmem:[%s1 + $0x80] sm:$0xff]
  %v31 = vld [vmem:[%s1 + $0x88] sm:$0xff]
  %v32 = vld [vmem:[%s1 + $0x90] sm:$0xff]
  %v33 = vld [vmem:[%s1 + $0x98] sm:$0xff]
  %v34 = vld [vmem:[%s1 + $0xa0] sm:$0xff]
  %v35 = vld [vmem:[%s1 + $0xa8] sm:$0xff]
  %v36 = vld [vmem:[%s1 + $0xb0] sm:$0xff]
  %v37 = vld [vmem:[%s1 + $0xb8] sm:$0xff]
  %v38 = vld [vmem:[%s1 + $0xc0] sm:$0xff]
  %v39 = vld [vmem:[%s1 + $0xc8] sm:$0xff]
  %v40 = vld [vmem:[%s1 + $0xd0] sm:$0xff]
  %v41 = vld [vmem:[%s1 + $0xd8] sm:$0xff]
  %v42 = vld [vmem:[%s0] sm:$0xff]
  %v43 = vld [vmem:[%s0 + $0x8] sm:$0xff]
  %v44 = vld [vmem:[%s0 + $0x10] sm:$0xff]
  %v45 = vld [vmem:[%s0 + $0x18] sm:$0xff]
  %v46 = vld [vmem:[%s0 + $0x20] sm:$0xff]
  %v47 = vld [vmem:[%s0 + $0x28] sm:$0xff]
  %v48 = vld [vmem:[%s0 + $0x30] sm:$0xff]
  %v49 = vld [vmem:[%s0 + $0x38] sm:$0xff]
  %v50 = vld [vmem:[%s0 + $0x40] sm:$0xff]
  %v51 = vld [vmem:[%s0 + $0x48] sm:$0xff]
  %v52 = vld [vmem:[%s0 + $0x50] sm:$0xff]
  %v53 = vld [vmem:[%s0 + $0x58] sm:$0xff]
  %v54 = vld [vmem:[%s0 + $0x60] sm:$0xff]
  %v55 = vld [vmem:[%s0 + $0x68] sm:$0xff]
  %v56 = vld [vmem:[%s0 + $0x70] sm:$0xff]
  %v57 = vld [vmem:[%s0 + $0x78] sm:$0xff]
  %v58 = vld [vmem:[%s0 + $0x80] sm:$0xff]
  %v59 = vld [vmem:[%s0 + $0x88] sm:$0xff]
  %v60 = vld [vmem:[%s0 + $0x90] sm:$0xff]
  %v61 = vld [vmem:[%s0 + $0x98] sm:$0xff]
  %v62 = vld [vmem:[%s0 + $0xa0] sm:$0xff]
  %v63 = vld [vmem:[%s0 + $0xa8] sm:$0xff]
  %v64 = vld [vmem:[%s0 + $0xb0] sm:$0xff]
  %v65 = vld [vmem:[%s0 + $0xb8] sm:$0xff]
  %v66 = vld [vmem:[%s0 + $0xc0] sm:$0xff]
  %v67 = vld [vmem:[%s0 + $0xc8] sm:$0xff]
  %v68 = vld [vmem:[%s0 + $0xd0] sm:$0xff]
  %v69 = vld [vmem:[%s0 + $0xd8] sm:$0xff]
  %v70 = vld [vmem:[%s0 + $0xe0] sm:$0xff]
  %v71 = vld [vmem:[%s0 + $0xe8] sm:$0xff]
  %v72 = vld [vmem:[%s0 + $0xf0] sm:$0xff]
  %v73 = vld [vmem:[%s0 + $0xf8] sm:$0xff]
  %v74 = vld [vmem:[%s0 + $0x100] sm:$0xff]
  %v75 = vld [vmem:[%s0 + $0x108] sm:$0xff]
  %v76 = vld [vmem:[%s0 + $0x110] sm:$0xff]
  %v77 = vld [vmem:[%s0 + $0x118] sm:$0xff]
  %v78 = vld [vmem:[%s0 + $0x120] sm:$0xff]
  %v79 = vld [vmem:[%s0 + $0x128] sm:$0xff]
  %v80 = vld [vmem:[%s0 + $0x130] sm:$0xff]
  %v81 = vld [vmem:[%s0 + $0x138] sm:$0xff]
  %v82 = vld [vmem:[%s0 + $0x140] sm:$0xff]
  %v83 = vld [vmem:[%s0 + $0x148] sm:$0xff]
  %v84 = vld [vmem:[%s0 + $0x150] sm:$0xff]
  %v85 = vld [vmem:[%s0 + $0x158] sm:$0xff]
  %v86 = vld [vmem:[%s0 + $0x160] sm:$0xff]
  %v87 = vld [vmem:[%s0 + $0x168] sm:$0xff]
  %v88 = vld [vmem:[%s0 + $0x170] sm:$0xff]
  %v89 = vld [vmem:[%s0 + $0x178] sm:$0xff]
  %v90 = vld [vmem:[%s0 + $0x180] sm:$0xff]
  %v91 = vld [vmem:[%s0 + $0x188] sm:$0xff]
  %v92 = vld [vmem:[%s0 + $0x190] sm:$0xff]
  %v93 = vld [vmem:[%s0 + $0x198] sm:$0xff]
  %v94 = vld [vmem:[%s0 + $0x1a0] sm:$0xff]
  %v95 = vld [vmem:[%s0 + $0x1a8] sm:$0xff]
  %v96 = vld [vmem:[%s0 + $0x1b0] sm:$0xff]
  %v97 = vld [vmem:[%s0 + $0x1b8] sm:$0xff]
  %v98 = vld [vmem:[%s0 + $0x1c0] sm:$0xff]
  %v99 = vld [vmem:[%s0 + $0x1c8] sm:$0xff]
  %v100 = vld [vmem:[%s0 + $0x1d0] sm:$0xff]
  %v101 = vld [vmem:[%s0 + $0x1d8] sm:$0xff]
  %v102 = vld [vmem:[%s0 + $0x1e0] sm:$0xff]
  %v103 = vld [vmem:[%s0 + $0x1e8] sm:$0xff]
  %v104 = vld [vmem:[%s0 + $0x1f0] sm:$0xff]
  %v105 = vld [vmem:[%s0 + $0x1f8] sm:$0xff]
  %v106 = vld [vmem:[%s0 + $0x200] sm:$0xff]
  %v107 = vld [vmem:[%s0 + $0x208] sm:$0xff]
  %v108 = vld [vmem:[%s0 + $0x210] sm:$0xff]
  %v109 = vld [vmem:[%s0 + $0x218] sm:$0xff]
  %v110 = vld [vmem:[%s0 + $0x220] sm:$0xff]
  %v111 = vld [vmem:[%s0 + $0x228] sm:$0xff]
  %v112 = vld [vmem:[%s0 + $0x230] sm:$0xff]
  %v113 = vld [vmem:[%s0 + $0x238] sm:$0xff]
  %v114 = vld [vmem:[%s0 + $0x240] sm:$0xff]
  %v115 = vld [vmem:[%s0 + $0x248] sm:$0xff]
  %v116 = vld [vmem:[%s0 + $0x250] sm:$0xff]
  %v117 = vld [vmem:[%s0 + $0x258] sm:$0xff]
  %v118 = vld [vmem:[%s0 + $0x260] sm:$0xff]
  %v119 = vld [vmem:[%s0 + $0x268] sm:$0xff]
  %v120 = vld [vmem:[%s0 + $0x270] sm:$0xff]
  %v121 = vld [vmem:[%s0 + $0x278] sm:$0xff]
  %v122 = vld [vmem:[%s0 + $0x280] sm:$0xff]
  %v123 = vld [vmem:[%s0 + $0x288] sm:$0xff]
  %v124 = vld [vmem:[%s0 + $0x290] sm:$0xff]
  %v125 = vld [vmem:[%s0 + $0x298] sm:$0xff]
  %v126 = vld [vmem:[%s0 + $0x2a0] sm:$0xff]
  %v127 = vld [vmem:[%s0 + $0x2a8] sm:$0xff]
  %v128 = vld [vmem:[%s0 + $0x2b0] sm:$0xff]
  %v129 = vld [vmem:[%s0 + $0x2b8] sm:$0xff]
  %v130 = vld [vmem:[%s0 + $0x2c0] sm:$0xff]
  %v131 = vld [vmem:[%s0 + $0x2c8] sm:$0xff]
  %v132 = vld [vmem:[%s0 + $0x2d0] sm:$0xff]
  %v133 = vld [vmem:[%s0 + $0x2d8] sm:$0xff]
  %v134 = vld [vmem:[%s0 + $0x2e0] sm:$0xff]
  %v135 = vld [vmem:[%s0 + $0x2e8] sm:$0xff]
  %v136 = vld [vmem:[%s0 + $0x2f0] sm:$0xff]
  %v137 = vld [vmem:[%s0 + $0x2f8] sm:$0xff]
  %v138 = vld [vmem:[%s0 + $0x300] sm:$0xff]
  %v139 = vld [vmem:[%s0 + $0x308] sm:$0xff]
  %v140 = vld [vmem:[%s0 + $0x310] sm:$0xff]
  %v141 = vld [vmem:[%s0 + $0x318] sm:$0xff]
  %v142 = vld [vmem:[%s0 + $0x320] sm:$0xff]
  %v143 = vld [vmem:[%s0 + $0x328] sm:$0xff]
  %v144 = vld [vmem:[%s0 + $0x330] sm:$0xff]
  %v145 = vld [vmem:[%s0 + $0x338] sm:$0xff]
  %v146 = vld [vmem:[%s0 + $0x340] sm:$0xff]
  %v147 = vld [vmem:[%s0 + $0x348] sm:$0xff]
  %v148 = vld [vmem:[%s0 + $0x350] sm:$0xff]
  %v149 = vld [vmem:[%s0 + $0x358] sm:$0xff]
  %v150 = vld [vmem:[%s0 + $0x360] sm:$0xff]
  %v151 = vld [vmem:[%s0 + $0x368] sm:$0xff]
  %v152 = vld [vmem:[%s0 + $0x370] sm:$0xff]
  %v153 = vld [vmem:[%s0 + $0x378] sm:$0xff]
  %v154 = vld [vmem:[%s0 + $0x380] sm:$0xff]
  %v155 = vld [vmem:[%s0 + $0x388] sm:$0xff]
  %v156 = vld [vmem:[%s0 + $0x390] sm:$0xff]
  %v157 = vld [vmem:[%s0 + $0x398] sm:$0xff]
  %v158 = vld [vmem:[%s0 + $0x3a0] sm:$0xff]
  %v159 = vld [vmem:[%s0 + $0x3a8] sm:$0xff]
  %v160 = vld [vmem:[%s0 + $0x3b0] sm:$0xff]
  %v161 = vld [vmem:[%s0 + $0x3b8] sm:$0xff]
  %v162 = vld [vmem:[%s0 + $0x3c0] sm:$0xff]
  %v163 = vld [vmem:[%s0 + $0x3c8] sm:$0xff]
  %v164 = vld [vmem:[%s0 + $0x3d0] sm:$0xff]
  %v165 = vld [vmem:[%s0 + $0x3d8] sm:$0xff]
  %v166 = vld [vmem:[%s0 + $0x3e0] sm:$0xff]
  %v167 = vld [vmem:[%s0 + $0x3e8] sm:$0xff]
  %v168 = vld [vmem:[%s0 + $0x3f0] sm:$0xff]
  %v169 = vld [vmem:[%s0 + $0x3f8] sm:$0xff]
  %v170 = vld [vmem:[%s0 + $0x400] sm:$0xff]
  %v171 = vld [vmem:[%s0 + $0x408] sm:$0xff]
  %v172 = vld [vmem:[%s0 + $0x410] sm:$0xff]
  %v173 = vld [vmem:[%s0 + $0x418] sm:$0xff]
  %v174 = vld [vmem:[%s0 + $0x420] sm:$0xff]
  %v175 = vld [vmem:[%s0 + $0x428] sm:$0xff]
  %v176 = vld [vmem:[%s0 + $0x430] sm:$0xff]
  %v177 = vld [vmem:[%s0 + $0x438] sm:$0xff]
  %v178 = vld [vmem:[%s0 + $0x440] sm:$0xff]
  %v179 = vld [vmem:[%s0 + $0x448] sm:$0xff]
  %v180 = vld [vmem:[%s0 + $0x450] sm:$0xff]
  %v181 = vld [vmem:[%s0 + $0x458] sm:$0xff]
  %v182 = vld [vmem:[%s0 + $0x460] sm:$0xff]
  %v183 = vld [vmem:[%s0 + $0x468] sm:$0xff]
  %v184 = vld [vmem:[%s0 + $0x470] sm:$0xff]
  %v185 = vld [vmem:[%s0 + $0x478] sm:$0xff]
  %v186 = vld [vmem:[%s0 + $0x480] sm:$0xff]
  %v187 = vld [vmem:[%s0 + $0x488] sm:$0xff]
  %v188 = vld [vmem:[%s0 + $0x490] sm:$0xff]
  %v189 = vld [vmem:[%s0 + $0x498] sm:$0xff]
  %v190 = vld [vmem:[%s0 + $0x4a0] sm:$0xff]
  %v191 = vld [vmem:[%s0 + $0x4a8] sm:$0xff]
  %v192 = vld [vmem:[%s0 + $0x4b0] sm:$0xff]
  %v193 = vld [vmem:[%s0 + $0x4b8] sm:$0xff]
  %v194 = vld [vmem:[%s0 + $0x4c0] sm:$0xff]
  %v195 = vld [vmem:[%s0 + $0x4c8] sm:$0xff]
  %v196 = vld [vmem:[%s0 + $0x4d0] sm:$0xff]
  %v197 = vld [vmem:[%s0 + $0x4d8] sm:$0xff]
  %v198 = vld [vmem:[%s0 + $0x4e0] sm:$0xff]
  %v199 = vld [vmem:[%s0 + $0x4e8] sm:$0xff]
  %v200 = vld [vmem:[%s0 + $0x4f0] sm:$0xff]
  %v201 = vld [vmem:[%s0 + $0x4f8] sm:$0xff]
  %v202 = vld [vmem:[%s0 + $0x500] sm:$0xff]
  %v203 = vld [vmem:[%s0 + $0x508] sm:$0xff]
  %v204 = vld [vmem:[%s0 + $0x510] sm:$0xff]
  %v205 = vld [vmem:[%s0 + $0x518] sm:$0xff]
  %v206 = vld [vmem:[%s0 + $0x520] sm:$0xff]
  %v207 = vld [vmem:[%s0 + $0x528] sm:$0xff]
  %v208 = vld [vmem:[%s0 + $0x530] sm:$0xff]
  %v209 = vld [vmem:[%s0 + $0x538] sm:$0xff]
  %v210 = vld [vmem:[%s0 + $0x540] sm:$0xff]
  %v211 = vld [vmem:[%s0 + $0x548] sm:$0xff]
  %v212 = vld [vmem:[%s0 + $0x550] sm:$0xff]
  %v213 = vld [vmem:[%s0 + $0x558] sm:$0xff]
  %v214 = vld [vmem:[%s0 + $0x560] sm:$0xff]
  %v215 = vld [vmem:[%s0 + $0x568] sm:$0xff]
  %v216 = vld [vmem:[%s0 + $0x570] sm:$0xff]
  %v217 = vld [vmem:[%s0 + $0x578] sm:$0xff]
  %v218 = vld [vmem:[%s0 + $0x580] sm:$0xff]
  %v219 = vld [vmem:[%s0 + $0x588] sm:$0xff]
  %v220 = vld [vmem:[%s0 + $0x590] sm:$0xff]
  %v221 = vld [vmem:[%s0 + $0x598] sm:$0xff]
  %v222 = vld [vmem:[%s0 + $0x5a0] sm:$0xff]
  %v223 = vld [vmem:[%s0 + $0x5a8] sm:$0xff]
  %v224 = vld [vmem:[%s0 + $0x5b0] sm:$0xff]
  %v225 = vld [vmem:[%s0 + $0x5b8] sm:$0xff]
  %v226 = vld [vmem:[%s0 + $0x5c0] sm:$0xff]
  %v227 = vld [vmem:[%s0 + $0x5c8] sm:$0xff]
  %v228 = vld [vmem:[%s0 + $0x5d0] sm:$0xff]
  %v229 = vld [vmem:[%s0 + $0x5d8] sm:$0xff]
  %v230 = vld [vmem:[%s0 + $0x5e0] sm:$0xff]
  %v231 = vld [vmem:[%s0 + $0x5e8] sm:$0xff]
  %v232 = vld [vmem:[%s0 + $0x5f0] sm:$0xff]
  %v233 = vld [vmem:[%s0 + $0x5f8] sm:$0xff]
  %v234 = vld [vmem:[%s0 + $0x600] sm:$0xff]
  %v235 = vld [vmem:[%s0 + $0x608] sm:$0xff]
  %v236 = vld [vmem:[%s0 + $0x610] sm:$0xff]
  %v237 = vld [vmem:[%s0 + $0x618] sm:$0xff]
  %v238 = vld [vmem:[%s0 + $0x620] sm:$0xff]
  %v239 = vld [vmem:[%s0 + $0x628] sm:$0xff]
  %v240 = vld [vmem:[%s0 + $0x630] sm:$0xff]
  %v241 = vld [vmem:[%s0 + $0x638] sm:$0xff]
  %v242 = vld [vmem:[%s0 + $0x640] sm:$0xff]
  %v243 = vld [vmem:[%s0 + $0x648] sm:$0xff]
  %v244 = vld [vmem:[%s0 + $0x650] sm:$0xff]
  %v245 = vld [vmem:[%s0 + $0x658] sm:$0xff]
  %v246 = vld [vmem:[%s0 + $0x660] sm:$0xff]
  %v247 = vld [vmem:[%s0 + $0x668] sm:$0xff]
  %v248 = vld [vmem:[%s0 + $0x670] sm:$0xff]
  %v249 = vld [vmem:[%s0 + $0x678] sm:$0xff]
  %v250 = vld [vmem:[%s0 + $0x680] sm:$0xff]
  %v251 = vld [vmem:[%s0 + $0x688] sm:$0xff]
  %v252 = vld [vmem:[%s0 + $0x690] sm:$0xff]
  %v253 = vld [vmem:[%s0 + $0x698] sm:$0xff]
  %v254 = vld [vmem:[%s0 + $0x6a0] sm:$0xff]
  %v255 = vld [vmem:[%s0 + $0x6a8] sm:$0xff]
  %v256 = vld [vmem:[%s0 + $0x6b0] sm:$0xff]
  %v257 = vld [vmem:[%s0 + $0x6b8] sm:$0xff]
  %v258 = vld [vmem:[%s0 + $0x6c0] sm:$0xff]
  %v259 = vld [vmem:[%s0 + $0x6c8] sm:$0xff]
  %v260 = vld [vmem:[%s0 + $0x6d0] sm:$0xff]
  %v261 = vld [vmem:[%s0 + $0x6d8] sm:$0xff]
  %v262 = vld [vmem:[%s0 + $0x6e0] sm:$0xff]
  %v263 = vld [vmem:[%s0 + $0x6e8] sm:$0xff]
  %v264 = vld [vmem:[%s0 + $0x6f0] sm:$0xff]
  %v265 = vld [vmem:[%s0 + $0x6f8] sm:$0xff]
  %v266 = vld [vmem:[%s0 + $0x700] sm:$0xff]
  %v267 = vld [vmem:[%s0 + $0x708] sm:$0xff]
  %v268 = vld [vmem:[%s0 + $0x710] sm:$0xff]
  %v269 = vld [vmem:[%s0 + $0x718] sm:$0xff]
  %v270 = vld [vmem:[%s0 + $0x720] sm:$0xff]
  %v271 = vld [vmem:[%s0 + $0x728] sm:$0xff]
  %v272 = vld [vmem:[%s0 + $0x730] sm:$0xff]
  %v273 = vld [vmem:[%s0 + $0x738] sm:$0xff]
  %v274 = vld [vmem:[%s0 + $0x740] sm:$0xff]
  %v275 = vld [vmem:[%s0 + $0x748] sm:$0xff]
  %v276 = vld [vmem:[%s0 + $0x750] sm:$0xff]
  %v277 = vld [vmem:[%s0 + $0x758] sm:$0xff]
  %v278 = vld [vmem:[%s0 + $0x760] sm:$0xff]
  %v279 = vld [vmem:[%s0 + $0x768] sm:$0xff]
  %v280 = vld [vmem:[%s0 + $0x770] sm:$0xff]
  %v281 = vld [vmem:[%s0 + $0x778] sm:$0xff]
  %v282 = vld [vmem:[%s0 + $0x780] sm:$0xff]
  %v283 = vld [vmem:[%s0 + $0x788] sm:$0xff]
  %v284 = vld [vmem:[%s0 + $0x790] sm:$0xff]
  %v285 = vld [vmem:[%s0 + $0x798] sm:$0xff]
  %v286 = vld [vmem:[%s0 + $0x7a0] sm:$0xff]
  %v287 = vld [vmem:[%s0 + $0x7a8] sm:$0xff]
  %v288 = vld [vmem:[%s0 + $0x7b0] sm:$0xff]
  %v289 = vld [vmem:[%s0 + $0x7b8] sm:$0xff]
  %v290 = vld [vmem:[%s0 + $0x7c0] sm:$0xff]
  %v291 = vld [vmem:[%s0 + $0x7c8] sm:$0xff]
  %v292 = vld [vmem:[%s0 + $0x7d0] sm:$0xff]
  %v293 = vld [vmem:[%s0 + $0x7d8] sm:$0xff]
  %v294 = vld [vmem:[%s0 + $0x7e0] sm:$0xff]
  %v295 = vld [vmem:[%s0 + $0x7e8] sm:$0xff]
  %v296 = vld [vmem:[%s0 + $0x7f0] sm:$0xff]
  %v297 = vld [vmem:[%s0 + $0x7f8] sm:$0xff]
  %v298 = vld [vmem:[%s0 + $0x800] sm:$0xff]
  %v299 = vld [vmem:[%s0 + $0x808] sm:$0xff]
  %v300 = vld [vmem:[%s0 + $0x810] sm:$0xff]
  %v301 = vld [vmem:[%s0 + $0x818] sm:$0xff]
  %v302 = vld [vmem:[%s0 + $0x820] sm:$0xff]
  %v303 = vld [vmem:[%s0 + $0x828] sm:$0xff]
  %v304 = vld [vmem:[%s0 + $0x830] sm:$0xff]
  %v305 = vld [vmem:[%s0 + $0x838] sm:$0xff]
  %v306 = vld [vmem:[%s0 + $0x840] sm:$0xff]
  %v307 = vld [vmem:[%s0 + $0x848] sm:$0xff]
  %v308 = vld [vmem:[%s0 + $0x850] sm:$0xff]
  %v309 = vld [vmem:[%s0 + $0x858] sm:$0xff]
  %v310 = vld [vmem:[%s0 + $0x860] sm:$0xff]
  %v311 = vld [vmem:[%s0 + $0x868] sm:$0xff]
  %v312 = vld [vmem:[%s0 + $0x870] sm:$0xff]
  %v313 = vld [vmem:[%s0 + $0x878] sm:$0xff]
  %v314 = vld [vmem:[%s0 + $0x880] sm:$0xff]
  %v315 = vld [vmem:[%s0 + $0x888] sm:$0xff]
  %v316 = vld [vmem:[%s0 + $0x890] sm:$0xff]
  %v317 = vld [vmem:[%s0 + $0x898] sm:$0xff]
  %v318 = vld [vmem:[%s0 + $0x8a0] sm:$0xff]
  %v319 = vld [vmem:[%s0 + $0x8a8] sm:$0xff]
  %v320 = vld [vmem:[%s0 + $0x8b0] sm:$0xff]
  %v321 = vld [vmem:[%s0 + $0x8b8] sm:$0xff]
  %v322 = vld [vmem:[%s0 + $0x8c0] sm:$0xff]
  %v323 = vld [vmem:[%s0 + $0x8c8] sm:$0xff]
  %v324 = vld [vmem:[%s0 + $0x8d0] sm:$0xff]
  %v325 = vld [vmem:[%s0 + $0x8d8] sm:$0xff]
  %v326 = vld [vmem:[%s0 + $0x8e0] sm:$0xff]
  %v327 = vld [vmem:[%s0 + $0x8e8] sm:$0xff]
  %v328 = vld [vmem:[%s0 + $0x8f0] sm:$0xff]
  %v329 = vld [vmem:[%s0 + $0x8f8] sm:$0xff]
  %v330 = vld [vmem:[%s0 + $0x900] sm:$0xff]
  %v331 = vld [vmem:[%s0 + $0x908] sm:$0xff]
  %v332 = vld [vmem:[%s0 + $0x910] sm:$0xff]
  %v333 = vld [vmem:[%s0 + $0x918] sm:$0xff]
  %v334 = vld [vmem:[%s0 + $0x920] sm:$0xff]
  %v335 = vld [vmem:[%s0 + $0x928] sm:$0xff]
  %v336 = vld [vmem:[%s0 + $0x930] sm:$0xff]
  %v337 = vld [vmem:[%s0 + $0x938] sm:$0xff]
  %v338 = vld [vmem:[%s0 + $0x940] sm:$0xff]
  %v339 = vld [vmem:[%s0 + $0x948] sm:$0xff]
  %v340 = vld [vmem:[%s0 + $0x950] sm:$0xff]
  %v341 = vld [vmem:[%s0 + $0x958] sm:$0xff]
  %v342 = vld [vmem:[%s0 + $0x960] sm:$0xff]
  %v343 = vld [vmem:[%s0 + $0x968] sm:$0xff]
  %v344 = vld [vmem:[%s0 + $0x970] sm:$0xff]
  %v345 = vld [vmem:[%s0 + $0x978] sm:$0xff]
  %v346 = vld [vmem:[%s0 + $0x980] sm:$0xff]
  %v347 = vld [vmem:[%s0 + $0x988] sm:$0xff]
  %v348 = vld [vmem:[%s0 + $0x990] sm:$0xff]
  %v349 = vld [vmem:[%s0 + $0x998] sm:$0xff]
  %v350 = vld [vmem:[%s0 + $0x9a0] sm:$0xff]
  %v351 = vld [vmem:[%s0 + $0x9a8] sm:$0xff]
  %v352 = vld [vmem:[%s0 + $0x9b0] sm:$0xff]
  %v353 = vld [vmem:[%s0 + $0x9b8] sm:$0xff]
  %v354 = vld [vmem:[%s0 + $0x9c0] sm:$0xff]
  %v355 = vld [vmem:[%s0 + $0x9c8] sm:$0xff]
  %v356 = vld [vmem:[%s0 + $0x9d0] sm:$0xff]
  %v357 = vld [vmem:[%s0 + $0x9d8] sm:$0xff]
  %v358 = vld [vmem:[%s0 + $0x9e0] sm:$0xff]
  %v359 = vld [vmem:[%s0 + $0x9e8] sm:$0xff]
  %v360 = vld [vmem:[%s0 + $0x9f0] sm:$0xff]
  %v361 = vld [vmem:[%s0 + $0x9f8] sm:$0xff]
  %v362 = vld [vmem:[%s0 + $0xa00] sm:$0xff]
  %v363 = vld [vmem:[%s0 + $0xa08] sm:$0xff]
  %v364 = vld [vmem:[%s0 + $0xa10] sm:$0xff]
  %v365 = vld [vmem:[%s0 + $0xa18] sm:$0xff]
  %v366 = vld [vmem:[%s0 + $0xa20] sm:$0xff]
  %v367 = vld [vmem:[%s0 + $0xa28] sm:$0xff]
  %v368 = vld [vmem:[%s0 + $0xa30] sm:$0xff]
  %v369 = vld [vmem:[%s0 + $0xa38] sm:$0xff]
  %v370 = vld [vmem:[%s0 + $0xa40] sm:$0xff]
  %v371 = vld [vmem:[%s0 + $0xa48] sm:$0xff]
  %v372 = vld [vmem:[%s0 + $0xa50] sm:$0xff]
  %v373 = vld [vmem:[%s0 + $0xa58] sm:$0xff]
  %v374 = vld [vmem:[%s0 + $0xa60] sm:$0xff]
  %v375 = vld [vmem:[%s0 + $0xa68] sm:$0xff]
  %v376 = vld [vmem:[%s0 + $0xa70] sm:$0xff]
  %v377 = vld [vmem:[%s0 + $0xa78] sm:$0xff]
  %v378 = vld [vmem:[%s0 + $0xa80] sm:$0xff]
  %v379 = vld [vmem:[%s0 + $0xa88] sm:$0xff]
  %v380 = vld [vmem:[%s0 + $0xa90] sm:$0xff]
  %v381 = vld [vmem:[%s0 + $0xa98] sm:$0xff]
  %v382 = vld [vmem:[%s0 + $0xaa0] sm:$0xff]
  %v383 = vld [vmem:[%s0 + $0xaa8] sm:$0xff]
  %v384 = vld [vmem:[%s0 + $0xab0] sm:$0xff]
  %v385 = vld [vmem:[%s0 + $0xab8] sm:$0xff]
  %v386 = vld [vmem:[%s0 + $0xac0] sm:$0xff]
  %v387 = vld [vmem:[%s0 + $0xac8] sm:$0xff]
  %v388 = vld [vmem:[%s0 + $0xad0] sm:$0xff]
  %v389 = vld [vmem:[%s0 + $0xad8] sm:$0xff]
  %v390 = vld [vmem:[%s0 + $0xae0] sm:$0xff]
  %v391 = vld [vmem:[%s0 + $0xae8] sm:$0xff]
  %v392 = vld [vmem:[%s0 + $0xaf0] sm:$0xff]
  %v393 = vld [vmem:[%s0 + $0xaf8] sm:$0xff]
  %v394 = vld [vmem:[%s0 + $0xb00] sm:$0xff]
  %v395 = vld [vmem:[%s0 + $0xb08] sm:$0xff]
  %v396 = vld [vmem:[%s0 + $0xb10] sm:$0xff]
  %v397 = vld [vmem:[%s0 + $0xb18] sm:$0xff]
  %v398 = vld [vmem:[%s0 + $0xb20] sm:$0xff]
  %v399 = vld [vmem:[%s0 + $0xb28] sm:$0xff]
  %v400 = vld [vmem:[%s0 + $0xb30] sm:$0xff]
  %v401 = vld [vmem:[%s0 + $0xb38] sm:$0xff]
  %v402 = vld [vmem:[%s0 + $0xb40] sm:$0xff]
  %v403 = vld [vmem:[%s0 + $0xb48] sm:$0xff]
  %v404 = vld [vmem:[%s0 + $0xb50] sm:$0xff]
  %v405 = vld [vmem:[%s0 + $0xb58] sm:$0xff]
  %v406 = vld [vmem:[%s0 + $0xb60] sm:$0xff]
  %v407 = vld [vmem:[%s0 + $0xb68] sm:$0xff]
  %v408 = vld [vmem:[%s0 + $0xb70] sm:$0xff]
  %v409 = vld [vmem:[%s0 + $0xb78] sm:$0xff]
  %v410 = vld [vmem:[%s0 + $0xb80] sm:$0xff]
  %v411 = vld [vmem:[%s0 + $0xb88] sm:$0xff]
  %v412 = vld [vmem:[%s0 + $0xb90] sm:$0xff]
  %v413 = vld [vmem:[%s0 + $0xb98] sm:$0xff]
  %v414 = vld [vmem:[%s0 + $0xba0] sm:$0xff]
  %v415 = vld [vmem:[%s0 + $0xba8] sm:$0xff]
  %v416 = vld [vmem:[%s0 + $0xbb0] sm:$0xff]
  %v417 = vld [vmem:[%s0 + $0xbb8] sm:$0xff]
  %v418 = vld [vmem:[%s0 + $0xbc0] sm:$0xff]
  %v419 = vld [vmem:[%s0 + $0xbc8] sm:$0xff]
  %v420 = vld [vmem:[%s0 + $0xbd0] sm:$0xff]
  %v421 = vld [vmem:[%s0 + $0xbd8] sm:$0xff]
  %v422 = vld [vmem:[%s0 + $0xbe0] sm:$0xff]
  %v423 = vld [vmem:[%s0 + $0xbe8] sm:$0xff]
  %v424 = vld [vmem:[%s0 + $0xbf0] sm:$0xff]
  %v425 = vld [vmem:[%s0 + $0xbf8] sm:$0xff]
  %v426 = vld [vmem:[%s0 + $0xc00] sm:$0xff]
  %v427 = vld [vmem:[%s0 + $0xc08] sm:$0xff]
  %v428 = vld [vmem:[%s0 + $0xc10] sm:$0xff]
  %v429 = vld [vmem:[%s0 + $0xc18] sm:$0xff]
  %v430 = vld [vmem:[%s0 + $0xc20] sm:$0xff]
  %v431 = vld [vmem:[%s0 + $0xc28] sm:$0xff]
  %v432 = vld [vmem:[%s0 + $0xc30] sm:$0xff]
  %v433 = vld [vmem:[%s0 + $0xc38] sm:$0xff]
  %v434 = vld [vmem:[%s0 + $0xc40] sm:$0xff]
  %v435 = vld [vmem:[%s0 + $0xc48] sm:$0xff]
  %v436 = vld [vmem:[%s0 + $0xc50] sm:$0xff]
  %v437 = vld [vmem:[%s0 + $0xc58] sm:$0xff]
  %v438 = vld [vmem:[%s0 + $0xc60] sm:$0xff]
  %v439 = vld [vmem:[%s0 + $0xc68] sm:$0xff]
  %v440 = vld [vmem:[%s0 + $0xc70] sm:$0xff]
  %v441 = vld [vmem:[%s0 + $0xc78] sm:$0xff]
  %v442 = vld [vmem:[%s0 + $0xc80] sm:$0xff]
  %v443 = vld [vmem:[%s0 + $0xc88] sm:$0xff]
  %v444 = vld [vmem:[%s0 + $0xc90] sm:$0xff]
  %v445 = vld [vmem:[%s0 + $0xc98] sm:$0xff]
  %v446 = vld [vmem:[%s0 + $0xca0] sm:$0xff]
  %v447 = vld [vmem:[%s0 + $0xca8] sm:$0xff]
  %v448 = vld [vmem:[%s0 + $0xcb0] sm:$0xff]
  %v449 = vld [vmem:[%s0 + $0xcb8] sm:$0xff]
  %v450 = vld [vmem:[%s0 + $0xcc0] sm:$0xff]
  %v451 = vld [vmem:[%s0 + $0xcc8] sm:$0xff]
  %v452 = vld [vmem:[%s0 + $0xcd0] sm:$0xff]
  %v453 = vld [vmem:[%s0 + $0xcd8] sm:$0xff]
  %v454 = vld [vmem:[%s0 + $0xce0] sm:$0xff]
  %v455 = vld [vmem:[%s0 + $0xce8] sm:$0xff]
  %v456 = vld [vmem:[%s0 + $0xcf0] sm:$0xff]
  %v457 = vld [vmem:[%s0 + $0xcf8] sm:$0xff]
  %v458 = vld [vmem:[%s0 + $0xd00] sm:$0xff]
  %v459 = vld [vmem:[%s0 + $0xd08] sm:$0xff]
  %v460 = vld [vmem:[%s0 + $0xd10] sm:$0xff]
  %v461 = vld [vmem:[%s0 + $0xd18] sm:$0xff]
  %v462 = vld [vmem:[%s0 + $0xd20] sm:$0xff]
  %v463 = vld [vmem:[%s0 + $0xd28] sm:$0xff]
  %v464 = vld [vmem:[%s0 + $0xd30] sm:$0xff]
  %v465 = vld [vmem:[%s0 + $0xd38] sm:$0xff]
  %v466 = vld [vmem:[%s0 + $0xd40] sm:$0xff]
  %v467 = vld [vmem:[%s0 + $0xd48] sm:$0xff]
  %v468 = vld [vmem:[%s0 + $0xd50] sm:$0xff]
  %v469 = vld [vmem:[%s0 + $0xd58] sm:$0xff]
  %v470 = vld [vmem:[%s0 + $0xd60] sm:$0xff]
  %v471 = vld [vmem:[%s0 + $0xd68] sm:$0xff]
  %v472 = vld [vmem:[%s0 + $0xd70] sm:$0xff]
  %v473 = vld [vmem:[%s0 + $0xd78] sm:$0xff]
  %v474 = vld [vmem:[%s0 + $0xd80] sm:$0xff]
  %v475 = vld [vmem:[%s0 + $0xd88] sm:$0xff]
  %v476 = vld [vmem:[%s0 + $0xd90] sm:$0xff]
  %v477 = vld [vmem:[%s0 + $0xd98] sm:$0xff]
  %v478 = vld [vmem:[%s0 + $0xda0] sm:$0xff]
  %v479 = vld [vmem:[%s0 + $0xda8] sm:$0xff]
  %v480 = vld [vmem:[%s0 + $0xdb0] sm:$0xff]
  %v481 = vld [vmem:[%s0 + $0xdb8] sm:$0xff]
  %v482 = vld [vmem:[%s0 + $0xdc0] sm:$0xff]
  %v483 = vld [vmem:[%s0 + $0xdc8] sm:$0xff]
  %v484 = vld [vmem:[%s0 + $0xdd0] sm:$0xff]
  %v485 = vld [vmem:[%s0 + $0xdd8] sm:$0xff]
  %v486 = vld [vmem:[%s0 + $0xde0] sm:$0xff]
  %v487 = vld [vmem:[%s0 + $0xde8] sm:$0xff]
  %v488 = vld [vmem:[%s0 + $0xdf0] sm:$0xff]
  %v489 = vld [vmem:[%s0 + $0xdf8] sm:$0xff]
  %v490 = vld [vmem:[%s2] sm:$0xff]
  %v491 = vld [vmem:[%s2 + $0x8] sm:$0xff]
  %v492 = vld [vmem:[%s2 + $0x10] sm:$0xff]
  %v493 = vld [vmem:[%s2 + $0x18] sm:$0xff]
  %495 = vset.pattern.permute.xlu0 0
  %496 = vperm.xlu0 %495, %v490
  %v497 = vpop.permute.xlu0 %496
  %500 = vset.pattern.permute.xlu0 0
  %501 = vperm.xlu0 %500, %v491
  %v502 = vpop.permute.xlu0 %501
  %505 = vset.pattern.permute.xlu0 0
  %506 = vperm.xlu0 %505, %v492
  %v507 = vpop.permute.xlu0 %506
  %510 = vset.pattern.permute.xlu0 0
  %511 = vperm.xlu0 %510, %v493
  %v512 = vpop.permute.xlu0 %511
  %514 = vmatprep.subr.mxu0 %v43
  %515 = vmatpush1.msra.mxu0 %v42
  %516 = vmatprep.subr.mxu0 %v47
  %517 = vmatpush1.msra.mxu0 %v46
  %518 = vmatprep.subr.mxu0 %v51
  %519 = vmatpush1.msra.mxu0 %v50
  %520 = vmatprep.subr.mxu0 %v55
  %521 = vmatpush1.msra.mxu0 %v54
  %522 = vmatprep.subr.mxu0 %v59
  %523 = vmatpush1.msra.mxu0 %v58
  %524 = vmatprep.subr.mxu0 %v63
  %525 = vmatpush1.msra.mxu0 %v62
  %526 = vmatprep.subr.mxu0 %v67
  %527 = vmatpush1.msra.mxu0 %v66
  %528 = vmatprep.subr.mxu0 %v71
  %529 = vmatpush1.msra.mxu0 %v70
  %530 = vmatprep.subr.mxu0 %v75
  %531 = vmatpush1.msra.mxu0 %v74
  %532 = vmatprep.subr.mxu0 %v79
  %533 = vmatpush1.msra.mxu0 %v78
  %534 = vmatprep.subr.mxu0 %v83
  %535 = vmatpush1.msra.mxu0 %v82
  %536 = vmatprep.subr.mxu0 %v87
  %537 = vmatpush1.msra.mxu0 %v86
  %538 = vmatprep.subr.mxu0 %v91
  %539 = vmatpush1.msra.mxu0 %v90
  %540 = vmatprep.subr.mxu0 %v95
  %541 = vmatpush1.msra.mxu0 %v94
  %542 = vmatprep.subr.mxu0 %v99
  %543 = vmatpush1.msra.mxu0 %v98
  %544 = vmatprep.subr.mxu0 %v103
  %545 = vmatpush1.msra.mxu0 %v102
  %546 = vmatprep.subr.mxu0 %v107
  %547 = vmatpush1.msra.mxu0 %v106
  %548 = vmatprep.subr.mxu0 %v111
  %549 = vmatpush1.msra.mxu0 %v110
  %550 = vmatprep.subr.mxu0 %v115
  %551 = vmatpush1.msra.mxu0 %v114
  %552 = vmatprep.subr.mxu0 %v119
  %553 = vmatpush1.msra.mxu0 %v118
  %554 = vmatprep.subr.mxu0 %v123
  %555 = vmatpush1.msra.mxu0 %v122
  %556 = vmatprep.subr.mxu0 %v127
  %557 = vmatpush1.msra.mxu0 %v126
  %558 = vmatprep.subr.mxu0 %v131
  %559 = vmatpush1.msra.mxu0 %v130
  %560 = vmatprep.subr.mxu0 %v135
  %561 = vmatpush1.msra.mxu0 %v134
  %562 = vmatprep.subr.mxu0 %v139
  %563 = vmatpush1.msra.mxu0 %v138
  %564 = vmatprep.subr.mxu0 %v143
  %565 = vmatpush1.msra.mxu0 %v142
  %566 = vmatprep.subr.mxu0 %v147
  %567 = vmatpush1.msra.mxu0 %v146
  %568 = vmatprep.subr.mxu0 %v151
  %569 = vmatpush1.msra.mxu0 %v150
  %570 = vmatprep.subr.mxu0 %v155
  %571 = vmatpush1.msra.mxu0 %v154
  %572 = vmatprep.subr.mxu0 %v159
  %573 = vmatpush1.msra.mxu0 %v158
  %574 = vmatprep.subr.mxu0 %v163
  %575 = vmatpush1.msra.mxu0 %v162
  %576 = vmatprep.subr.mxu0 %v167
  %577 = vmatpush1.msra.mxu0 %v166
  %578 = vmatprep.mubr.f32.mxu0 %v15
  %579 = vmatmul.mubr.f32.gmra.mrb[0].mxu0 %v14
  %v580 = vpop.f32.mrb[0].mxu0
  %v581 = vadd.f32 %v497, %v580
  %v582 = vpop.f32.mrb[0].mxu0
  %v583 = vadd.f32 %v497, %v582
  %584 = vmatprep.mubr.f32.mxu0 %v22
  %585 = vmatmul.mubr.f32.gmra.mrb[0].mxu0 %v21
  %v586 = vpop.f32.mrb[0].mxu0
  %v587 = vadd.f32 %v502, %v586
  %v588 = vpop.f32.mrb[0].mxu0
  %v589 = vadd.f32 %v502, %v588
  %590 = vmatprep.mubr.f32.mxu0 %v29
  %591 = vmatmul.mubr.f32.gmra.mrb[0].mxu0 %v28
  %v592 = vpop.f32.mrb[0].mxu0
  %v593 = vadd.f32 %v507, %v592
  %v594 = vpop.f32.mrb[0].mxu0
  %v595 = vadd.f32 %v507, %v594
  %596 = vmatprep.mubr.f32.mxu0 %v36
  %597 = vmatmul.mubr.f32.gmra.mrb[0].mxu0 %v35
  %v598 = vpop.f32.mrb[0].mxu0
  %v599 = vadd.f32 %v512, %v598
  %v600 = vpop.f32.mrb[0].mxu0
  %v601 = vadd.f32 %v512, %v600
  %602 = vdwg.mxu0
  %603 = vmatprep.subr.mxu0 %v171
  %604 = vmatpush1.msra.mxu0 %v170
  %605 = vmatprep.subr.mxu0 %v175
  %606 = vmatpush1.msra.mxu0 %v174
  %607 = vmatprep.subr.mxu0 %v179
  %608 = vmatpush1.msra.mxu0 %v178
  %609 = vmatprep.subr.mxu0 %v183
  %610 = vmatpush1.msra.mxu0 %v182
  %611 = vmatprep.subr.mxu0 %v187
  %612 = vmatpush1.msra.mxu0 %v186
  %613 = vmatprep.subr.mxu0 %v191
  %614 = vmatpush1.msra.mxu0 %v190
  %615 = vmatprep.subr.mxu0 %v195
  %616 = vmatpush1.msra.mxu0 %v194
  %617 = vmatprep.subr.mxu0 %v199
  %618 = vmatpush1.msra.mxu0 %v198
  %619 = vmatprep.subr.mxu0 %v203
  %620 = vmatpush1.msra.mxu0 %v202
  %621 = vmatprep.subr.mxu0 %v207
  %622 = vmatpush1.msra.mxu0 %v206
  %623 = vmatprep.subr.mxu0 %v211
  %624 = vmatpush1.msra.mxu0 %v210
  %625 = vmatprep.subr.mxu0 %v215
  %626 = vmatpush1.msra.mxu0 %v214
  %627 = vmatprep.subr.mxu0 %v219
  %628 = vmatpush1.msra.mxu0 %v218
  %629 = vmatprep.subr.mxu0 %v223
  %630 = vmatpush1.msra.mxu0 %v222
  %631 = vmatprep.subr.mxu0 %v227
  %632 = vmatpush1.msra.mxu0 %v226
  %633 = vmatprep.subr.mxu0 %v231
  %634 = vmatpush1.msra.mxu0 %v230
  %635 = vmatprep.subr.mxu0 %v235
  %636 = vmatpush1.msra.mxu0 %v234
  %637 = vmatprep.subr.mxu0 %v239
  %638 = vmatpush1.msra.mxu0 %v238
  %639 = vmatprep.subr.mxu0 %v243
  %640 = vmatpush1.msra.mxu0 %v242
  %641 = vmatprep.subr.mxu0 %v247
  %642 = vmatpush1.msra.mxu0 %v246
  %643 = vmatprep.subr.mxu0 %v251
  %644 = vmatpush1.msra.mxu0 %v250
  %645 = vmatprep.subr.mxu0 %v255
  %646 = vmatpush1.msra.mxu0 %v254
  %647 = vmatprep.subr.mxu0 %v259
  %648 = vmatpush1.msra.mxu0 %v258
  %649 = vmatprep.subr.mxu0 %v263
  %650 = vmatpush1.msra.mxu0 %v262
  %651 = vmatprep.subr.mxu0 %v267
  %652 = vmatpush1.msra.mxu0 %v266
  %653 = vmatprep.subr.mxu0 %v271
  %654 = vmatpush1.msra.mxu0 %v270
  %655 = vmatprep.subr.mxu0 %v275
  %656 = vmatpush1.msra.mxu0 %v274
  %657 = vmatprep.subr.mxu0 %v279
  %658 = vmatpush1.msra.mxu0 %v278
  %659 = vmatprep.subr.mxu0 %v283
  %660 = vmatpush1.msra.mxu0 %v282
  %661 = vmatprep.subr.mxu0 %v287
  %662 = vmatpush1.msra.mxu0 %v286
  %663 = vmatprep.subr.mxu0 %v291
  %664 = vmatpush1.msra.mxu0 %v290
  %665 = vmatprep.subr.mxu0 %v295
  %666 = vmatpush1.msra.mxu0 %v294
  %667 = vmatprep.mubr.f32.mxu0 %v17
  %668 = vmatmul.mubr.f32.gmra.mrb[0].mxu0 %v16
  %v669 = vpop.f32.mrb[0].mxu0
  %v670 = vadd.f32 %v581, %v669
  %v671 = vpop.f32.mrb[0].mxu0
  %v672 = vadd.f32 %v583, %v671
  %673 = vmatprep.mubr.f32.mxu0 %v24
  %674 = vmatmul.mubr.f32.gmra.mrb[0].mxu0 %v23
  %v675 = vpop.f32.mrb[0].mxu0
  %v676 = vadd.f32 %v587, %v675
  %v677 = vpop.f32.mrb[0].mxu0
  %v678 = vadd.f32 %v589, %v677
  %679 = vmatprep.mubr.f32.mxu0 %v31
  %680 = vmatmul.mubr.f32.gmra.mrb[0].mxu0 %v30
  %v681 = vpop.f32.mrb[0].mxu0
  %v682 = vadd.f32 %v593, %v681
  %v683 = vpop.f32.mrb[0].mxu0
  %v684 = vadd.f32 %v595, %v683
  %685 = vmatprep.mubr.f32.mxu0 %v38
  %686 = vmatmul.mubr.f32.gmra.mrb[0].mxu0 %v37
  %v687 = vpop.f32.mrb[0].mxu0
  %v688 = vadd.f32 %v599, %v687
  %v689 = vpop.f32.mrb[0].mxu0
  %v690 = vadd.f32 %v601, %v689
  %691 = vdwg.mxu0
  %692 = vmatprep.subr.mxu0 %v299
  %693 = vmatpush1.msra.mxu0 %v298
  %694 = vmatprep.subr.mxu0 %v303
  %695 = vmatpush1.msra.mxu0 %v302
  %696 = vmatprep.subr.mxu0 %v307
  %697 = vmatpush1.msra.mxu0 %v306
  %698 = vmatprep.subr.mxu0 %v311
  %699 = vmatpush1.msra.mxu0 %v310
  %700 = vmatprep.subr.mxu0 %v315
  %701 = vmatpush1.msra.mxu0 %v314
  %702 = vmatprep.subr.mxu0 %v319
  %703 = vmatpush1.msra.mxu0 %v318
  %704 = vmatprep.subr.mxu0 %v323
  %705 = vmatpush1.msra.mxu0 %v322
  %706 = vmatprep.subr.mxu0 %v327
  %707 = vmatpush1.msra.mxu0 %v326
  %708 = vmatprep.subr.mxu0 %v331
  %709 = vmatpush1.msra.mxu0 %v330
  %710 = vmatprep.subr.mxu0 %v335
  %711 = vmatpush1.msra.mxu0 %v334
  %712 = vmatprep.subr.mxu0 %v339
  %713 = vmatpush1.msra.mxu0 %v338
  %714 = vmatprep.subr.mxu0 %v343
  %715 = vmatpush1.msra.mxu0 %v342
  %716 = vmatprep.subr.mxu0 %v347
  %717 = vmatpush1.msra.mxu0 %v346
  %718 = vmatprep.subr.mxu0 %v351
  %719 = vmatpush1.msra.mxu0 %v350
  %720 = vmatprep.subr.mxu0 %v355
  %721 = vmatpush1.msra.mxu0 %v354
  %722 = vmatprep.subr.mxu0 %v359
  %723 = vmatpush1.msra.mxu0 %v358
  %724 = vmatprep.subr.mxu0 %v363
  %725 = vmatpush1.msra.mxu0 %v362
  %726 = vmatprep.subr.mxu0 %v367
  %727 = vmatpush1.msra.mxu0 %v366
  %728 = vmatprep.subr.mxu0 %v371
  %729 = vmatpush1.msra.mxu0 %v370
  %730 = vmatprep.subr.mxu0 %v375
  %731 = vmatpush1.msra.mxu0 %v374
  %732 = vmatprep.subr.mxu0 %v379
  %733 = vmatpush1.msra.mxu0 %v378
  %734 = vmatprep.subr.mxu0 %v383
  %735 = vmatpush1.msra.mxu0 %v382
  %736 = vmatprep.subr.mxu0 %v387
  %737 = vmatpush1.msra.mxu0 %v386
  %738 = vmatprep.subr.mxu0 %v391
  %739 = vmatpush1.msra.mxu0 %v390
  %740 = vmatprep.subr.mxu0 %v395
  %741 = vmatpush1.msra.mxu0 %v394
  %742 = vmatprep.subr.mxu0 %v399
  %743 = vmatpush1.msra.mxu0 %v398
  %744 = vmatprep.subr.mxu0 %v403
  %745 = vmatpush1.msra.mxu0 %v402
  %746 = vmatprep.subr.mxu0 %v407
  %747 = vmatpush1.msra.mxu0 %v406
  %748 = vmatprep.subr.mxu0 %v411
  %749 = vmatpush1.msra.mxu0 %v410
  %750 = vmatprep.subr.mxu0 %v415
  %751 = vmatpush1.msra.mxu0 %v414
  %752 = vmatprep.subr.mxu0 %v419
  %753 = vmatpush1.msra.mxu0 %v418
  %754 = vmatprep.subr.mxu0 %v423
  %755 = vmatpush1.msra.mxu0 %v422
  %756 = vmatprep.mubr.f32.mxu0 %v19
  %757 = vmatmul.mubr.f32.gmra.mrb[0].mxu0 %v18
  %v758 = vpop.f32.mrb[0].mxu0
  %v759 = vadd.f32 %v670, %v758
  %v760 = vpop.f32.mrb[0].mxu0
  %v761 = vadd.f32 %v672, %v760
  %762 = vmatprep.mubr.f32.mxu0 %v26
  %763 = vmatmul.mubr.f32.gmra.mrb[0].mxu0 %v25
  %v764 = vpop.f32.mrb[0].mxu0
  %v765 = vadd.f32 %v676, %v764
  %v766 = vpop.f32.mrb[0].mxu0
  %v767 = vadd.f32 %v678, %v766
  %768 = vmatprep.mubr.f32.mxu0 %v33
  %769 = vmatmul.mubr.f32.gmra.mrb[0].mxu0 %v32
  %v770 = vpop.f32.mrb[0].mxu0
  %v771 = vadd.f32 %v682, %v770
  %v772 = vpop.f32.mrb[0].mxu0
  %v773 = vadd.f32 %v684, %v772
  %774 = vmatprep.mubr.f32.mxu0 %v40
  %775 = vmatmul.mubr.f32.gmra.mrb[0].mxu0 %v39
  %v776 = vpop.f32.mrb[0].mxu0
  %v777 = vadd.f32 %v688, %v776
  %v778 = vpop.f32.mrb[0].mxu0
  %v779 = vadd.f32 %v690, %v778
  %780 = vdwg.mxu0
  %781 = vmatprep.subr.mxu0 %v427
  %782 = vmatpush1.msra.mxu0 %v426
  %783 = vmatprep.subr.mxu0 %v431
  %784 = vmatpush1.msra.mxu0 %v430
  %785 = vmatprep.subr.mxu0 %v435
  %786 = vmatpush1.msra.mxu0 %v434
  %787 = vmatprep.subr.mxu0 %v439
  %788 = vmatpush1.msra.mxu0 %v438
  %789 = vmatprep.subr.mxu0 %v443
  %790 = vmatpush1.msra.mxu0 %v442
  %791 = vmatprep.subr.mxu0 %v447
  %792 = vmatpush1.msra.mxu0 %v446
  %793 = vmatprep.subr.mxu0 %v451
  %794 = vmatpush1.msra.mxu0 %v450
  %795 = vmatprep.subr.mxu0 %v455
  %796 = vmatpush1.msra.mxu0 %v454
  %797 = vmatprep.subr.mxu0 %v459
  %798 = vmatpush1.msra.mxu0 %v458
  %799 = vmatprep.subr.mxu0 %v463
  %800 = vmatpush1.msra.mxu0 %v462
  %801 = vmatprep.subr.mxu0 %v467
  %802 = vmatpush1.msra.mxu0 %v466
  %803 = vmatprep.subr.mxu0 %v471
  %804 = vmatpush1.msra.mxu0 %v470
  %805 = vmatprep.subr.mxu0 %v475
  %806 = vmatpush1.msra.mxu0 %v474
  %807 = vmatprep.subr.mxu0 %v479
  %808 = vmatpush1.msra.mxu0 %v478
  %809 = vmatprep.subr.mxu0 %v483
  %810 = vmatpush1.msra.mxu0 %v482
  %811 = vmatprep.subr.mxu0 %v487
  %812 = vmatpush1.msra.mxu0 %v486
  %813 = vmatprep.subr.mxu0 0.0
  %814 = vmatpush1.msra.mxu0 0.0
  %815 = vmatprep.subr.mxu0 0.0
  %816 = vmatpush1.msra.mxu0 0.0
  %817 = vmatprep.subr.mxu0 0.0
  %818 = vmatpush1.msra.mxu0 0.0
  %819 = vmatprep.subr.mxu0 0.0
  %820 = vmatpush1.msra.mxu0 0.0
  %821 = vmatprep.subr.mxu0 0.0
  %822 = vmatpush1.msra.mxu0 0.0
  %823 = vmatprep.subr.mxu0 0.0
  %824 = vmatpush1.msra.mxu0 0.0
  %825 = vmatprep.subr.mxu0 0.0
  %826 = vmatpush1.msra.mxu0 0.0
  %827 = vmatprep.subr.mxu0 0.0
  %828 = vmatpush1.msra.mxu0 0.0
  %829 = vmatprep.subr.mxu0 0.0
  %830 = vmatpush1.msra.mxu0 0.0
  %831 = vmatprep.subr.mxu0 0.0
  %832 = vmatpush1.msra.mxu0 0.0
  %833 = vmatprep.subr.mxu0 0.0
  %834 = vmatpush1.msra.mxu0 0.0
  %835 = vmatprep.subr.mxu0 0.0
  %836 = vmatpush1.msra.mxu0 0.0
  %837 = vmatprep.subr.mxu0 0.0
  %838 = vmatpush1.msra.mxu0 0.0
  %839 = vmatprep.subr.mxu0 0.0
  %840 = vmatpush1.msra.mxu0 0.0
  %841 = vmatprep.subr.mxu0 0.0
  %842 = vmatpush1.msra.mxu0 0.0
  %843 = vmatprep.subr.mxu0 0.0
  %844 = vmatpush1.msra.mxu0 0.0
  %845 = vmatprep.mubr.f32.mxu0 0.0
  %846 = vmatmul.mubr.f32.gmra.mrb[0].mxu0 %v20
  %v847 = vpop.f32.mrb[0].mxu0
  %v848 = vadd.f32 %v759, %v847
  %v849 = vpop.f32.mrb[0].mxu0
  %v850 = vadd.f32 %v761, %v849
  %851 = vmatprep.mubr.f32.mxu0 0.0
  %852 = vmatmul.mubr.f32.gmra.mrb[0].mxu0 %v27
  %v853 = vpop.f32.mrb[0].mxu0
  %v854 = vadd.f32 %v765, %v853
  %v855 = vpop.f32.mrb[0].mxu0
  %v856 = vadd.f32 %v767, %v855
  %857 = vmatprep.mubr.f32.mxu0 0.0
  %858 = vmatmul.mubr.f32.gmra.mrb[0].mxu0 %v34
  %v859 = vpop.f32.mrb[0].mxu0
  %v860 = vadd.f32 %v771, %v859
  %v861 = vpop.f32.mrb[0].mxu0
  %v862 = vadd.f32 %v773, %v861
  %863 = vmatprep.mubr.f32.mxu0 0.0
  %864 = vmatmul.mubr.f32.gmra.mrb[0].mxu0 %v41
  %v865 = vpop.f32.mrb[0].mxu0
  %v866 = vadd.f32 %v777, %v865
  %v867 = vpop.f32.mrb[0].mxu0
  %v868 = vadd.f32 %v779, %v867
  %869 = vdwg.mxu0
  %870 = vmatprep.subr.mxu0 %v45
  %871 = vmatpush1.msra.mxu0 %v44
  %872 = vmatprep.subr.mxu0 %v49
  %873 = vmatpush1.msra.mxu0 %v48
  %874 = vmatprep.subr.mxu0 %v53
  %875 = vmatpush1.msra.mxu0 %v52
  %876 = vmatprep.subr.mxu0 %v57
  %877 = vmatpush1.msra.mxu0 %v56
  %878 = vmatprep.subr.mxu0 %v61
  %879 = vmatpush1.msra.mxu0 %v60
  %880 = vmatprep.subr.mxu0 %v65
  %881 = vmatpush1.msra.mxu0 %v64
  %882 = vmatprep.subr.mxu0 %v69
  %883 = vmatpush1.msra.mxu0 %v68
  %884 = vmatprep.subr.mxu0 %v73
  %885 = vmatpush1.msra.mxu0 %v72
  %886 = vmatprep.subr.mxu0 %v77
  %887 = vmatpush1.msra.mxu0 %v76
  %888 = vmatprep.subr.mxu0 %v81
  %889 = vmatpush1.msra.mxu0 %v80
  %890 = vmatprep.subr.mxu0 %v85
  %891 = vmatpush1.msra.mxu0 %v84
  %892 = vmatprep.subr.mxu0 %v89
  %893 = vmatpush1.msra.mxu0 %v88
  %894 = vmatprep.subr.mxu0 %v93
  %895 = vmatpush1.msra.mxu0 %v92
  %896 = vmatprep.subr.mxu0 %v97
  %897 = vmatpush1.msra.mxu0 %v96
  %898 = vmatprep.subr.mxu0 %v101
  %899 = vmatpush1.msra.mxu0 %v100
  %900 = vmatprep.subr.mxu0 %v105
  %901 = vmatpush1.msra.mxu0 %v104
  %902 = vmatprep.subr.mxu0 %v109
  %903 = vmatpush1.msra.mxu0 %v108
  %904 = vmatprep.subr.mxu0 %v113
  %905 = vmatpush1.msra.mxu0 %v112
  %906 = vmatprep.subr.mxu0 %v117
  %907 = vmatpush1.msra.mxu0 %v116
  %908 = vmatprep.subr.mxu0 %v121
  %909 = vmatpush1.msra.mxu0 %v120
  %910 = vmatprep.subr.mxu0 %v125
  %911 = vmatpush1.msra.mxu0 %v124
  %912 = vmatprep.subr.mxu0 %v129
  %913 = vmatpush1.msra.mxu0 %v128
  %914 = vmatprep.subr.mxu0 %v133
  %915 = vmatpush1.msra.mxu0 %v132
  %916 = vmatprep.subr.mxu0 %v137
  %917 = vmatpush1.msra.mxu0 %v136
  %918 = vmatprep.subr.mxu0 %v141
  %919 = vmatpush1.msra.mxu0 %v140
  %920 = vmatprep.subr.mxu0 %v145
  %921 = vmatpush1.msra.mxu0 %v144
  %922 = vmatprep.subr.mxu0 %v149
  %923 = vmatpush1.msra.mxu0 %v148
  %924 = vmatprep.subr.mxu0 %v153
  %925 = vmatpush1.msra.mxu0 %v152
  %926 = vmatprep.subr.mxu0 %v157
  %927 = vmatpush1.msra.mxu0 %v156
  %928 = vmatprep.subr.mxu0 %v161
  %929 = vmatpush1.msra.mxu0 %v160
  %930 = vmatprep.subr.mxu0 %v165
  %931 = vmatpush1.msra.mxu0 %v164
  %932 = vmatprep.subr.mxu0 %v169
  %933 = vmatpush1.msra.mxu0 %v168
  %934 = vmatprep.mubr.f32.mxu0 %v15
  %935 = vmatmul.mubr.f32.gmra.mrb[0].mxu0 %v14
  %v936 = vpop.f32.mrb[0].mxu0
  %v937 = vadd.f32 %v497, %v936
  %v938 = vpop.f32.mrb[0].mxu0
  %v939 = vadd.f32 %v497, %v938
  %940 = vmatprep.mubr.f32.mxu0 %v22
  %941 = vmatmul.mubr.f32.gmra.mrb[0].mxu0 %v21
  %v942 = vpop.f32.mrb[0].mxu0
  %v943 = vadd.f32 %v502, %v942
  %v944 = vpop.f32.mrb[0].mxu0
  %v945 = vadd.f32 %v502, %v944
  %946 = vmatprep.mubr.f32.mxu0 %v29
  %947 = vmatmul.mubr.f32.gmra.mrb[0].mxu0 %v28
  %v948 = vpop.f32.mrb[0].mxu0
  %v949 = vadd.f32 %v507, %v948
  %v950 = vpop.f32.mrb[0].mxu0
  %v951 = vadd.f32 %v507, %v950
  %952 = vmatprep.mubr.f32.mxu0 %v36
  %953 = vmatmul.mubr.f32.gmra.mrb[0].mxu0 %v35
  %v954 = vpop.f32.mrb[0].mxu0
  %v955 = vadd.f32 %v512, %v954
  %v956 = vpop.f32.mrb[0].mxu0
  %v957 = vadd.f32 %v512, %v956
  %958 = vdwg.mxu0
  %959 = vmatprep.subr.mxu0 %v173
  %960 = vmatpush1.msra.mxu0 %v172
  %961 = vmatprep.subr.mxu0 %v177
  %962 = vmatpush1.msra.mxu0 %v176
  %963 = vmatprep.subr.mxu0 %v181
  %964 = vmatpush1.msra.mxu0 %v180
  %965 = vmatprep.subr.mxu0 %v185
  %966 = vmatpush1.msra.mxu0 %v184
  %967 = vmatprep.subr.mxu0 %v189
  %968 = vmatpush1.msra.mxu0 %v188
  %969 = vmatprep.subr.mxu0 %v193
  %970 = vmatpush1.msra.mxu0 %v192
  %971 = vmatprep.subr.mxu0 %v197
  %972 = vmatpush1.msra.mxu0 %v196
  %973 = vmatprep.subr.mxu0 %v201
  %974 = vmatpush1.msra.mxu0 %v200
  %975 = vmatprep.subr.mxu0 %v205
  %976 = vmatpush1.msra.mxu0 %v204
  %977 = vmatprep.subr.mxu0 %v209
  %978 = vmatpush1.msra.mxu0 %v208
  %979 = vmatprep.subr.mxu0 %v213
  %980 = vmatpush1.msra.mxu0 %v212
  %981 = vmatprep.subr.mxu0 %v217
  %982 = vmatpush1.msra.mxu0 %v216
  %983 = vmatprep.subr.mxu0 %v221
  %984 = vmatpush1.msra.mxu0 %v220
  %985 = vmatprep.subr.mxu0 %v225
  %986 = vmatpush1.msra.mxu0 %v224
  %987 = vmatprep.subr.mxu0 %v229
  %988 = vmatpush1.msra.mxu0 %v228
  %989 = vmatprep.subr.mxu0 %v233
  %990 = vmatpush1.msra.mxu0 %v232
  %991 = vmatprep.subr.mxu0 %v237
  %992 = vmatpush1.msra.mxu0 %v236
  %993 = vmatprep.subr.mxu0 %v241
  %994 = vmatpush1.msra.mxu0 %v240
  %995 = vmatprep.subr.mxu0 %v245
  %996 = vmatpush1.msra.mxu0 %v244
  %997 = vmatprep.subr.mxu0 %v249
  %998 = vmatpush1.msra.mxu0 %v248
  %999 = vmatprep.subr.mxu0 %v253
  %1000 = vmatpush1.msra.mxu0 %v252
  %1001 = vmatprep.subr.mxu0 %v257
  %1002 = vmatpush1.msra.mxu0 %v256
  %1003 = vmatprep.subr.mxu0 %v261
  %1004 = vmatpush1.msra.mxu0 %v260
  %1005 = vmatprep.subr.mxu0 %v265
  %1006 = vmatpush1.msra.mxu0 %v264
  %1007 = vmatprep.subr.mxu0 %v269
  %1008 = vmatpush1.msra.mxu0 %v268
  %1009 = vmatprep.subr.mxu0 %v273
  %1010 = vmatpush1.msra.mxu0 %v272
  %1011 = vmatprep.subr.mxu0 %v277
  %1012 = vmatpush1.msra.mxu0 %v276
  %1013 = vmatprep.subr.mxu0 %v281
  %1014 = vmatpush1.msra.mxu0 %v280
  %1015 = vmatprep.subr.mxu0 %v285
  %1016 = vmatpush1.msra.mxu0 %v284
  %1017 = vmatprep.subr.mxu0 %v289
  %1018 = vmatpush1.msra.mxu0 %v288
  %1019 = vmatprep.subr.mxu0 %v293
  %1020 = vmatpush1.msra.mxu0 %v292
  %1021 = vmatprep.subr.mxu0 %v297
  %1022 = vmatpush1.msra.mxu0 %v296
  %1023 = vmatprep.mubr.f32.mxu0 %v17
  %1024 = vmatmul.mubr.f32.gmra.mrb[0].mxu0 %v16
  %v1025 = vpop.f32.mrb[0].mxu0
  %v1026 = vadd.f32 %v937, %v1025
  %v1027 = vpop.f32.mrb[0].mxu0
  %v1028 = vadd.f32 %v939, %v1027
  %1029 = vmatprep.mubr.f32.mxu0 %v24
  %1030 = vmatmul.mubr.f32.gmra.mrb[0].mxu0 %v23
  %v1031 = vpop.f32.mrb[0].mxu0
  %v1032 = vadd.f32 %v943, %v1031
  %v1033 = vpop.f32.mrb[0].mxu0
  %v1034 = vadd.f32 %v945, %v1033
  %1035 = vmatprep.mubr.f32.mxu0 %v31
  %1036 = vmatmul.mubr.f32.gmra.mrb[0].mxu0 %v30
  %v1037 = vpop.f32.mrb[0].mxu0
  %v1038 = vadd.f32 %v949, %v1037
  %v1039 = vpop.f32.mrb[0].mxu0
  %v1040 = vadd.f32 %v951, %v1039
  %1041 = vmatprep.mubr.f32.mxu0 %v38
  %1042 = vmatmul.mubr.f32.gmra.mrb[0].mxu0 %v37
  %v1043 = vpop.f32.mrb[0].mxu0
  %v1044 = vadd.f32 %v955, %v1043
  %v1045 = vpop.f32.mrb[0].mxu0
  %v1046 = vadd.f32 %v957, %v1045
  %1047 = vdwg.mxu0
  %1048 = vmatprep.subr.mxu0 %v301
  %1049 = vmatpush1.msra.mxu0 %v300
  %1050 = vmatprep.subr.mxu0 %v305
  %1051 = vmatpush1.msra.mxu0 %v304
  %1052 = vmatprep.subr.mxu0 %v309
  %1053 = vmatpush1.msra.mxu0 %v308
  %1054 = vmatprep.subr.mxu0 %v313
  %1055 = vmatpush1.msra.mxu0 %v312
  %1056 = vmatprep.subr.mxu0 %v317
  %1057 = vmatpush1.msra.mxu0 %v316
  %1058 = vmatprep.subr.mxu0 %v321
  %1059 = vmatpush1.msra.mxu0 %v320
  %1060 = vmatprep.subr.mxu0 %v325
  %1061 = vmatpush1.msra.mxu0 %v324
  %1062 = vmatprep.subr.mxu0 %v329
  %1063 = vmatpush1.msra.mxu0 %v328
  %1064 = vmatprep.subr.mxu0 %v333
  %1065 = vmatpush1.msra.mxu0 %v332
  %1066 = vmatprep.subr.mxu0 %v337
  %1067 = vmatpush1.msra.mxu0 %v336
  %1068 = vmatprep.subr.mxu0 %v341
  %1069 = vmatpush1.msra.mxu0 %v340
  %1070 = vmatprep.subr.mxu0 %v345
  %1071 = vmatpush1.msra.mxu0 %v344
  %1072 = vmatprep.subr.mxu0 %v349
  %1073 = vmatpush1.msra.mxu0 %v348
  %1074 = vmatprep.subr.mxu0 %v353
  %1075 = vmatpush1.msra.mxu0 %v352
  %1076 = vmatprep.subr.mxu0 %v357
  %1077 = vmatpush1.msra.mxu0 %v356
  %1078 = vmatprep.subr.mxu0 %v361
  %1079 = vmatpush1.msra.mxu0 %v360
  %1080 = vmatprep.subr.mxu0 %v365
  %1081 = vmatpush1.msra.mxu0 %v364
  %1082 = vmatprep.subr.mxu0 %v369
  %1083 = vmatpush1.msra.mxu0 %v368
  %1084 = vmatprep.subr.mxu0 %v373
  %1085 = vmatpush1.msra.mxu0 %v372
  %1086 = vmatprep.subr.mxu0 %v377
  %1087 = vmatpush1.msra.mxu0 %v376
  %1088 = vmatprep.subr.mxu0 %v381
  %1089 = vmatpush1.msra.mxu0 %v380
  %1090 = vmatprep.subr.mxu0 %v385
  %1091 = vmatpush1.msra.mxu0 %v384
  %1092 = vmatprep.subr.mxu0 %v389
  %1093 = vmatpush1.msra.mxu0 %v388
  %1094 = vmatprep.subr.mxu0 %v393
  %1095 = vmatpush1.msra.mxu0 %v392
  %1096 = vmatprep.subr.mxu0 %v397
  %1097 = vmatpush1.msra.mxu0 %v396
  %1098 = vmatprep.subr.mxu0 %v401
  %1099 = vmatpush1.msra.mxu0 %v400
  %1100 = vmatprep.subr.mxu0 %v405
  %1101 = vmatpush1.msra.mxu0 %v404
  %1102 = vmatprep.subr.mxu0 %v409
  %1103 = vmatpush1.msra.mxu0 %v408
  %1104 = vmatprep.subr.mxu0 %v413
  %1105 = vmatpush1.msra.mxu0 %v412
  %1106 = vmatprep.subr.mxu0 %v417
  %1107 = vmatpush1.msra.mxu0 %v416
  %1108 = vmatprep.subr.mxu0 %v421
  %1109 = vmatpush1.msra.mxu0 %v420
  %1110 = vmatprep.subr.mxu0 %v425
  %1111 = vmatpush1.msra.mxu0 %v424
  %1112 = vmatprep.mubr.f32.mxu0 %v19
  %1113 = vmatmul.mubr.f32.gmra.mrb[0].mxu0 %v18
  %v1114 = vpop.f32.mrb[0].mxu0
  %v1115 = vadd.f32 %v1026, %v1114
  %v1116 = vpop.f32.mrb[0].mxu0
  %v1117 = vadd.f32 %v1028, %v1116
  %1118 = vmatprep.mubr.f32.mxu0 %v26
  %1119 = vmatmul.mubr.f32.gmra.mrb[0].mxu0 %v25
  %v1120 = vpop.f32.mrb[0].mxu0
  %v1121 = vadd.f32 %v1032, %v1120
  %v1122 = vpop.f32.mrb[0].mxu0
  %v1123 = vadd.f32 %v1034, %v1122
  %1124 = vmatprep.mubr.f32.mxu0 %v33
  %1125 = vmatmul.mubr.f32.gmra.mrb[0].mxu0 %v32
  %v1126 = vpop.f32.mrb[0].mxu0
  %v1127 = vadd.f32 %v1038, %v1126
  %v1128 = vpop.f32.mrb[0].mxu0
  %v1129 = vadd.f32 %v1040, %v1128
  %1130 = vmatprep.mubr.f32.mxu0 %v40
  %1131 = vmatmul.mubr.f32.gmra.mrb[0].mxu0 %v39
  %v1132 = vpop.f32.mrb[0].mxu0
  %v1133 = vadd.f32 %v1044, %v1132
  %v1134 = vpop.f32.mrb[0].mxu0
  %v1135 = vadd.f32 %v1046, %v1134
  %1136 = vdwg.mxu0
  %1137 = vmatprep.subr.mxu0 %v429
  %1138 = vmatpush1.msra.mxu0 %v428
  %1139 = vmatprep.subr.mxu0 %v433
  %1140 = vmatpush1.msra.mxu0 %v432
  %1141 = vmatprep.subr.mxu0 %v437
  %1142 = vmatpush1.msra.mxu0 %v436
  %1143 = vmatprep.subr.mxu0 %v441
  %1144 = vmatpush1.msra.mxu0 %v440
  %1145 = vmatprep.subr.mxu0 %v445
  %1146 = vmatpush1.msra.mxu0 %v444
  %1147 = vmatprep.subr.mxu0 %v449
  %1148 = vmatpush1.msra.mxu0 %v448
  %1149 = vmatprep.subr.mxu0 %v453
  %1150 = vmatpush1.msra.mxu0 %v452
  %1151 = vmatprep.subr.mxu0 %v457
  %1152 = vmatpush1.msra.mxu0 %v456
  %1153 = vmatprep.subr.mxu0 %v461
  %1154 = vmatpush1.msra.mxu0 %v460
  %1155 = vmatprep.subr.mxu0 %v465
  %1156 = vmatpush1.msra.mxu0 %v464
  %1157 = vmatprep.subr.mxu0 %v469
  %1158 = vmatpush1.msra.mxu0 %v468
  %1159 = vmatprep.subr.mxu0 %v473
  %1160 = vmatpush1.msra.mxu0 %v472
  %1161 = vmatprep.subr.mxu0 %v477
  %1162 = vmatpush1.msra.mxu0 %v476
  %1163 = vmatprep.subr.mxu0 %v481
  %1164 = vmatpush1.msra.mxu0 %v480
  %1165 = vmatprep.subr.mxu0 %v485
  %1166 = vmatpush1.msra.mxu0 %v484
  %1167 = vmatprep.subr.mxu0 %v489
  %1168 = vmatpush1.msra.mxu0 %v488
  %1169 = vmatprep.subr.mxu0 0.0
  %1170 = vmatpush1.msra.mxu0 0.0
  %1171 = vmatprep.subr.mxu0 0.0
  %1172 = vmatpush1.msra.mxu0 0.0
  %1173 = vmatprep.subr.mxu0 0.0
  %1174 = vmatpush1.msra.mxu0 0.0
  %1175 = vmatprep.subr.mxu0 0.0
  %1176 = vmatpush1.msra.mxu0 0.0
  %1177 = vmatprep.subr.mxu0 0.0
  %1178 = vmatpush1.msra.mxu0 0.0
  %1179 = vmatprep.subr.mxu0 0.0
  %1180 = vmatpush1.msra.mxu0 0.0
  %1181 = vmatprep.subr.mxu0 0.0
  %1182 = vmatpush1.msra.mxu0 0.0
  %1183 = vmatprep.subr.mxu0 0.0
  %1184 = vmatpush1.msra.mxu0 0.0
  %1185 = vmatprep.subr.mxu0 0.0
  %1186 = vmatpush1.msra.mxu0 0.0
  %1187 = vmatprep.subr.mxu0 0.0
  %1188 = vmatpush1.msra.mxu0 0.0
  %1189 = vmatprep.subr.mxu0 0.0
  %1190 = vmatpush1.msra.mxu0 0.0
  %1191 = vmatprep.subr.mxu0 0.0
  %1192 = vmatpush1.msra.mxu0 0.0
  %1193 = vmatprep.subr.mxu0 0.0
  %1194 = vmatpush1.msra.mxu0 0.0
  %1195 = vmatprep.subr.mxu0 0.0
  %1196 = vmatpush1.msra.mxu0 0.0
  %1197 = vmatprep.subr.mxu0 0.0
  %1198 = vmatpush1.msra.mxu0 0.0
  %1199 = vmatprep.subr.mxu0 0.0
  %1200 = vmatpush1.msra.mxu0 0.0
  %1201 = vmatprep.mubr.f32.mxu0 0.0
  %1202 = vmatmul.mubr.f32.gmra.mrb[0].mxu0 %v20
  %v1203 = vpop.f32.mrb[0].mxu0
  %v1204 = vadd.f32 %v1115, %v1203
  %v1205 = vpop.f32.mrb[0].mxu0
  %v1206 = vadd.f32 %v1117, %v1205
  %1207 = vmatprep.mubr.f32.mxu0 0.0
  %1208 = vmatmul.mubr.f32.gmra.mrb[0].mxu0 %v27
  %v1209 = vpop.f32.mrb[0].mxu0
  %v1210 = vadd.f32 %v1121, %v1209
  %v1211 = vpop.f32.mrb[0].mxu0
  %v1212 = vadd.f32 %v1123, %v1211
  %1213 = vmatprep.mubr.f32.mxu0 0.0
  %1214 = vmatmul.mubr.f32.gmra.mrb[0].mxu0 %v34
  %v1215 = vpop.f32.mrb[0].mxu0
  %v1216 = vadd.f32 %v1127, %v1215
  %v1217 = vpop.f32.mrb[0].mxu0
  %v1218 = vadd.f32 %v1129, %v1217
  %1219 = vmatprep.mubr.f32.mxu0 0.0
  %1220 = vmatmul.mubr.f32.gmra.mrb[0].mxu0 %v41
  %v1221 = vpop.f32.mrb[0].mxu0
  %v1222 = vadd.f32 %v1133, %v1221
  %v1223 = vpop.f32.mrb[0].mxu0
  %v1224 = vadd.f32 %v1135, %v1223
  %1225 = vdwg.mxu0
  %v1226 = vmax.f32 %v848, 0.0
  %v1227 = vmax.f32 %v850, 0.0
  %v1228 = vmax.f32 %v1204, 0.0
  %v1229 = vmax.f32 %v1206, 0.0
  %v1230 = vmax.f32 %v854, 0.0
  %v1231 = vmax.f32 %v856, 0.0
  %v1232 = vmax.f32 %v1210, 0.0
  %v1233 = vmax.f32 %v1212, 0.0
  %v1234 = vmax.f32 %v860, 0.0
  %v1235 = vmax.f32 %v862, 0.0
  %v1236 = vmax.f32 %v1216, 0.0
  %v1237 = vmax.f32 %v1218, 0.0
  %v1238 = vmax.f32 %v866, 0.0
  %v1239 = vmax.f32 %v868, 0.0
  %v1240 = vmax.f32 %v1222, 0.0
  %v1241 = vmax.f32 %v1224, 0.0
  %1242 = vst [vmem:[%s3] sm:$0xff] %v1226
  %1243 = vst [vmem:[%s3 + $0x8] sm:$0xff] %v1227
  %1244 = vst [vmem:[%s3 + $0x10] sm:$0xff] %v1228
  %1245 = vst [vmem:[%s3 + $0x18] sm:$0xff] %v1229
  %1246 = vst [vmem:[%s3 + $0x20] sm:$0xff] %v1230
  %1247 = vst [vmem:[%s3 + $0x28] sm:$0xff] %v1231
  %1248 = vst [vmem:[%s3 + $0x30] sm:$0xff] %v1232
  %1249 = vst [vmem:[%s3 + $0x38] sm:$0xff] %v1233
  %1250 = vst [vmem:[%s3 + $0x40] sm:$0xff] %v1234
  %1251 = vst [vmem:[%s3 + $0x48] sm:$0xff] %v1235
  %1252 = vst [vmem:[%s3 + $0x50] sm:$0xff] %v1236
  %1253 = vst [vmem:[%s3 + $0x58] sm:$0xff] %v1237
  %1254 = vst [vmem:[%s3 + $0x60] sm:$0xff] %v1238
  %1255 = vst [vmem:[%s3 + $0x68] sm:$0xff] %v1239
  %1256 = vst [vmem:[%s3 + $0x70] sm:$0xff] %v1240
  %1257 = vst [vmem:[%s3 + $0x78] sm:$0xff] %v1241
  // Predicated region
  $region14: #{enc_r_forward.4} parent=0 // pred_check
    _
  $region15: #{enc_r_forward.4} parent=0 // pred_check_branch
    %1259 = sbr.rel (0) target = $region17
  $region16: #{enc_r_forward.4} parent=0 // pred_region
    _
  $region17: #{enc_r_forward.4} parent=0 // pred_fallthru
    _
  // Predicated region
  $region18: #{enc_r_forward.4} parent=0 // pred_check
    _
  $region19: #{enc_r_forward.4} parent=0 // pred_check_branch
    %1261 = sbr.rel (0) target = $region21
  $region20: #{enc_r_forward.4} parent=0 // pred_region
    _
  $region21: #{enc_r_forward.4} parent=0 // pred_fallthru
    _

// kernel: enc_r_forward.5
$region0: #{enc_r_forward.5}
  #allocation0 [shape = 'u32[]', space=smem, size = 0x4, offset = 0x4, fixed_abs, tag = 'smem constant byte address 0x4 - core index']
  #allocation1 [shape = 'u32[144,128]{1,0:T(1,128)}', space=vmem, size = 0x12000, scoped, tag = 'internal scratch']
  %s0 = inlined_call_operand.vmem [shape: f32[896,128], index: 0, kind: input, shape index: {}]
  %s1 = inlined_call_operand.vmem [shape: f32[32,896], index: 1, kind: input, shape index: {}]
  %s2 = inlined_call_operand.vmem [shape: f32[32,1], index: 2, kind: input, shape index: {}]
  %s3 = inlined_call_operand.vmem [shape: f32[8,96], index: 3, kind: input, shape index: {}]
  %s4 = inlined_call_operand.vmem [shape: f32[8,1], index: 4, kind: input, shape index: {}]
  %s5 = inlined_call_operand.vmem [shape: f32[2,128], index: 5, kind: input, shape index: {}]
  %s6 = inlined_call_operand.vmem [shape: f32[8,128], index: 6, kind: output, shape index: {}]
  %s7 = sld [smem:[#allocation0]]
  $region34: #{enc_r_forward.5} parent=0
    _
  %s9 = ssub.s32 1, %s7
  %s10 = scalar_select 0, %s9, %s7
  // Predicated region
  $region2: #{enc_r_forward.5} parent=0 // pred_check
    _
  $region3: #{enc_r_forward.5} parent=0 // pred_check_branch
    %12 = sbr.rel (0) target = $region5
  $region4: #{enc_r_forward.5} parent=0 // pred_region
    _
  $region5: #{enc_r_forward.5} parent=0 // pred_fallthru
    _
  // Predicated region
  $region6: #{enc_r_forward.5} parent=0 // pred_check
    _
  $region7: #{enc_r_forward.5} parent=0 // pred_check_branch
    %14 = sbr.rel (0) target = $region9
  $region8: #{enc_r_forward.5} parent=0 // pred_region
    _
  $region9: #{enc_r_forward.5} parent=0 // pred_fallthru
    _
  // Predicated region
  $region10: #{enc_r_forward.5} parent=0 // pred_check
    _
  $region11: #{enc_r_forward.5} parent=0 // pred_check_branch
    %16 = sbr.rel (0) target = $region13
  $region12: #{enc_r_forward.5} parent=0 // pred_region
    _
  $region13: #{enc_r_forward.5} parent=0 // pred_fallthru
    _
  // Predicated region
  $region14: #{enc_r_forward.5} parent=0 // pred_check
    _
  $region15: #{enc_r_forward.5} parent=0 // pred_check_branch
    %18 = sbr.rel (0) target = $region17
  $region16: #{enc_r_forward.5} parent=0 // pred_region
    _
  $region17: #{enc_r_forward.5} parent=0 // pred_fallthru
    _
  // Predicated region
  $region18: #{enc_r_forward.5} parent=0 // pred_check
    _
  $region19: #{enc_r_forward.5} parent=0 // pred_check_branch
    %20 = sbr.rel (0) target = $region21
  $region20: #{enc_r_forward.5} parent=0 // pred_region
    _
  $region21: #{enc_r_forward.5} parent=0 // pred_fallthru
    _
  // Predicated region
  $region22: #{enc_r_forward.5} parent=0 // pred_check
    _
  $region23: #{enc_r_forward.5} parent=0 // pred_check_branch
    %22 = sbr.rel (0) target = $region25
  $region24: #{enc_r_forward.5} parent=0 // pred_region
    _
  $region25: #{enc_r_forward.5} parent=0 // pred_fallthru
    _
  %v23 = vld [vmem:[%s1] sm:$0xff]
  %v24 = vld [vmem:[%s1 + $0x8] sm:$0xff]
  %v25 = vld [vmem:[%s1 + $0x10] sm:$0xff]
  %v26 = vld [vmem:[%s1 + $0x18] sm:$0xff]
  %v27 = vld [vmem:[%s1 + $0x20] sm:$0xff]
  %v28 = vld [vmem:[%s1 + $0x28] sm:$0xff]
  %v29 = vld [vmem:[%s1 + $0x30] sm:$0xff]
  %v30 = vld [vmem:[%s1 + $0x38] sm:$0xff]
  %v31 = vld [vmem:[%s1 + $0x40] sm:$0xff]
  %v32 = vld [vmem:[%s1 + $0x48] sm:$0xff]
  %v33 = vld [vmem:[%s1 + $0x50] sm:$0xff]
  %v34 = vld [vmem:[%s1 + $0x58] sm:$0xff]
  %v35 = vld [vmem:[%s1 + $0x60] sm:$0xff]
  %v36 = vld [vmem:[%s1 + $0x68] sm:$0xff]
  %v37 = vld [vmem:[%s1 + $0x70] sm:$0xff]
  %v38 = vld [vmem:[%s1 + $0x78] sm:$0xff]
  %v39 = vld [vmem:[%s1 + $0x80] sm:$0xff]
  %v40 = vld [vmem:[%s1 + $0x88] sm:$0xff]
  %v41 = vld [vmem:[%s1 + $0x90] sm:$0xff]
  %v42 = vld [vmem:[%s1 + $0x98] sm:$0xff]
  %v43 = vld [vmem:[%s1 + $0xa0] sm:$0xff]
  %v44 = vld [vmem:[%s1 + $0xa8] sm:$0xff]
  %v45 = vld [vmem:[%s1 + $0xb0] sm:$0xff]
  %v46 = vld [vmem:[%s1 + $0xb8] sm:$0xff]
  %v47 = vld [vmem:[%s1 + $0xc0] sm:$0xff]
  %v48 = vld [vmem:[%s1 + $0xc8] sm:$0xff]
  %v49 = vld [vmem:[%s1 + $0xd0] sm:$0xff]
  %v50 = vld [vmem:[%s1 + $0xd8] sm:$0xff]
  %v51 = vld [vmem:[%s0] sm:$0xff]
  %v52 = vld [vmem:[%s0 + $0x8] sm:$0xff]
  %v53 = vld [vmem:[%s0 + $0x10] sm:$0xff]
  %v54 = vld [vmem:[%s0 + $0x18] sm:$0xff]
  %v55 = vld [vmem:[%s0 + $0x20] sm:$0xff]
  %v56 = vld [vmem:[%s0 + $0x28] sm:$0xff]
  %v57 = vld [vmem:[%s0 + $0x30] sm:$0xff]
  %v58 = vld [vmem:[%s0 + $0x38] sm:$0xff]
  %v59 = vld [vmem:[%s0 + $0x40] sm:$0xff]
  %v60 = vld [vmem:[%s0 + $0x48] sm:$0xff]
  %v61 = vld [vmem:[%s0 + $0x50] sm:$0xff]
  %v62 = vld [vmem:[%s0 + $0x58] sm:$0xff]
  %v63 = vld [vmem:[%s0 + $0x60] sm:$0xff]
  %v64 = vld [vmem:[%s0 + $0x68] sm:$0xff]
  %v65 = vld [vmem:[%s0 + $0x70] sm:$0xff]
  %v66 = vld [vmem:[%s0 + $0x78] sm:$0xff]
  %v67 = vld [vmem:[%s0 + $0x80] sm:$0xff]
  %v68 = vld [vmem:[%s0 + $0x88] sm:$0xff]
  %v69 = vld [vmem:[%s0 + $0x90] sm:$0xff]
  %v70 = vld [vmem:[%s0 + $0x98] sm:$0xff]
  %v71 = vld [vmem:[%s0 + $0xa0] sm:$0xff]
  %v72 = vld [vmem:[%s0 + $0xa8] sm:$0xff]
  %v73 = vld [vmem:[%s0 + $0xb0] sm:$0xff]
  %v74 = vld [vmem:[%s0 + $0xb8] sm:$0xff]
  %v75 = vld [vmem:[%s0 + $0xc0] sm:$0xff]
  %v76 = vld [vmem:[%s0 + $0xc8] sm:$0xff]
  %v77 = vld [vmem:[%s0 + $0xd0] sm:$0xff]
  %v78 = vld [vmem:[%s0 + $0xd8] sm:$0xff]
  %v79 = vld [vmem:[%s0 + $0xe0] sm:$0xff]
  %v80 = vld [vmem:[%s0 + $0xe8] sm:$0xff]
  %v81 = vld [vmem:[%s0 + $0xf0] sm:$0xff]
  %v82 = vld [vmem:[%s0 + $0xf8] sm:$0xff]
  %v83 = vld [vmem:[%s0 + $0x100] sm:$0xff]
  %v84 = vld [vmem:[%s0 + $0x108] sm:$0xff]
  %v85 = vld [vmem:[%s0 + $0x110] sm:$0xff]
  %v86 = vld [vmem:[%s0 + $0x118] sm:$0xff]
  %v87 = vld [vmem:[%s0 + $0x120] sm:$0xff]
  %v88 = vld [vmem:[%s0 + $0x128] sm:$0xff]
  %v89 = vld [vmem:[%s0 + $0x130] sm:$0xff]
  %v90 = vld [vmem:[%s0 + $0x138] sm:$0xff]
  %v91 = vld [vmem:[%s0 + $0x140] sm:$0xff]
  %v92 = vld [vmem:[%s0 + $0x148] sm:$0xff]
  %v93 = vld [vmem:[%s0 + $0x150] sm:$0xff]
  %v94 = vld [vmem:[%s0 + $0x158] sm:$0xff]
  %v95 = vld [vmem:[%s0 + $0x160] sm:$0xff]
  %v96 = vld [vmem:[%s0 + $0x168] sm:$0xff]
  %v97 = vld [vmem:[%s0 + $0x170] sm:$0xff]
  %v98 = vld [vmem:[%s0 + $0x178] sm:$0xff]
  %v99 = vld [vmem:[%s0 + $0x180] sm:$0xff]
  %v100 = vld [vmem:[%s0 + $0x188] sm:$0xff]
  %v101 = vld [vmem:[%s0 + $0x190] sm:$0xff]
  %v102 = vld [vmem:[%s0 + $0x198] sm:$0xff]
  %v103 = vld [vmem:[%s0 + $0x1a0] sm:$0xff]
  %v104 = vld [vmem:[%s0 + $0x1a8] sm:$0xff]
  %v105 = vld [vmem:[%s0 + $0x1b0] sm:$0xff]
  %v106 = vld [vmem:[%s0 + $0x1b8] sm:$0xff]
  %v107 = vld [vmem:[%s0 + $0x1c0] sm:$0xff]
  %v108 = vld [vmem:[%s0 + $0x1c8] sm:$0xff]
  %v109 = vld [vmem:[%s0 + $0x1d0] sm:$0xff]
  %v110 = vld [vmem:[%s0 + $0x1d8] sm:$0xff]
  %v111 = vld [vmem:[%s0 + $0x1e0] sm:$0xff]
  %v112 = vld [vmem:[%s0 + $0x1e8] sm:$0xff]
  %v113 = vld [vmem:[%s0 + $0x1f0] sm:$0xff]
  %v114 = vld [vmem:[%s0 + $0x1f8] sm:$0xff]
  %v115 = vld [vmem:[%s0 + $0x200] sm:$0xff]
  %v116 = vld [vmem:[%s0 + $0x208] sm:$0xff]
  %v117 = vld [vmem:[%s0 + $0x210] sm:$0xff]
  %v118 = vld [vmem:[%s0 + $0x218] sm:$0xff]
  %v119 = vld [vmem:[%s0 + $0x220] sm:$0xff]
  %v120 = vld [vmem:[%s0 + $0x228] sm:$0xff]
  %v121 = vld [vmem:[%s0 + $0x230] sm:$0xff]
  %v122 = vld [vmem:[%s0 + $0x238] sm:$0xff]
  %v123 = vld [vmem:[%s0 + $0x240] sm:$0xff]
  %v124 = vld [vmem:[%s0 + $0x248] sm:$0xff]
  %v125 = vld [vmem:[%s0 + $0x250] sm:$0xff]
  %v126 = vld [vmem:[%s0 + $0x258] sm:$0xff]
  %v127 = vld [vmem:[%s0 + $0x260] sm:$0xff]
  %v128 = vld [vmem:[%s0 + $0x268] sm:$0xff]
  %v129 = vld [vmem:[%s0 + $0x270] sm:$0xff]
  %v130 = vld [vmem:[%s0 + $0x278] sm:$0xff]
  %v131 = vld [vmem:[%s0 + $0x280] sm:$0xff]
  %v132 = vld [vmem:[%s0 + $0x288] sm:$0xff]
  %v133 = vld [vmem:[%s0 + $0x290] sm:$0xff]
  %v134 = vld [vmem:[%s0 + $0x298] sm:$0xff]
  %v135 = vld [vmem:[%s0 + $0x2a0] sm:$0xff]
  %v136 = vld [vmem:[%s0 + $0x2a8] sm:$0xff]
  %v137 = vld [vmem:[%s0 + $0x2b0] sm:$0xff]
  %v138 = vld [vmem:[%s0 + $0x2b8] sm:$0xff]
  %v139 = vld [vmem:[%s0 + $0x2c0] sm:$0xff]
  %v140 = vld [vmem:[%s0 + $0x2c8] sm:$0xff]
  %v141 = vld [vmem:[%s0 + $0x2d0] sm:$0xff]
  %v142 = vld [vmem:[%s0 + $0x2d8] sm:$0xff]
  %v143 = vld [vmem:[%s0 + $0x2e0] sm:$0xff]
  %v144 = vld [vmem:[%s0 + $0x2e8] sm:$0xff]
  %v145 = vld [vmem:[%s0 + $0x2f0] sm:$0xff]
  %v146 = vld [vmem:[%s0 + $0x2f8] sm:$0xff]
  %v147 = vld [vmem:[%s0 + $0x300] sm:$0xff]
  %v148 = vld [vmem:[%s0 + $0x308] sm:$0xff]
  %v149 = vld [vmem:[%s0 + $0x310] sm:$0xff]
  %v150 = vld [vmem:[%s0 + $0x318] sm:$0xff]
  %v151 = vld [vmem:[%s0 + $0x320] sm:$0xff]
  %v152 = vld [vmem:[%s0 + $0x328] sm:$0xff]
  %v153 = vld [vmem:[%s0 + $0x330] sm:$0xff]
  %v154 = vld [vmem:[%s0 + $0x338] sm:$0xff]
  %v155 = vld [vmem:[%s0 + $0x340] sm:$0xff]
  %v156 = vld [vmem:[%s0 + $0x348] sm:$0xff]
  %v157 = vld [vmem:[%s0 + $0x350] sm:$0xff]
  %v158 = vld [vmem:[%s0 + $0x358] sm:$0xff]
  %v159 = vld [vmem:[%s0 + $0x360] sm:$0xff]
  %v160 = vld [vmem:[%s0 + $0x368] sm:$0xff]
  %v161 = vld [vmem:[%s0 + $0x370] sm:$0xff]
  %v162 = vld [vmem:[%s0 + $0x378] sm:$0xff]
  %v163 = vld [vmem:[%s2] sm:$0xff]
  %v164 = vld [vmem:[%s2 + $0x8] sm:$0xff]
  %v165 = vld [vmem:[%s2 + $0x10] sm:$0xff]
  %v166 = vld [vmem:[%s2 + $0x18] sm:$0xff]
  %168 = vset.pattern.permute.xlu0 0
  %169 = vperm.xlu0 %168, %v163
  %v170 = vpop.permute.xlu0 %169
  %173 = vset.pattern.permute.xlu0 0
  %174 = vperm.xlu0 %173, %v164
  %v175 = vpop.permute.xlu0 %174
  %178 = vset.pattern.permute.xlu0 0
  %179 = vperm.xlu0 %178, %v165
  %v180 = vpop.permute.xlu0 %179
  %183 = vset.pattern.permute.xlu0 0
  %184 = vperm.xlu0 %183, %v166
  %v185 = vpop.permute.xlu0 %184
  %187 = vmatprep.subr.mxu0 0.0
  %188 = vmatpush1.msra.mxu0 %v51
  %189 = vmatprep.subr.mxu0 0.0
  %190 = vmatpush1.msra.mxu0 %v52
  %191 = vmatprep.subr.mxu0 0.0
  %192 = vmatpush1.msra.mxu0 %v53
  %193 = vmatprep.subr.mxu0 0.0
  %194 = vmatpush1.msra.mxu0 %v54
  %195 = vmatprep.subr.mxu0 0.0
  %196 = vmatpush1.msra.mxu0 %v55
  %197 = vmatprep.subr.mxu0 0.0
  %198 = vmatpush1.msra.mxu0 %v56
  %199 = vmatprep.subr.mxu0 0.0
  %200 = vmatpush1.msra.mxu0 %v57
  %201 = vmatprep.subr.mxu0 0.0
  %202 = vmatpush1.msra.mxu0 %v58
  %203 = vmatprep.subr.mxu0 0.0
  %204 = vmatpush1.msra.mxu0 %v59
  %205 = vmatprep.subr.mxu0 0.0
  %206 = vmatpush1.msra.mxu0 %v60
  %207 = vmatprep.subr.mxu0 0.0
  %208 = vmatpush1.msra.mxu0 %v61
  %209 = vmatprep.subr.mxu0 0.0
  %210 = vmatpush1.msra.mxu0 %v62
  %211 = vmatprep.subr.mxu0 0.0
  %212 = vmatpush1.msra.mxu0 %v63
  %213 = vmatprep.subr.mxu0 0.0
  %214 = vmatpush1.msra.mxu0 %v64
  %215 = vmatprep.subr.mxu0 0.0
  %216 = vmatpush1.msra.mxu0 %v65
  %217 = vmatprep.subr.mxu0 0.0
  %218 = vmatpush1.msra.mxu0 %v66
  %219 = vmatprep.subr.mxu0 0.0
  %220 = vmatpush1.msra.mxu0 %v67
  %221 = vmatprep.subr.mxu0 0.0
  %222 = vmatpush1.msra.mxu0 %v68
  %223 = vmatprep.subr.mxu0 0.0
  %224 = vmatpush1.msra.mxu0 %v69
  %225 = vmatprep.subr.mxu0 0.0
  %226 = vmatpush1.msra.mxu0 %v70
  %227 = vmatprep.subr.mxu0 0.0
  %228 = vmatpush1.msra.mxu0 %v71
  %229 = vmatprep.subr.mxu0 0.0
  %230 = vmatpush1.msra.mxu0 %v72
  %231 = vmatprep.subr.mxu0 0.0
  %232 = vmatpush1.msra.mxu0 %v73
  %233 = vmatprep.subr.mxu0 0.0
  %234 = vmatpush1.msra.mxu0 %v74
  %235 = vmatprep.subr.mxu0 0.0
  %236 = vmatpush1.msra.mxu0 %v75
  %237 = vmatprep.subr.mxu0 0.0
  %238 = vmatpush1.msra.mxu0 %v76
  %239 = vmatprep.subr.mxu0 0.0
  %240 = vmatpush1.msra.mxu0 %v77
  %241 = vmatprep.subr.mxu0 0.0
  %242 = vmatpush1.msra.mxu0 %v78
  %243 = vmatprep.subr.mxu0 0.0
  %244 = vmatpush1.msra.mxu0 %v79
  %245 = vmatprep.subr.mxu0 0.0
  %246 = vmatpush1.msra.mxu0 %v80
  %247 = vmatprep.subr.mxu0 0.0
  %248 = vmatpush1.msra.mxu0 %v81
  %249 = vmatprep.subr.mxu0 0.0
  %250 = vmatpush1.msra.mxu0 %v82
  %251 = vmatprep.mubr.f32.mxu0 %v24
  %252 = vmatmul.mubr.f32.gmra.mrb[0].mxu0 %v23
  %v253 = vpop.f32.mrb[0].mxu0
  %v254 = vadd.f32 %v170, %v253
  %v255 = vpop.f32.mrb[0].mxu0
  %256 = vmatprep.mubr.f32.mxu0 %v31
  %257 = vmatmul.mubr.f32.gmra.mrb[0].mxu0 %v30
  %v258 = vpop.f32.mrb[0].mxu0
  %v259 = vadd.f32 %v175, %v258
  %v260 = vpop.f32.mrb[0].mxu0
  %261 = vmatprep.mubr.f32.mxu0 %v38
  %262 = vmatmul.mubr.f32.gmra.mrb[0].mxu0 %v37
  %v263 = vpop.f32.mrb[0].mxu0
  %v264 = vadd.f32 %v180, %v263
  %v265 = vpop.f32.mrb[0].mxu0
  %266 = vmatprep.mubr.f32.mxu0 %v45
  %267 = vmatmul.mubr.f32.gmra.mrb[0].mxu0 %v44
  %v268 = vpop.f32.mrb[0].mxu0
  %v269 = vadd.f32 %v185, %v268
  %v270 = vpop.f32.mrb[0].mxu0
  %271 = vdwg.mxu0
  %272 = vmatprep.subr.mxu0 0.0
  %273 = vmatpush1.msra.mxu0 %v83
  %274 = vmatprep.subr.mxu0 0.0
  %275 = vmatpush1.msra.mxu0 %v84
  %276 = vmatprep.subr.mxu0 0.0
  %277 = vmatpush1.msra.mxu0 %v85
  %278 = vmatprep.subr.mxu0 0.0
  %279 = vmatpush1.msra.mxu0 %v86
  %280 = vmatprep.subr.mxu0 0.0
  %281 = vmatpush1.msra.mxu0 %v87
  %282 = vmatprep.subr.mxu0 0.0
  %283 = vmatpush1.msra.mxu0 %v88
  %284 = vmatprep.subr.mxu0 0.0
  %285 = vmatpush1.msra.mxu0 %v89
  %286 = vmatprep.subr.mxu0 0.0
  %287 = vmatpush1.msra.mxu0 %v90
  %288 = vmatprep.subr.mxu0 0.0
  %289 = vmatpush1.msra.mxu0 %v91
  %290 = vmatprep.subr.mxu0 0.0
  %291 = vmatpush1.msra.mxu0 %v92
  %292 = vmatprep.subr.mxu0 0.0
  %293 = vmatpush1.msra.mxu0 %v93
  %294 = vmatprep.subr.mxu0 0.0
  %295 = vmatpush1.msra.mxu0 %v94
  %296 = vmatprep.subr.mxu0 0.0
  %297 = vmatpush1.msra.mxu0 %v95
  %298 = vmatprep.subr.mxu0 0.0
  %299 = vmatpush1.msra.mxu0 %v96
  %300 = vmatprep.subr.mxu0 0.0
  %301 = vmatpush1.msra.mxu0 %v97
  %302 = vmatprep.subr.mxu0 0.0
  %303 = vmatpush1.msra.mxu0 %v98
  %304 = vmatprep.subr.mxu0 0.0
  %305 = vmatpush1.msra.mxu0 %v99
  %306 = vmatprep.subr.mxu0 0.0
  %307 = vmatpush1.msra.mxu0 %v100
  %308 = vmatprep.subr.mxu0 0.0
  %309 = vmatpush1.msra.mxu0 %v101
  %310 = vmatprep.subr.mxu0 0.0
  %311 = vmatpush1.msra.mxu0 %v102
  %312 = vmatprep.subr.mxu0 0.0
  %313 = vmatpush1.msra.mxu0 %v103
  %314 = vmatprep.subr.mxu0 0.0
  %315 = vmatpush1.msra.mxu0 %v104
  %316 = vmatprep.subr.mxu0 0.0
  %317 = vmatpush1.msra.mxu0 %v105
  %318 = vmatprep.subr.mxu0 0.0
  %319 = vmatpush1.msra.mxu0 %v106
  %320 = vmatprep.subr.mxu0 0.0
  %321 = vmatpush1.msra.mxu0 %v107
  %322 = vmatprep.subr.mxu0 0.0
  %323 = vmatpush1.msra.mxu0 %v108
  %324 = vmatprep.subr.mxu0 0.0
  %325 = vmatpush1.msra.mxu0 %v109
  %326 = vmatprep.subr.mxu0 0.0
  %327 = vmatpush1.msra.mxu0 %v110
  %328 = vmatprep.subr.mxu0 0.0
  %329 = vmatpush1.msra.mxu0 %v111
  %330 = vmatprep.subr.mxu0 0.0
  %331 = vmatpush1.msra.mxu0 %v112
  %332 = vmatprep.subr.mxu0 0.0
  %333 = vmatpush1.msra.mxu0 %v113
  %334 = vmatprep.subr.mxu0 0.0
  %335 = vmatpush1.msra.mxu0 %v114
  %336 = vmatprep.mubr.f32.mxu0 %v26
  %337 = vmatmul.mubr.f32.gmra.mrb[0].mxu0 %v25
  %v338 = vpop.f32.mrb[0].mxu0
  %v339 = vadd.f32 %v254, %v338
  %v340 = vpop.f32.mrb[0].mxu0
  %341 = vmatprep.mubr.f32.mxu0 %v33
  %342 = vmatmul.mubr.f32.gmra.mrb[0].mxu0 %v32
  %v343 = vpop.f32.mrb[0].mxu0
  %v344 = vadd.f32 %v259, %v343
  %v345 = vpop.f32.mrb[0].mxu0
  %346 = vmatprep.mubr.f32.mxu0 %v40
  %347 = vmatmul.mubr.f32.gmra.mrb[0].mxu0 %v39
  %v348 = vpop.f32.mrb[0].mxu0
  %v349 = vadd.f32 %v264, %v348
  %v350 = vpop.f32.mrb[0].mxu0
  %351 = vmatprep.mubr.f32.mxu0 %v47
  %352 = vmatmul.mubr.f32.gmra.mrb[0].mxu0 %v46
  %v353 = vpop.f32.mrb[0].mxu0
  %v354 = vadd.f32 %v269, %v353
  %v355 = vpop.f32.mrb[0].mxu0
  %356 = vdwg.mxu0
  %357 = vmatprep.subr.mxu0 0.0
  %358 = vmatpush1.msra.mxu0 %v115
  %359 = vmatprep.subr.mxu0 0.0
  %360 = vmatpush1.msra.mxu0 %v116
  %361 = vmatprep.subr.mxu0 0.0
  %362 = vmatpush1.msra.mxu0 %v117
  %363 = vmatprep.subr.mxu0 0.0
  %364 = vmatpush1.msra.mxu0 %v118
  %365 = vmatprep.subr.mxu0 0.0
  %366 = vmatpush1.msra.mxu0 %v119
  %367 = vmatprep.subr.mxu0 0.0
  %368 = vmatpush1.msra.mxu0 %v120
  %369 = vmatprep.subr.mxu0 0.0
  %370 = vmatpush1.msra.mxu0 %v121
  %371 = vmatprep.subr.mxu0 0.0
  %372 = vmatpush1.msra.mxu0 %v122
  %373 = vmatprep.subr.mxu0 0.0
  %374 = vmatpush1.msra.mxu0 %v123
  %375 = vmatprep.subr.mxu0 0.0
  %376 = vmatpush1.msra.mxu0 %v124
  %377 = vmatprep.subr.mxu0 0.0
  %378 = vmatpush1.msra.mxu0 %v125
  %379 = vmatprep.subr.mxu0 0.0
  %380 = vmatpush1.msra.mxu0 %v126
  %381 = vmatprep.subr.mxu0 0.0
  %382 = vmatpush1.msra.mxu0 %v127
  %383 = vmatprep.subr.mxu0 0.0
  %384 = vmatpush1.msra.mxu0 %v128
  %385 = vmatprep.subr.mxu0 0.0
  %386 = vmatpush1.msra.mxu0 %v129
  %387 = vmatprep.subr.mxu0 0.0
  %388 = vmatpush1.msra.mxu0 %v130
  %389 = vmatprep.subr.mxu0 0.0
  %390 = vmatpush1.msra.mxu0 %v131
  %391 = vmatprep.subr.mxu0 0.0
  %392 = vmatpush1.msra.mxu0 %v132
  %393 = vmatprep.subr.mxu0 0.0
  %394 = vmatpush1.msra.mxu0 %v133
  %395 = vmatprep.subr.mxu0 0.0
  %396 = vmatpush1.msra.mxu0 %v134
  %397 = vmatprep.subr.mxu0 0.0
  %398 = vmatpush1.msra.mxu0 %v135
  %399 = vmatprep.subr.mxu0 0.0
  %400 = vmatpush1.msra.mxu0 %v136
  %401 = vmatprep.subr.mxu0 0.0
  %402 = vmatpush1.msra.mxu0 %v137
  %403 = vmatprep.subr.mxu0 0.0
  %404 = vmatpush1.msra.mxu0 %v138
  %405 = vmatprep.subr.mxu0 0.0
  %406 = vmatpush1.msra.mxu0 %v139
  %407 = vmatprep.subr.mxu0 0.0
  %408 = vmatpush1.msra.mxu0 %v140
  %409 = vmatprep.subr.mxu0 0.0
  %410 = vmatpush1.msra.mxu0 %v141
  %411 = vmatprep.subr.mxu0 0.0
  %412 = vmatpush1.msra.mxu0 %v142
  %413 = vmatprep.subr.mxu0 0.0
  %414 = vmatpush1.msra.mxu0 %v143
  %415 = vmatprep.subr.mxu0 0.0
  %416 = vmatpush1.msra.mxu0 %v144
  %417 = vmatprep.subr.mxu0 0.0
  %418 = vmatpush1.msra.mxu0 %v145
  %419 = vmatprep.subr.mxu0 0.0
  %420 = vmatpush1.msra.mxu0 %v146
  %421 = vmatprep.mubr.f32.mxu0 %v28
  %422 = vmatmul.mubr.f32.gmra.mrb[0].mxu0 %v27
  %v423 = vpop.f32.mrb[0].mxu0
  %v424 = vadd.f32 %v339, %v423
  %v425 = vpop.f32.mrb[0].mxu0
  %426 = vmatprep.mubr.f32.mxu0 %v35
  %427 = vmatmul.mubr.f32.gmra.mrb[0].mxu0 %v34
  %v428 = vpop.f32.mrb[0].mxu0
  %v429 = vadd.f32 %v344, %v428
  %v430 = vpop.f32.mrb[0].mxu0
  %431 = vmatprep.mubr.f32.mxu0 %v42
  %432 = vmatmul.mubr.f32.gmra.mrb[0].mxu0 %v41
  %v433 = vpop.f32.mrb[0].mxu0
  %v434 = vadd.f32 %v349, %v433
  %v435 = vpop.f32.mrb[0].mxu0
  %436 = vmatprep.mubr.f32.mxu0 %v49
  %437 = vmatmul.mubr.f32.gmra.mrb[0].mxu0 %v48
  %v438 = vpop.f32.mrb[0].mxu0
  %v439 = vadd.f32 %v354, %v438
  %v440 = vpop.f32.mrb[0].mxu0
  %441 = vdwg.mxu0
  %442 = vmatprep.subr.mxu0 0.0
  %443 = vmatpush1.msra.mxu0 %v147
  %444 = vmatprep.subr.mxu0 0.0
  %445 = vmatpush1.msra.mxu0 %v148
  %446 = vmatprep.subr.mxu0 0.0
  %447 = vmatpush1.msra.mxu0 %v149
  %448 = vmatprep.subr.mxu0 0.0
  %449 = vmatpush1.msra.mxu0 %v150
  %450 = vmatprep.subr.mxu0 0.0
  %451 = vmatpush1.msra.mxu0 %v151
  %452 = vmatprep.subr.mxu0 0.0
  %453 = vmatpush1.msra.mxu0 %v152
  %454 = vmatprep.subr.mxu0 0.0
  %455 = vmatpush1.msra.mxu0 %v153
  %456 = vmatprep.subr.mxu0 0.0
  %457 = vmatpush1.msra.mxu0 %v154
  %458 = vmatprep.subr.mxu0 0.0
  %459 = vmatpush1.msra.mxu0 %v155
  %460 = vmatprep.subr.mxu0 0.0
  %461 = vmatpush1.msra.mxu0 %v156
  %462 = vmatprep.subr.mxu0 0.0
  %463 = vmatpush1.msra.mxu0 %v157
  %464 = vmatprep.subr.mxu0 0.0
  %465 = vmatpush1.msra.mxu0 %v158
  %466 = vmatprep.subr.mxu0 0.0
  %467 = vmatpush1.msra.mxu0 %v159
  %468 = vmatprep.subr.mxu0 0.0
  %469 = vmatpush1.msra.mxu0 %v160
  %470 = vmatprep.subr.mxu0 0.0
  %471 = vmatpush1.msra.mxu0 %v161
  %472 = vmatprep.subr.mxu0 0.0
  %473 = vmatpush1.msra.mxu0 %v162
  %474 = vmatprep.subr.mxu0 0.0
  %475 = vmatpush1.msra.mxu0 0.0
  %476 = vmatprep.subr.mxu0 0.0
  %477 = vmatpush1.msra.mxu0 0.0
  %478 = vmatprep.subr.mxu0 0.0
  %479 = vmatpush1.msra.mxu0 0.0
  %480 = vmatprep.subr.mxu0 0.0
  %481 = vmatpush1.msra.mxu0 0.0
  %482 = vmatprep.subr.mxu0 0.0
  %483 = vmatpush1.msra.mxu0 0.0
  %484 = vmatprep.subr.mxu0 0.0
  %485 = vmatpush1.msra.mxu0 0.0
  %486 = vmatprep.subr.mxu0 0.0
  %487 = vmatpush1.msra.mxu0 0.0
  %488 = vmatprep.subr.mxu0 0.0
  %489 = vmatpush1.msra.mxu0 0.0
  %490 = vmatprep.subr.mxu0 0.0
  %491 = vmatpush1.msra.mxu0 0.0
  %492 = vmatprep.subr.mxu0 0.0
  %493 = vmatpush1.msra.mxu0 0.0
  %494 = vmatprep.subr.mxu0 0.0
  %495 = vmatpush1.msra.mxu0 0.0
  %496 = vmatprep.subr.mxu0 0.0
  %497 = vmatpush1.msra.mxu0 0.0
  %498 = vmatprep.subr.mxu0 0.0
  %499 = vmatpush1.msra.mxu0 0.0
  %500 = vmatprep.subr.mxu0 0.0
  %501 = vmatpush1.msra.mxu0 0.0
  %502 = vmatprep.subr.mxu0 0.0
  %503 = vmatpush1.msra.mxu0 0.0
  %504 = vmatprep.subr.mxu0 0.0
  %505 = vmatpush1.msra.mxu0 0.0
  %506 = vmatprep.mubr.f32.mxu0 0.0
  %507 = vmatmul.mubr.f32.gmra.mrb[0].mxu0 %v29
  %v508 = vpop.f32.mrb[0].mxu0
  %v509 = vadd.f32 %v424, %v508
  %v510 = vpop.f32.mrb[0].mxu0
  %511 = vmatprep.mubr.f32.mxu0 0.0
  %512 = vmatmul.mubr.f32.gmra.mrb[0].mxu0 %v36
  %v513 = vpop.f32.mrb[0].mxu0
  %v514 = vadd.f32 %v429, %v513
  %v515 = vpop.f32.mrb[0].mxu0
  %516 = vmatprep.mubr.f32.mxu0 0.0
  %517 = vmatmul.mubr.f32.gmra.mrb[0].mxu0 %v43
  %v518 = vpop.f32.mrb[0].mxu0
  %v519 = vadd.f32 %v434, %v518
  %v520 = vpop.f32.mrb[0].mxu0
  %521 = vmatprep.mubr.f32.mxu0 0.0
  %522 = vmatmul.mubr.f32.gmra.mrb[0].mxu0 %v50
  %v523 = vpop.f32.mrb[0].mxu0
  %v524 = vadd.f32 %v439, %v523
  %v525 = vpop.f32.mrb[0].mxu0
  %526 = vdwg.mxu0
  %v527 = vmax.f32 %v509, 0.0
  %v528 = vmax.f32 %v514, 0.0
  %v529 = vmax.f32 %v519, 0.0
  %v530 = vmax.f32 %v524, 0.0
  %531 = vrot.lane.b32.xlu0 %v527, 1
  %v532 = vpop.permute.xlu0 %531
  %533 = vrot.lane.b32.xlu0 %v528, 1
  %v534 = vpop.permute.xlu0 %533
  %535 = vrot.lane.b32.xlu0 %v529, 1
  %v536 = vpop.permute.xlu0 %535
  %537 = vrot.lane.b32.xlu0 %v530, 1
  %v538 = vpop.permute.xlu0 %537
  %v539 = vld [vmem:[%s5] sm:$0x1]
  %v540 = vlaneseq
  %v541 = vshrl.u32 %v540, 7
  %v542 = vsub.s32 0, %v541
  %v543 = vrot.slane %v539, %v542
  %v544 = vmul.f32 %v532, %v543
  %v545 = vmul.f32 %v534, %v543
  %v546 = vmul.f32 %v536, %v543
  %v547 = vmul.f32 %v538, %v543
  %548 = vrot.lane.b32.xlu0 %v527, 127
  %v549 = vpop.permute.xlu0 %548
  %550 = vrot.lane.b32.xlu0 %v528, 127
  %v551 = vpop.permute.xlu0 %550
  %552 = vrot.lane.b32.xlu0 %v529, 127
  %v553 = vpop.permute.xlu0 %552
  %554 = vrot.lane.b32.xlu0 %v530, 127
  %v555 = vpop.permute.xlu0 %554
  %v556 = vld [vmem:[%s5 + $0x1] sm:$0x1]
  %v557 = vlaneseq
  %v558 = vshrl.u32 %v557, 7
  %v559 = vsub.s32 0, %v558
  %v560 = vrot.slane %v556, %v559
  %v561 = vmul.f32 %v549, %v560
  %v562 = vmul.f32 %v551, %v560
  %v563 = vmul.f32 %v553, %v560
  %v564 = vmul.f32 %v555, %v560
  %v565 = vld [vmem:[%s3] sm:$0xff]
  %v566 = vld [vmem:[%s4] sm:$0xff]
  %568 = vset.pattern.permute.xlu0 0
  %569 = vperm.xlu0 %568, %v566
  %v570 = vpop.permute.xlu0 %569
  %vm572 = vcmask 785408
  %v574 = vsel %vm572, %v565, 0
  %576 = vmatprep.subr.mxu0 0.0
  %577 = vmatpush1.msra.mxu0 %v544
  %578 = vmatprep.subr.mxu0 0.0
  %579 = vmatpush1.msra.mxu0 %v545
  %580 = vmatprep.subr.mxu0 0.0
  %581 = vmatpush1.msra.mxu0 %v546
  %582 = vmatprep.subr.mxu0 0.0
  %583 = vmatpush1.msra.mxu0 %v547
  %584 = vmatprep.subr.mxu0 0.0
  %585 = vmatpush1.msra.mxu0 %v527
  %586 = vmatprep.subr.mxu0 0.0
  %587 = vmatpush1.msra.mxu0 %v528
  %588 = vmatprep.subr.mxu0 0.0
  %589 = vmatpush1.msra.mxu0 %v529
  %590 = vmatprep.subr.mxu0 0.0
  %591 = vmatpush1.msra.mxu0 %v530
  %592 = vmatprep.subr.mxu0 0.0
  %593 = vmatpush1.msra.mxu0 %v561
  %594 = vmatprep.subr.mxu0 0.0
  %595 = vmatpush1.msra.mxu0 %v562
  %596 = vmatprep.subr.mxu0 0.0
  %597 = vmatpush1.msra.mxu0 %v563
  %598 = vmatprep.subr.mxu0 0.0
  %599 = vmatpush1.msra.mxu0 %v564
  %600 = vmatprep.subr.mxu0 0.0
  %601 = vmatpush1.msra.mxu0 0.0
  %602 = vmatprep.subr.mxu0 0.0
  %603 = vmatpush1.msra.mxu0 0.0
  %604 = vmatprep.subr.mxu0 0.0
  %605 = vmatpush1.msra.mxu0 0.0
  %606 = vmatprep.subr.mxu0 0.0
  %607 = vmatpush1.msra.mxu0 0.0
  %608 = vmatprep.subr.mxu0 0.0
  %609 = vmatpush1.msra.mxu0 0.0
  %610 = vmatprep.subr.mxu0 0.0
  %611 = vmatpush1.msra.mxu0 0.0
  %612 = vmatprep.subr.mxu0 0.0
  %613 = vmatpush1.msra.mxu0 0.0
  %614 = vmatprep.subr.mxu0 0.0
  %615 = vmatpush1.msra.mxu0 0.0
  %616 = vmatprep.subr.mxu0 0.0
  %617 = vmatpush1.msra.mxu0 0.0
  %618 = vmatprep.subr.mxu0 0.0
  %619 = vmatpush1.msra.mxu0 0.0
  %620 = vmatprep.subr.mxu0 0.0
  %621 = vmatpush1.msra.mxu0 0.0
  %622 = vmatprep.subr.mxu0 0.0
  %623 = vmatpush1.msra.mxu0 0.0
  %624 = vmatprep.subr.mxu0 0.0
  %625 = vmatpush1.msra.mxu0 0.0
  %626 = vmatprep.subr.mxu0 0.0
  %627 = vmatpush1.msra.mxu0 0.0
  %628 = vmatprep.subr.mxu0 0.0
  %629 = vmatpush1.msra.mxu0 0.0
  %630 = vmatprep.subr.mxu0 0.0
  %631 = vmatpush1.msra.mxu0 0.0
  %632 = vmatprep.subr.mxu0 0.0
  %633 = vmatpush1.msra.mxu0 0.0
  %634 = vmatprep.subr.mxu0 0.0
  %635 = vmatpush1.msra.mxu0 0.0
  %636 = vmatprep.subr.mxu0 0.0
  %637 = vmatpush1.msra.mxu0 0.0
  %638 = vmatprep.subr.mxu0 0.0
  %639 = vmatpush1.msra.mxu0 0.0
  %640 = vmatprep.mubr.f32.mxu0 0.0
  %641 = vmatmul.mubr.f32.gmra.mrb[0].mxu0 %v574
  %v642 = vpop.f32.mrb[0].mxu0
  %v643 = vadd.f32 %v570, %v642
  %v644 = vpop.f32.mrb[0].mxu0
  %645 = vdwg.mxu0
  %646 = vst [vmem:[%s6] sm:$0xff] %v643
  // Predicated region
  $region26: #{enc_r_forward.5} parent=0 // pred_check
    _
  $region27: #{enc_r_forward.5} parent=0 // pred_check_branch
    %648 = sbr.rel (0) target = $region29
  $region28: #{enc_r_forward.5} parent=0 // pred_region
    _
  $region29: #{enc_r_forward.5} parent=0 // pred_fallthru
    _
  // Predicated region
  $region30: #{enc_r_forward.5} parent=0 // pred_check
    _
  $region31: #{enc_r_forward.5} parent=0 // pred_check_branch
    %650 = sbr.rel (0) target = $region33
  $region32: #{enc_r_forward.5} parent=0 // pred_region
    _
  $region33: #{enc_r_forward.5} parent=0 // pred_fallthru
    _

</llo_original>
